<compile_context>
chip_gen: v7x
topology: tpu7x:2x2x1
jax: 0.10.0
libtpu: 0.0.40
codegen_flags: <defaults>
</compile_context>

<pallas_src>
import functools

import numpy as np
import jax
import jax.numpy as jnp
from jax import lax
from jax.experimental import pallas as pl
from jax.experimental.pallas import tpu as pltpu


# ---------------------------------------------------------------------------
# Wrapper-side weight transform (pure JAX): fold the (kh, kw, ci) taps of the
# 3D conv into block-banded matrices so the Pallas kernel only runs deep,
# lane-dense matmuls.
# ---------------------------------------------------------------------------
def make_conv_band(w, H, W):
    """w: (Cout, Cin, K, K, K) -> band: (K, H*W*Cin, H*W*Cout).

    band[kd, (hi*W+wi)*Cin+ci, (ho*W+wo)*Cout+co] =
        w[co, ci, kd, hi-ho+p, wi-wo+p]  if both offsets lie in [0, K), else 0,
    so that  out_d += x_pad[d+kd] @ band[kd]  reproduces the stride-1 'same'
    conv over (h, w) with the (h, w) zero padding folded into the band.
    """
    Cout, Cin, K, _, _ = w.shape
    p = K // 2
    hh = np.arange(H)
    ww = np.arange(W)
    dh = hh[:, None] - hh[None, :] + p                 # (H_in, H_out)
    dw = ww[:, None] - ww[None, :] + p                 # (W_in, W_out)
    vh = (dh >= 0) & (dh < K)
    vw = (dw >= 0) & (dw < K)
    dh_c = np.clip(dh, 0, K - 1)
    dw_c = np.clip(dw, 0, K - 1)

    w_t = jnp.transpose(w, (2, 3, 4, 1, 0))            # (kd, kh, kw, Cin, Cout)
    g = w_t[:, dh_c]                                   # (K, Hi, Ho, K, Cin, Cout)
    g = g[:, :, :, dw_c]                               # (K, Hi, Ho, Wi, Wo, Cin, Cout)
    mask = (vh[:, :, None, None] & vw[None, None, :, :]).astype(w.dtype)
    g = g * mask[None, :, :, :, :, None, None]
    band = jnp.transpose(g, (0, 1, 3, 5, 2, 4, 6))     # (kd, Hi, Wi, Cin, Ho, Wo, Cout)
    return band.reshape(K, H * W * Cin, H * W * Cout)


# ---------------------------------------------------------------------------
# Fully fused LFFB kernel: three branches of conv(K)+ReLU+conv(K) (with the
# branch-half of the shared 1x1 folded in), the prev-half 1x1 matmuls, and
# the final residual add — for one batch element per grid step.
# ---------------------------------------------------------------------------
def _lffb_kernel(xpad_ref, bA3_ref, bB3_ref, bA5_ref, bB5_ref, bA7_ref,
                 bB7_ref, b1b_ref, o_ref, hpad_ref):
    """Shapes (L = H*W*C, P = 3 = max halo):
    xpad_ref : (1, D+2P, L)   input, zero-padded along D by the max halo
    bA*_ref  : (K, L, L)      banded weights, first conv of each branch
    bB*_ref  : (K, L, L)      banded weights, second conv with the branch
                              half of the shared 1x1 already folded in
    b1b_ref  : (L, L)         block-diag 1x1 weights, prev half of the cat
    o_ref    : (1, D, L)
    hpad_ref : (D+2P, L) f32  VMEM scratch for the zero-padded ReLU result
    """
    D = o_ref.shape[1]
    L = o_ref.shape[2]
    P = (xpad_ref.shape[1] - D) // 2
    f32 = jnp.float32

    xp = xpad_ref[0]                                   # (D+2P, L)
    x = xp[P:P + D, :]                                 # (D, L)
    b1b = b1b_ref[...]

    # Zero the halo rows of the shared ReLU-intermediate scratch once.
    hpad_ref[0:P, :] = jnp.zeros((P, L), f32)
    hpad_ref[P + D:P + D + P, :] = jnp.zeros((P, L), f32)

    def branch(bA_ref, bB_ref):
        K = bA_ref.shape[0]
        off = P - K // 2
        # conv1 (+ ReLU): K accumulating matmuls, contraction depth L.
        acc = jnp.dot(xp[off:off + D, :], bA_ref[0],
                      preferred_element_type=f32)
        for kd in range(1, K):
            acc = acc + jnp.dot(xp[off + kd:off + kd + D, :], bA_ref[kd],
                                preferred_element_type=f32)
        hpad_ref[P:P + D, :] = jnp.maximum(acc, 0.0)   # stays in VMEM
        hp = hpad_ref[...]
        # conv2 (branch half of the shared 1x1 is folded into bB).
        acc2 = jnp.dot(hp[off:off + D, :], bB_ref[0],
                       preferred_element_type=f32)
        for kd in range(1, K):
            acc2 = acc2 + jnp.dot(hp[off + kd:off + kd + D, :], bB_ref[kd],
                                  preferred_element_type=f32)
        return acc2

    # x_3x3 -> x_5x5 -> x_7x7 chain; prev half of the 1x1 is one matmul each.
    y = branch(bA3_ref, bB3_ref) + jnp.dot(x, b1b, preferred_element_type=f32)
    y = branch(bA5_ref, bB5_ref) + jnp.dot(y, b1b, preferred_element_type=f32)
    y = branch(bA7_ref, bB7_ref) + jnp.dot(y, b1b, preferred_element_type=f32)

    o_ref[0] = (x.astype(f32) + y).astype(o_ref.dtype)  # final residual


# ---------------------------------------------------------------------------
# LFFB forward (Pallas) and pure-JAX reference
# ---------------------------------------------------------------------------
def lffb_forward(x_ncdhw, params):
    N, C, D, H, W = x_ncdhw.shape
    L = H * W * C
    P = 3                                              # max halo (7x7 conv)
    # NCDHW -> (N, D, H*W*C): rows on D, (h, w, c) flattened onto lanes.
    x = jnp.transpose(x_ncdhw, (0, 2, 3, 4, 1)).reshape(N, D, L)
    x_pad = jnp.pad(x, ((0, 0), (P, P), (0, 0)))       # pad D only

    # Shared conv1x1 over cat(branch, prev) split into two block-diag mats.
    w1 = params["w1"][:, :, 0, 0, 0]                   # (Cout, 2C)
    eye = jnp.eye(H * W, dtype=w1.dtype)
    b1a = jnp.kron(eye, jnp.transpose(w1[:, :C]))      # branch half (L, L)
    b1b = jnp.kron(eye, jnp.transpose(w1[:, C:]))      # prev half   (L, L)

    def bands(wa, wb):
        bA = make_conv_band(wa, H, W)
        bB = make_conv_band(wb, H, W)
        # Fold the branch half of the shared 1x1 into the second conv.
        bBf = jnp.einsum("kij,jo->kio", bB, b1a)
        return bA, bBf

    bA3, bB3 = bands(params["w3a"], params["w3b"])
    bA5, bB5 = bands(params["w5a"], params["w5b"])
    bA7, bB7 = bands(params["w7a"], params["w7b"])

    out = pl.pallas_call(
        _lffb_kernel,
        out_shape=jax.ShapeDtypeStruct((N, D, L), x.dtype),
        grid_spec=pltpu.PrefetchScalarGridSpec(
            num_scalar_prefetch=0,
            grid=(N,),
            in_specs=[
                pl.BlockSpec((1, D + 2 * P, L), lambda n: (n, 0, 0)),  # x_pad
                pl.BlockSpec((3, L, L), lambda n: (0, 0, 0)),          # bA3
                pl.BlockSpec((3, L, L), lambda n: (0, 0, 0)),          # bB3
                pl.BlockSpec((5, L, L), lambda n: (0, 0, 0)),          # bA5
                pl.BlockSpec((5, L, L), lambda n: (0, 0, 0)),          # bB5
                pl.BlockSpec((7, L, L), lambda n: (0, 0, 0)),          # bA7
                pl.BlockSpec((7, L, L), lambda n: (0, 0, 0)),          # bB7
                pl.BlockSpec((L, L), lambda n: (0, 0)),                # b1b
            ],
            out_specs=pl.BlockSpec((1, D, L), lambda n: (n, 0, 0)),
            scratch_shapes=[pltpu.VMEM((D + 2 * P, L), jnp.float32)],
        ),
        compiler_params=pltpu.CompilerParams(
            dimension_semantics=("parallel",),
            vmem_limit_bytes=40 * 1024 * 1024),
    )(x_pad, bA3, bB3, bA5, bB5, bA7, bB7, b1b)

    out = out.reshape(N, D, H, W, C)
    return jnp.transpose(out, (0, 4, 1, 2, 3))         # -> NCDHW


def _ref_conv3d(x, w):
    return lax.conv_general_dilated(
        x, jnp.transpose(w, (2, 3, 4, 1, 0)),
        window_strides=(1, 1, 1), padding="SAME",
        dimension_numbers=("NDHWC", "DHWIO", "NDHWC"))


def lffb_reference(x_ncdhw, params):
    x = jnp.transpose(x_ncdhw, (0, 2, 3, 4, 1))
    wcat = params["w1"][:, :, 0, 0, 0]                 # (Cout, 2C)

    def branch(wa, wb):
        return _ref_conv3d(jnp.maximum(_ref_conv3d(x, wa), 0.0), wb)

    def c1(a, b):
        cat = jnp.concatenate([a, b], axis=-1)
        return jnp.einsum("ndhwc,oc->ndhwo", cat, wcat)

    x3 = c1(branch(params["w3a"], params["w3b"]), x)
    x5 = c1(branch(params["w5a"], params["w5b"]), x3)
    x7 = c1(branch(params["w7a"], params["w7b"]), x5)
    return jnp.transpose(x + x7, (0, 4, 1, 2, 3))


# ---------------------------------------------------------------------------
# Deterministic parameter init + driver
# ---------------------------------------------------------------------------
def init_params(key, v_size):
    def conv_w(k, cout, cin, ksz):
        scale = 1.0 / np.sqrt(cin * ksz ** 3)
        return scale * jax.random.normal(
            k, (cout, cin, ksz, ksz, ksz), dtype=jnp.float32)

    keys = jax.random.split(key, 7)
    return {
        "w3a": conv_w(keys[0], v_size, v_size, 3),
        "w3b": conv_w(keys[1], v_size, v_size, 3),
        "w5a": conv_w(keys[2], v_size, v_size, 5),
        "w5b": conv_w(keys[3], v_size, v_size, 5),
        "w7a": conv_w(keys[4], v_size, v_size, 7),
        "w7b": conv_w(keys[5], v_size, v_size, 7),
        "w1":  conv_w(keys[6], v_size, 2 * v_size, 1),
    }


if __name__ == "__main__":
    v_size = 4
    N, D, H, W = 2, 8, 8, 8

    key = jax.random.PRNGKey(0)
    kx, kp = jax.random.split(key)
    x = jax.random.normal(kx, (N, v_size, D, H, W), dtype=jnp.float32)
    params = init_params(kp, v_size)

    out = jax.block_until_ready(jax.jit(lffb_forward)(x, params))

    ref = jax.block_until_ready(jax.jit(lffb_reference)(x, params))
    np.testing.assert_allclose(np.asarray(out), np.asarray(ref),
                               rtol=1e-3, atol=1e-3)

    print("KERNEL_OK")
</pallas_src>

<mosaic_0001>
module attributes {stable_mosaic.version = 11 : i64} {
  func.func @_lffb_kernel(%arg0: i32, %arg1: memref<1x14x256xf32, #tpu.memory_space<vmem>>, %arg2: memref<3x256x256xf32, #tpu.memory_space<vmem>>, %arg3: memref<3x256x256xf32, #tpu.memory_space<vmem>>, %arg4: memref<5x256x256xf32, #tpu.memory_space<vmem>>, %arg5: memref<5x256x256xf32, #tpu.memory_space<vmem>>, %arg6: memref<7x256x256xf32, #tpu.memory_space<vmem>>, %arg7: memref<7x256x256xf32, #tpu.memory_space<vmem>>, %arg8: memref<256x256xf32, #tpu.memory_space<vmem>>, %arg9: memref<1x8x256xf32, #tpu.memory_space<vmem>>, %arg10: memref<14x256xf32, #tpu.memory_space<vmem>>) attributes {dimension_semantics = [#tpu.dimension_semantics<parallel>], iteration_bounds = array<i64: 2>, scalar_prefetch = 0 : i64, scratch_operands = 1 : i64, tpu.core_type = #tpu.core_type<tc>, window_params = [{transform_indices = @transform_0, window_bounds = array<i64: 1, 14, 256>}, {pipeline_mode = #tpu.pipeline_mode<synchronous>, transform_indices = @transform_1, window_bounds = array<i64: 3, 256, 256>}, {pipeline_mode = #tpu.pipeline_mode<synchronous>, transform_indices = @transform_2, window_bounds = array<i64: 3, 256, 256>}, {pipeline_mode = #tpu.pipeline_mode<synchronous>, transform_indices = @transform_3, window_bounds = array<i64: 5, 256, 256>}, {pipeline_mode = #tpu.pipeline_mode<synchronous>, transform_indices = @transform_4, window_bounds = array<i64: 5, 256, 256>}, {pipeline_mode = #tpu.pipeline_mode<synchronous>, transform_indices = @transform_5, window_bounds = array<i64: 7, 256, 256>}, {pipeline_mode = #tpu.pipeline_mode<synchronous>, transform_indices = @transform_6, window_bounds = array<i64: 7, 256, 256>}, {pipeline_mode = #tpu.pipeline_mode<synchronous>, transform_indices = @transform_7, window_bounds = array<i64: 256, 256>}, {transform_indices = @transform_8, window_bounds = array<i64: 1, 8, 256>}]} {
    %c0 = arith.constant 0 : index
    %c0_0 = arith.constant 0 : index
    %c0_1 = arith.constant 0 : index
    %0 = vector.load %arg1[%c0, %c0_0, %c0_1] : memref<1x14x256xf32, #tpu.memory_space<vmem>>, vector<1x14x256xf32>
    %1 = vector.shape_cast %0 : vector<1x14x256xf32> to vector<14x256xf32>
    %2 = vector.extract_strided_slice %1 {offsets = [3, 0], sizes = [8, 256], strides = [1, 1]} : vector<14x256xf32> to vector<8x256xf32>
    %c0_2 = arith.constant 0 : index
    %c0_3 = arith.constant 0 : index
    %3 = vector.load %arg8[%c0_2, %c0_3] : memref<256x256xf32, #tpu.memory_space<vmem>>, vector<256x256xf32>
    %cst = arith.constant 0.000000e+00 : f32
    %4 = vector.broadcast %cst : f32 to vector<3x256xf32>
    %c0_4 = arith.constant 0 : index
    %c0_5 = arith.constant 0 : index
    %5 = vector.load %arg10[%c0_4, %c0_5] : memref<14x256xf32, #tpu.memory_space<vmem>>, vector<3x256xf32>
    tpu.vector_store %arg10[%c0_4, %c0_5], %4 {strides = array<i32>} : memref<14x256xf32, #tpu.memory_space<vmem>>, vector<3x256xf32>,
    %cst_6 = arith.constant 0.000000e+00 : f32
    %6 = vector.broadcast %cst_6 : f32 to vector<3x256xf32>
    %c11 = arith.constant 11 : index
    %c0_7 = arith.constant 0 : index
    %7 = vector.load %arg10[%c11, %c0_7] : memref<14x256xf32, #tpu.memory_space<vmem>>, vector<3x256xf32>
    tpu.vector_store %arg10[%c11, %c0_7], %6 {strides = array<i32>} : memref<14x256xf32, #tpu.memory_space<vmem>>, vector<3x256xf32>,
    %8 = vector.extract_strided_slice %1 {offsets = [2, 0], sizes = [8, 256], strides = [1, 1]} : vector<14x256xf32> to vector<8x256xf32>
    %c0_8 = arith.constant 0 : index
    %c0_9 = arith.constant 0 : index
    %c0_10 = arith.constant 0 : index
    %9 = vector.load %arg2[%c0_8, %c0_9, %c0_10] : memref<3x256x256xf32, #tpu.memory_space<vmem>>, vector<1x256x256xf32>
    %10 = vector.shape_cast %9 : vector<1x256x256xf32> to vector<256x256xf32>
    %cst_11 = arith.constant dense<0.000000e+00> : vector<8x256xf32>
    %11 = tpu.matmul %8, %10, %cst_11 {dimension_numbers = #tpu.dot_dimension_numbers<[1], [0], [0], [1], [0, 0, 1, 1], [], []>} : vector<8x256xf32>, vector<256x256xf32>, vector<8x256xf32> -> vector<8x256xf32>
    %12 = vector.extract_strided_slice %1 {offsets = [3, 0], sizes = [8, 256], strides = [1, 1]} : vector<14x256xf32> to vector<8x256xf32>
    %c1 = arith.constant 1 : index
    %c0_12 = arith.constant 0 : index
    %c0_13 = arith.constant 0 : index
    %13 = vector.load %arg2[%c1, %c0_12, %c0_13] : memref<3x256x256xf32, #tpu.memory_space<vmem>>, vector<1x256x256xf32>
    %14 = vector.shape_cast %13 : vector<1x256x256xf32> to vector<256x256xf32>
    %cst_14 = arith.constant dense<0.000000e+00> : vector<8x256xf32>
    %15 = tpu.matmul %12, %14, %cst_14 {dimension_numbers = #tpu.dot_dimension_numbers<[1], [0], [0], [1], [0, 0, 1, 1], [], []>} : vector<8x256xf32>, vector<256x256xf32>, vector<8x256xf32> -> vector<8x256xf32>
    %16 = arith.addf %11, %15 : vector<8x256xf32>
    %17 = vector.extract_strided_slice %1 {offsets = [4, 0], sizes = [8, 256], strides = [1, 1]} : vector<14x256xf32> to vector<8x256xf32>
    %c2 = arith.constant 2 : index
    %c0_15 = arith.constant 0 : index
    %c0_16 = arith.constant 0 : index
    %18 = vector.load %arg2[%c2, %c0_15, %c0_16] : memref<3x256x256xf32, #tpu.memory_space<vmem>>, vector<1x256x256xf32>
    %19 = vector.shape_cast %18 : vector<1x256x256xf32> to vector<256x256xf32>
    %cst_17 = arith.constant dense<0.000000e+00> : vector<8x256xf32>
    %20 = tpu.matmul %17, %19, %cst_17 {dimension_numbers = #tpu.dot_dimension_numbers<[1], [0], [0], [1], [0, 0, 1, 1], [], []>} : vector<8x256xf32>, vector<256x256xf32>, vector<8x256xf32> -> vector<8x256xf32>
    %21 = arith.addf %16, %20 : vector<8x256xf32>
    %cst_18 = arith.constant 0.000000e+00 : f32
    %22 = vector.broadcast %cst_18 : f32 to vector<8x256xf32>
    %23 = arith.maximumf %21, %22 : vector<8x256xf32>
    %c3 = arith.constant 3 : index
    %c0_19 = arith.constant 0 : index
    %24 = vector.load %arg10[%c3, %c0_19] : memref<14x256xf32, #tpu.memory_space<vmem>>, vector<8x256xf32>
    tpu.vector_store %arg10[%c3, %c0_19], %23 {strides = array<i32>} : memref<14x256xf32, #tpu.memory_space<vmem>>, vector<8x256xf32>,
    %c0_20 = arith.constant 0 : index
    %c0_21 = arith.constant 0 : index
    %25 = vector.load %arg10[%c0_20, %c0_21] : memref<14x256xf32, #tpu.memory_space<vmem>>, vector<14x256xf32>
    %26 = vector.extract_strided_slice %25 {offsets = [2, 0], sizes = [8, 256], strides = [1, 1]} : vector<14x256xf32> to vector<8x256xf32>
    %c0_22 = arith.constant 0 : index
    %c0_23 = arith.constant 0 : index
    %c0_24 = arith.constant 0 : index
    %27 = vector.load %arg3[%c0_22, %c0_23, %c0_24] : memref<3x256x256xf32, #tpu.memory_space<vmem>>, vector<1x256x256xf32>
    %28 = vector.shape_cast %27 : vector<1x256x256xf32> to vector<256x256xf32>
    %cst_25 = arith.constant dense<0.000000e+00> : vector<8x256xf32>
    %29 = tpu.matmul %26, %28, %cst_25 {dimension_numbers = #tpu.dot_dimension_numbers<[1], [0], [0], [1], [0, 0, 1, 1], [], []>} : vector<8x256xf32>, vector<256x256xf32>, vector<8x256xf32> -> vector<8x256xf32>
    %30 = vector.extract_strided_slice %25 {offsets = [3, 0], sizes = [8, 256], strides = [1, 1]} : vector<14x256xf32> to vector<8x256xf32>
    %c1_26 = arith.constant 1 : index
    %c0_27 = arith.constant 0 : index
    %c0_28 = arith.constant 0 : index
    %31 = vector.load %arg3[%c1_26, %c0_27, %c0_28] : memref<3x256x256xf32, #tpu.memory_space<vmem>>, vector<1x256x256xf32>
    %32 = vector.shape_cast %31 : vector<1x256x256xf32> to vector<256x256xf32>
    %cst_29 = arith.constant dense<0.000000e+00> : vector<8x256xf32>
    %33 = tpu.matmul %30, %32, %cst_29 {dimension_numbers = #tpu.dot_dimension_numbers<[1], [0], [0], [1], [0, 0, 1, 1], [], []>} : vector<8x256xf32>, vector<256x256xf32>, vector<8x256xf32> -> vector<8x256xf32>
    %34 = arith.addf %29, %33 : vector<8x256xf32>
    %35 = vector.extract_strided_slice %25 {offsets = [4, 0], sizes = [8, 256], strides = [1, 1]} : vector<14x256xf32> to vector<8x256xf32>
    %c2_30 = arith.constant 2 : index
    %c0_31 = arith.constant 0 : index
    %c0_32 = arith.constant 0 : index
    %36 = vector.load %arg3[%c2_30, %c0_31, %c0_32] : memref<3x256x256xf32, #tpu.memory_space<vmem>>, vector<1x256x256xf32>
    %37 = vector.shape_cast %36 : vector<1x256x256xf32> to vector<256x256xf32>
    %cst_33 = arith.constant dense<0.000000e+00> : vector<8x256xf32>
    %38 = tpu.matmul %35, %37, %cst_33 {dimension_numbers = #tpu.dot_dimension_numbers<[1], [0], [0], [1], [0, 0, 1, 1], [], []>} : vector<8x256xf32>, vector<256x256xf32>, vector<8x256xf32> -> vector<8x256xf32>
    %39 = arith.addf %34, %38 : vector<8x256xf32>
    %cst_34 = arith.constant dense<0.000000e+00> : vector<8x256xf32>
    %40 = tpu.matmul %2, %3, %cst_34 {dimension_numbers = #tpu.dot_dimension_numbers<[1], [0], [0], [1], [0, 0, 1, 1], [], []>} : vector<8x256xf32>, vector<256x256xf32>, vector<8x256xf32> -> vector<8x256xf32>
    %41 = arith.addf %39, %40 : vector<8x256xf32>
    %42 = vector.extract_strided_slice %1 {offsets = [1, 0], sizes = [8, 256], strides = [1, 1]} : vector<14x256xf32> to vector<8x256xf32>
    %c0_35 = arith.constant 0 : index
    %c0_36 = arith.constant 0 : index
    %c0_37 = arith.constant 0 : index
    %43 = vector.load %arg4[%c0_35, %c0_36, %c0_37] : memref<5x256x256xf32, #tpu.memory_space<vmem>>, vector<1x256x256xf32>
    %44 = vector.shape_cast %43 : vector<1x256x256xf32> to vector<256x256xf32>
    %cst_38 = arith.constant dense<0.000000e+00> : vector<8x256xf32>
    %45 = tpu.matmul %42, %44, %cst_38 {dimension_numbers = #tpu.dot_dimension_numbers<[1], [0], [0], [1], [0, 0, 1, 1], [], []>} : vector<8x256xf32>, vector<256x256xf32>, vector<8x256xf32> -> vector<8x256xf32>
    %46 = vector.extract_strided_slice %1 {offsets = [2, 0], sizes = [8, 256], strides = [1, 1]} : vector<14x256xf32> to vector<8x256xf32>
    %c1_39 = arith.constant 1 : index
    %c0_40 = arith.constant 0 : index
    %c0_41 = arith.constant 0 : index
    %47 = vector.load %arg4[%c1_39, %c0_40, %c0_41] : memref<5x256x256xf32, #tpu.memory_space<vmem>>, vector<1x256x256xf32>
    %48 = vector.shape_cast %47 : vector<1x256x256xf32> to vector<256x256xf32>
    %cst_42 = arith.constant dense<0.000000e+00> : vector<8x256xf32>
    %49 = tpu.matmul %46, %48, %cst_42 {dimension_numbers = #tpu.dot_dimension_numbers<[1], [0], [0], [1], [0, 0, 1, 1], [], []>} : vector<8x256xf32>, vector<256x256xf32>, vector<8x256xf32> -> vector<8x256xf32>
    %50 = arith.addf %45, %49 : vector<8x256xf32>
    %51 = vector.extract_strided_slice %1 {offsets = [3, 0], sizes = [8, 256], strides = [1, 1]} : vector<14x256xf32> to vector<8x256xf32>
    %c2_43 = arith.constant 2 : index
    %c0_44 = arith.constant 0 : index
    %c0_45 = arith.constant 0 : index
    %52 = vector.load %arg4[%c2_43, %c0_44, %c0_45] : memref<5x256x256xf32, #tpu.memory_space<vmem>>, vector<1x256x256xf32>
    %53 = vector.shape_cast %52 : vector<1x256x256xf32> to vector<256x256xf32>
    %cst_46 = arith.constant dense<0.000000e+00> : vector<8x256xf32>
    %54 = tpu.matmul %51, %53, %cst_46 {dimension_numbers = #tpu.dot_dimension_numbers<[1], [0], [0], [1], [0, 0, 1, 1], [], []>} : vector<8x256xf32>, vector<256x256xf32>, vector<8x256xf32> -> vector<8x256xf32>
    %55 = arith.addf %50, %54 : vector<8x256xf32>
    %56 = vector.extract_strided_slice %1 {offsets = [4, 0], sizes = [8, 256], strides = [1, 1]} : vector<14x256xf32> to vector<8x256xf32>
    %c3_47 = arith.constant 3 : index
    %c0_48 = arith.constant 0 : index
    %c0_49 = arith.constant 0 : index
    %57 = vector.load %arg4[%c3_47, %c0_48, %c0_49] : memref<5x256x256xf32, #tpu.memory_space<vmem>>, vector<1x256x256xf32>
    %58 = vector.shape_cast %57 : vector<1x256x256xf32> to vector<256x256xf32>
    %cst_50 = arith.constant dense<0.000000e+00> : vector<8x256xf32>
    %59 = tpu.matmul %56, %58, %cst_50 {dimension_numbers = #tpu.dot_dimension_numbers<[1], [0], [0], [1], [0, 0, 1, 1], [], []>} : vector<8x256xf32>, vector<256x256xf32>, vector<8x256xf32> -> vector<8x256xf32>
    %60 = arith.addf %55, %59 : vector<8x256xf32>
    %61 = vector.extract_strided_slice %1 {offsets = [5, 0], sizes = [8, 256], strides = [1, 1]} : vector<14x256xf32> to vector<8x256xf32>
    %c4 = arith.constant 4 : index
    %c0_51 = arith.constant 0 : index
    %c0_52 = arith.constant 0 : index
    %62 = vector.load %arg4[%c4, %c0_51, %c0_52] : memref<5x256x256xf32, #tpu.memory_space<vmem>>, vector<1x256x256xf32>
    %63 = vector.shape_cast %62 : vector<1x256x256xf32> to vector<256x256xf32>
    %cst_53 = arith.constant dense<0.000000e+00> : vector<8x256xf32>
    %64 = tpu.matmul %61, %63, %cst_53 {dimension_numbers = #tpu.dot_dimension_numbers<[1], [0], [0], [1], [0, 0, 1, 1], [], []>} : vector<8x256xf32>, vector<256x256xf32>, vector<8x256xf32> -> vector<8x256xf32>
    %65 = arith.addf %60, %64 : vector<8x256xf32>
    %cst_54 = arith.constant 0.000000e+00 : f32
    %66 = vector.broadcast %cst_54 : f32 to vector<8x256xf32>
    %67 = arith.maximumf %65, %66 : vector<8x256xf32>
    %c3_55 = arith.constant 3 : index
    %c0_56 = arith.constant 0 : index
    %68 = vector.load %arg10[%c3_55, %c0_56] : memref<14x256xf32, #tpu.memory_space<vmem>>, vector<8x256xf32>
    tpu.vector_store %arg10[%c3_55, %c0_56], %67 {strides = array<i32>} : memref<14x256xf32, #tpu.memory_space<vmem>>, vector<8x256xf32>,
    %c0_57 = arith.constant 0 : index
    %c0_58 = arith.constant 0 : index
    %69 = vector.load %arg10[%c0_57, %c0_58] : memref<14x256xf32, #tpu.memory_space<vmem>>, vector<14x256xf32>
    %70 = vector.extract_strided_slice %69 {offsets = [1, 0], sizes = [8, 256], strides = [1, 1]} : vector<14x256xf32> to vector<8x256xf32>
    %c0_59 = arith.constant 0 : index
    %c0_60 = arith.constant 0 : index
    %c0_61 = arith.constant 0 : index
    %71 = vector.load %arg5[%c0_59, %c0_60, %c0_61] : memref<5x256x256xf32, #tpu.memory_space<vmem>>, vector<1x256x256xf32>
    %72 = vector.shape_cast %71 : vector<1x256x256xf32> to vector<256x256xf32>
    %cst_62 = arith.constant dense<0.000000e+00> : vector<8x256xf32>
    %73 = tpu.matmul %70, %72, %cst_62 {dimension_numbers = #tpu.dot_dimension_numbers<[1], [0], [0], [1], [0, 0, 1, 1], [], []>} : vector<8x256xf32>, vector<256x256xf32>, vector<8x256xf32> -> vector<8x256xf32>
    %74 = vector.extract_strided_slice %69 {offsets = [2, 0], sizes = [8, 256], strides = [1, 1]} : vector<14x256xf32> to vector<8x256xf32>
    %c1_63 = arith.constant 1 : index
    %c0_64 = arith.constant 0 : index
    %c0_65 = arith.constant 0 : index
    %75 = vector.load %arg5[%c1_63, %c0_64, %c0_65] : memref<5x256x256xf32, #tpu.memory_space<vmem>>, vector<1x256x256xf32>
    %76 = vector.shape_cast %75 : vector<1x256x256xf32> to vector<256x256xf32>
    %cst_66 = arith.constant dense<0.000000e+00> : vector<8x256xf32>
    %77 = tpu.matmul %74, %76, %cst_66 {dimension_numbers = #tpu.dot_dimension_numbers<[1], [0], [0], [1], [0, 0, 1, 1], [], []>} : vector<8x256xf32>, vector<256x256xf32>, vector<8x256xf32> -> vector<8x256xf32>
    %78 = arith.addf %73, %77 : vector<8x256xf32>
    %79 = vector.extract_strided_slice %69 {offsets = [3, 0], sizes = [8, 256], strides = [1, 1]} : vector<14x256xf32> to vector<8x256xf32>
    %c2_67 = arith.constant 2 : index
    %c0_68 = arith.constant 0 : index
    %c0_69 = arith.constant 0 : index
    %80 = vector.load %arg5[%c2_67, %c0_68, %c0_69] : memref<5x256x256xf32, #tpu.memory_space<vmem>>, vector<1x256x256xf32>
    %81 = vector.shape_cast %80 : vector<1x256x256xf32> to vector<256x256xf32>
    %cst_70 = arith.constant dense<0.000000e+00> : vector<8x256xf32>
    %82 = tpu.matmul %79, %81, %cst_70 {dimension_numbers = #tpu.dot_dimension_numbers<[1], [0], [0], [1], [0, 0, 1, 1], [], []>} : vector<8x256xf32>, vector<256x256xf32>, vector<8x256xf32> -> vector<8x256xf32>
    %83 = arith.addf %78, %82 : vector<8x256xf32>
    %84 = vector.extract_strided_slice %69 {offsets = [4, 0], sizes = [8, 256], strides = [1, 1]} : vector<14x256xf32> to vector<8x256xf32>
    %c3_71 = arith.constant 3 : index
    %c0_72 = arith.constant 0 : index
    %c0_73 = arith.constant 0 : index
    %85 = vector.load %arg5[%c3_71, %c0_72, %c0_73] : memref<5x256x256xf32, #tpu.memory_space<vmem>>, vector<1x256x256xf32>
    %86 = vector.shape_cast %85 : vector<1x256x256xf32> to vector<256x256xf32>
    %cst_74 = arith.constant dense<0.000000e+00> : vector<8x256xf32>
    %87 = tpu.matmul %84, %86, %cst_74 {dimension_numbers = #tpu.dot_dimension_numbers<[1], [0], [0], [1], [0, 0, 1, 1], [], []>} : vector<8x256xf32>, vector<256x256xf32>, vector<8x256xf32> -> vector<8x256xf32>
    %88 = arith.addf %83, %87 : vector<8x256xf32>
    %89 = vector.extract_strided_slice %69 {offsets = [5, 0], sizes = [8, 256], strides = [1, 1]} : vector<14x256xf32> to vector<8x256xf32>
    %c4_75 = arith.constant 4 : index
    %c0_76 = arith.constant 0 : index
    %c0_77 = arith.constant 0 : index
    %90 = vector.load %arg5[%c4_75, %c0_76, %c0_77] : memref<5x256x256xf32, #tpu.memory_space<vmem>>, vector<1x256x256xf32>
    %91 = vector.shape_cast %90 : vector<1x256x256xf32> to vector<256x256xf32>
    %cst_78 = arith.constant dense<0.000000e+00> : vector<8x256xf32>
    %92 = tpu.matmul %89, %91, %cst_78 {dimension_numbers = #tpu.dot_dimension_numbers<[1], [0], [0], [1], [0, 0, 1, 1], [], []>} : vector<8x256xf32>, vector<256x256xf32>, vector<8x256xf32> -> vector<8x256xf32>
    %93 = arith.addf %88, %92 : vector<8x256xf32>
    %cst_79 = arith.constant dense<0.000000e+00> : vector<8x256xf32>
    %94 = tpu.matmul %41, %3, %cst_79 {dimension_numbers = #tpu.dot_dimension_numbers<[1], [0], [0], [1], [0, 0, 1, 1], [], []>} : vector<8x256xf32>, vector<256x256xf32>, vector<8x256xf32> -> vector<8x256xf32>
    %95 = arith.addf %93, %94 : vector<8x256xf32>
    %96 = vector.extract_strided_slice %1 {offsets = [0, 0], sizes = [8, 256], strides = [1, 1]} : vector<14x256xf32> to vector<8x256xf32>
    %c0_80 = arith.constant 0 : index
    %c0_81 = arith.constant 0 : index
    %c0_82 = arith.constant 0 : index
    %97 = vector.load %arg6[%c0_80, %c0_81, %c0_82] : memref<7x256x256xf32, #tpu.memory_space<vmem>>, vector<1x256x256xf32>
    %98 = vector.shape_cast %97 : vector<1x256x256xf32> to vector<256x256xf32>
    %cst_83 = arith.constant dense<0.000000e+00> : vector<8x256xf32>
    %99 = tpu.matmul %96, %98, %cst_83 {dimension_numbers = #tpu.dot_dimension_numbers<[1], [0], [0], [1], [0, 0, 1, 1], [], []>} : vector<8x256xf32>, vector<256x256xf32>, vector<8x256xf32> -> vector<8x256xf32>
    %100 = vector.extract_strided_slice %1 {offsets = [1, 0], sizes = [8, 256], strides = [1, 1]} : vector<14x256xf32> to vector<8x256xf32>
    %c1_84 = arith.constant 1 : index
    %c0_85 = arith.constant 0 : index
    %c0_86 = arith.constant 0 : index
    %101 = vector.load %arg6[%c1_84, %c0_85, %c0_86] : memref<7x256x256xf32, #tpu.memory_space<vmem>>, vector<1x256x256xf32>
    %102 = vector.shape_cast %101 : vector<1x256x256xf32> to vector<256x256xf32>
    %cst_87 = arith.constant dense<0.000000e+00> : vector<8x256xf32>
    %103 = tpu.matmul %100, %102, %cst_87 {dimension_numbers = #tpu.dot_dimension_numbers<[1], [0], [0], [1], [0, 0, 1, 1], [], []>} : vector<8x256xf32>, vector<256x256xf32>, vector<8x256xf32> -> vector<8x256xf32>
    %104 = arith.addf %99, %103 : vector<8x256xf32>
    %105 = vector.extract_strided_slice %1 {offsets = [2, 0], sizes = [8, 256], strides = [1, 1]} : vector<14x256xf32> to vector<8x256xf32>
    %c2_88 = arith.constant 2 : index
    %c0_89 = arith.constant 0 : index
    %c0_90 = arith.constant 0 : index
    %106 = vector.load %arg6[%c2_88, %c0_89, %c0_90] : memref<7x256x256xf32, #tpu.memory_space<vmem>>, vector<1x256x256xf32>
    %107 = vector.shape_cast %106 : vector<1x256x256xf32> to vector<256x256xf32>
    %cst_91 = arith.constant dense<0.000000e+00> : vector<8x256xf32>
    %108 = tpu.matmul %105, %107, %cst_91 {dimension_numbers = #tpu.dot_dimension_numbers<[1], [0], [0], [1], [0, 0, 1, 1], [], []>} : vector<8x256xf32>, vector<256x256xf32>, vector<8x256xf32> -> vector<8x256xf32>
    %109 = arith.addf %104, %108 : vector<8x256xf32>
    %110 = vector.extract_strided_slice %1 {offsets = [3, 0], sizes = [8, 256], strides = [1, 1]} : vector<14x256xf32> to vector<8x256xf32>
    %c3_92 = arith.constant 3 : index
    %c0_93 = arith.constant 0 : index
    %c0_94 = arith.constant 0 : index
    %111 = vector.load %arg6[%c3_92, %c0_93, %c0_94] : memref<7x256x256xf32, #tpu.memory_space<vmem>>, vector<1x256x256xf32>
    %112 = vector.shape_cast %111 : vector<1x256x256xf32> to vector<256x256xf32>
    %cst_95 = arith.constant dense<0.000000e+00> : vector<8x256xf32>
    %113 = tpu.matmul %110, %112, %cst_95 {dimension_numbers = #tpu.dot_dimension_numbers<[1], [0], [0], [1], [0, 0, 1, 1], [], []>} : vector<8x256xf32>, vector<256x256xf32>, vector<8x256xf32> -> vector<8x256xf32>
    %114 = arith.addf %109, %113 : vector<8x256xf32>
    %115 = vector.extract_strided_slice %1 {offsets = [4, 0], sizes = [8, 256], strides = [1, 1]} : vector<14x256xf32> to vector<8x256xf32>
    %c4_96 = arith.constant 4 : index
    %c0_97 = arith.constant 0 : index
    %c0_98 = arith.constant 0 : index
    %116 = vector.load %arg6[%c4_96, %c0_97, %c0_98] : memref<7x256x256xf32, #tpu.memory_space<vmem>>, vector<1x256x256xf32>
    %117 = vector.shape_cast %116 : vector<1x256x256xf32> to vector<256x256xf32>
    %cst_99 = arith.constant dense<0.000000e+00> : vector<8x256xf32>
    %118 = tpu.matmul %115, %117, %cst_99 {dimension_numbers = #tpu.dot_dimension_numbers<[1], [0], [0], [1], [0, 0, 1, 1], [], []>} : vector<8x256xf32>, vector<256x256xf32>, vector<8x256xf32> -> vector<8x256xf32>
    %119 = arith.addf %114, %118 : vector<8x256xf32>
    %120 = vector.extract_strided_slice %1 {offsets = [5, 0], sizes = [8, 256], strides = [1, 1]} : vector<14x256xf32> to vector<8x256xf32>
    %c5 = arith.constant 5 : index
    %c0_100 = arith.constant 0 : index
    %c0_101 = arith.constant 0 : index
    %121 = vector.load %arg6[%c5, %c0_100, %c0_101] : memref<7x256x256xf32, #tpu.memory_space<vmem>>, vector<1x256x256xf32>
    %122 = vector.shape_cast %121 : vector<1x256x256xf32> to vector<256x256xf32>
    %cst_102 = arith.constant dense<0.000000e+00> : vector<8x256xf32>
    %123 = tpu.matmul %120, %122, %cst_102 {dimension_numbers = #tpu.dot_dimension_numbers<[1], [0], [0], [1], [0, 0, 1, 1], [], []>} : vector<8x256xf32>, vector<256x256xf32>, vector<8x256xf32> -> vector<8x256xf32>
    %124 = arith.addf %119, %123 : vector<8x256xf32>
    %125 = vector.extract_strided_slice %1 {offsets = [6, 0], sizes = [8, 256], strides = [1, 1]} : vector<14x256xf32> to vector<8x256xf32>
    %c6 = arith.constant 6 : index
    %c0_103 = arith.constant 0 : index
    %c0_104 = arith.constant 0 : index
    %126 = vector.load %arg6[%c6, %c0_103, %c0_104] : memref<7x256x256xf32, #tpu.memory_space<vmem>>, vector<1x256x256xf32>
    %127 = vector.shape_cast %126 : vector<1x256x256xf32> to vector<256x256xf32>
    %cst_105 = arith.constant dense<0.000000e+00> : vector<8x256xf32>
    %128 = tpu.matmul %125, %127, %cst_105 {dimension_numbers = #tpu.dot_dimension_numbers<[1], [0], [0], [1], [0, 0, 1, 1], [], []>} : vector<8x256xf32>, vector<256x256xf32>, vector<8x256xf32> -> vector<8x256xf32>
    %129 = arith.addf %124, %128 : vector<8x256xf32>
    %cst_106 = arith.constant 0.000000e+00 : f32
    %130 = vector.broadcast %cst_106 : f32 to vector<8x256xf32>
    %131 = arith.maximumf %129, %130 : vector<8x256xf32>
    %c3_107 = arith.constant 3 : index
    %c0_108 = arith.constant 0 : index
    %132 = vector.load %arg10[%c3_107, %c0_108] : memref<14x256xf32, #tpu.memory_space<vmem>>, vector<8x256xf32>
    tpu.vector_store %arg10[%c3_107, %c0_108], %131 {strides = array<i32>} : memref<14x256xf32, #tpu.memory_space<vmem>>, vector<8x256xf32>,
    %c0_109 = arith.constant 0 : index
    %c0_110 = arith.constant 0 : index
    %133 = vector.load %arg10[%c0_109, %c0_110] : memref<14x256xf32, #tpu.memory_space<vmem>>, vector<14x256xf32>
    %134 = vector.extract_strided_slice %133 {offsets = [0, 0], sizes = [8, 256], strides = [1, 1]} : vector<14x256xf32> to vector<8x256xf32>
    %c0_111 = arith.constant 0 : index
    %c0_112 = arith.constant 0 : index
    %c0_113 = arith.constant 0 : index
    %135 = vector.load %arg7[%c0_111, %c0_112, %c0_113] : memref<7x256x256xf32, #tpu.memory_space<vmem>>, vector<1x256x256xf32>
    %136 = vector.shape_cast %135 : vector<1x256x256xf32> to vector<256x256xf32>
    %cst_114 = arith.constant dense<0.000000e+00> : vector<8x256xf32>
    %137 = tpu.matmul %134, %136, %cst_114 {dimension_numbers = #tpu.dot_dimension_numbers<[1], [0], [0], [1], [0, 0, 1, 1], [], []>} : vector<8x256xf32>, vector<256x256xf32>, vector<8x256xf32> -> vector<8x256xf32>
    %138 = vector.extract_strided_slice %133 {offsets = [1, 0], sizes = [8, 256], strides = [1, 1]} : vector<14x256xf32> to vector<8x256xf32>
    %c1_115 = arith.constant 1 : index
    %c0_116 = arith.constant 0 : index
    %c0_117 = arith.constant 0 : index
    %139 = vector.load %arg7[%c1_115, %c0_116, %c0_117] : memref<7x256x256xf32, #tpu.memory_space<vmem>>, vector<1x256x256xf32>
    %140 = vector.shape_cast %139 : vector<1x256x256xf32> to vector<256x256xf32>
    %cst_118 = arith.constant dense<0.000000e+00> : vector<8x256xf32>
    %141 = tpu.matmul %138, %140, %cst_118 {dimension_numbers = #tpu.dot_dimension_numbers<[1], [0], [0], [1], [0, 0, 1, 1], [], []>} : vector<8x256xf32>, vector<256x256xf32>, vector<8x256xf32> -> vector<8x256xf32>
    %142 = arith.addf %137, %141 : vector<8x256xf32>
    %143 = vector.extract_strided_slice %133 {offsets = [2, 0], sizes = [8, 256], strides = [1, 1]} : vector<14x256xf32> to vector<8x256xf32>
    %c2_119 = arith.constant 2 : index
    %c0_120 = arith.constant 0 : index
    %c0_121 = arith.constant 0 : index
    %144 = vector.load %arg7[%c2_119, %c0_120, %c0_121] : memref<7x256x256xf32, #tpu.memory_space<vmem>>, vector<1x256x256xf32>
    %145 = vector.shape_cast %144 : vector<1x256x256xf32> to vector<256x256xf32>
    %cst_122 = arith.constant dense<0.000000e+00> : vector<8x256xf32>
    %146 = tpu.matmul %143, %145, %cst_122 {dimension_numbers = #tpu.dot_dimension_numbers<[1], [0], [0], [1], [0, 0, 1, 1], [], []>} : vector<8x256xf32>, vector<256x256xf32>, vector<8x256xf32> -> vector<8x256xf32>
    %147 = arith.addf %142, %146 : vector<8x256xf32>
    %148 = vector.extract_strided_slice %133 {offsets = [3, 0], sizes = [8, 256], strides = [1, 1]} : vector<14x256xf32> to vector<8x256xf32>
    %c3_123 = arith.constant 3 : index
    %c0_124 = arith.constant 0 : index
    %c0_125 = arith.constant 0 : index
    %149 = vector.load %arg7[%c3_123, %c0_124, %c0_125] : memref<7x256x256xf32, #tpu.memory_space<vmem>>, vector<1x256x256xf32>
    %150 = vector.shape_cast %149 : vector<1x256x256xf32> to vector<256x256xf32>
    %cst_126 = arith.constant dense<0.000000e+00> : vector<8x256xf32>
    %151 = tpu.matmul %148, %150, %cst_126 {dimension_numbers = #tpu.dot_dimension_numbers<[1], [0], [0], [1], [0, 0, 1, 1], [], []>} : vector<8x256xf32>, vector<256x256xf32>, vector<8x256xf32> -> vector<8x256xf32>
    %152 = arith.addf %147, %151 : vector<8x256xf32>
    %153 = vector.extract_strided_slice %133 {offsets = [4, 0], sizes = [8, 256], strides = [1, 1]} : vector<14x256xf32> to vector<8x256xf32>
    %c4_127 = arith.constant 4 : index
    %c0_128 = arith.constant 0 : index
    %c0_129 = arith.constant 0 : index
    %154 = vector.load %arg7[%c4_127, %c0_128, %c0_129] : memref<7x256x256xf32, #tpu.memory_space<vmem>>, vector<1x256x256xf32>
    %155 = vector.shape_cast %154 : vector<1x256x256xf32> to vector<256x256xf32>
    %cst_130 = arith.constant dense<0.000000e+00> : vector<8x256xf32>
    %156 = tpu.matmul %153, %155, %cst_130 {dimension_numbers = #tpu.dot_dimension_numbers<[1], [0], [0], [1], [0, 0, 1, 1], [], []>} : vector<8x256xf32>, vector<256x256xf32>, vector<8x256xf32> -> vector<8x256xf32>
    %157 = arith.addf %152, %156 : vector<8x256xf32>
    %158 = vector.extract_strided_slice %133 {offsets = [5, 0], sizes = [8, 256], strides = [1, 1]} : vector<14x256xf32> to vector<8x256xf32>
    %c5_131 = arith.constant 5 : index
    %c0_132 = arith.constant 0 : index
    %c0_133 = arith.constant 0 : index
    %159 = vector.load %arg7[%c5_131, %c0_132, %c0_133] : memref<7x256x256xf32, #tpu.memory_space<vmem>>, vector<1x256x256xf32>
    %160 = vector.shape_cast %159 : vector<1x256x256xf32> to vector<256x256xf32>
    %cst_134 = arith.constant dense<0.000000e+00> : vector<8x256xf32>
    %161 = tpu.matmul %158, %160, %cst_134 {dimension_numbers = #tpu.dot_dimension_numbers<[1], [0], [0], [1], [0, 0, 1, 1], [], []>} : vector<8x256xf32>, vector<256x256xf32>, vector<8x256xf32> -> vector<8x256xf32>
    %162 = arith.addf %157, %161 : vector<8x256xf32>
    %163 = vector.extract_strided_slice %133 {offsets = [6, 0], sizes = [8, 256], strides = [1, 1]} : vector<14x256xf32> to vector<8x256xf32>
    %c6_135 = arith.constant 6 : index
    %c0_136 = arith.constant 0 : index
    %c0_137 = arith.constant 0 : index
    %164 = vector.load %arg7[%c6_135, %c0_136, %c0_137] : memref<7x256x256xf32, #tpu.memory_space<vmem>>, vector<1x256x256xf32>
    %165 = vector.shape_cast %164 : vector<1x256x256xf32> to vector<256x256xf32>
    %cst_138 = arith.constant dense<0.000000e+00> : vector<8x256xf32>
    %166 = tpu.matmul %163, %165, %cst_138 {dimension_numbers = #tpu.dot_dimension_numbers<[1], [0], [0], [1], [0, 0, 1, 1], [], []>} : vector<8x256xf32>, vector<256x256xf32>, vector<8x256xf32> -> vector<8x256xf32>
    %167 = arith.addf %162, %166 : vector<8x256xf32>
    %cst_139 = arith.constant dense<0.000000e+00> : vector<8x256xf32>
    %168 = tpu.matmul %95, %3, %cst_139 {dimension_numbers = #tpu.dot_dimension_numbers<[1], [0], [0], [1], [0, 0, 1, 1], [], []>} : vector<8x256xf32>, vector<256x256xf32>, vector<8x256xf32> -> vector<8x256xf32>
    %169 = arith.addf %167, %168 : vector<8x256xf32>
    %170 = arith.addf %2, %169 : vector<8x256xf32>
    %c0_140 = arith.constant 0 : index
    %c0_141 = arith.constant 0 : index
    %c0_142 = arith.constant 0 : index
    %171 = vector.load %arg9[%c0_140, %c0_141, %c0_142] : memref<1x8x256xf32, #tpu.memory_space<vmem>>, vector<1x8x256xf32>
    %172 = vector.shape_cast %171 : vector<1x8x256xf32> to vector<8x256xf32>
    %173 = vector.shape_cast %170 : vector<8x256xf32> to vector<1x8x256xf32>
    tpu.vector_store %arg9[%c0_140, %c0_141, %c0_142], %173 {strides = array<i32>} : memref<1x8x256xf32, #tpu.memory_space<vmem>>, vector<1x8x256xf32>,
    return
  }
  func.func @transform_0(%arg0: i32) -> (i32, i32, i32) {
    %c0_i32 = arith.constant 0 : i32
    %c0_i32_0 = arith.constant 0 : i32
    %c0_i32_1 = arith.constant 0 : i32
    return %arg0, %c0_i32, %c0_i32_0 : i32, i32, i32
  }
  func.func @transform_1(%arg0: i32) -> (i32, i32, i32) {
    %c0_i32 = arith.constant 0 : i32
    %c0_i32_0 = arith.constant 0 : i32
    %c0_i32_1 = arith.constant 0 : i32
    %c0_i32_2 = arith.constant 0 : i32
    return %c0_i32, %c0_i32_0, %c0_i32_1 : i32, i32, i32
  }
  func.func @transform_2(%arg0: i32) -> (i32, i32, i32) {
    %c0_i32 = arith.constant 0 : i32
    %c0_i32_0 = arith.constant 0 : i32
    %c0_i32_1 = arith.constant 0 : i32
    %c0_i32_2 = arith.constant 0 : i32
    return %c0_i32, %c0_i32_0, %c0_i32_1 : i32, i32, i32
  }
  func.func @transform_3(%arg0: i32) -> (i32, i32, i32) {
    %c0_i32 = arith.constant 0 : i32
    %c0_i32_0 = arith.constant 0 : i32
    %c0_i32_1 = arith.constant 0 : i32
    %c0_i32_2 = arith.constant 0 : i32
    return %c0_i32, %c0_i32_0, %c0_i32_1 : i32, i32, i32
  }
  func.func @transform_4(%arg0: i32) -> (i32, i32, i32) {
    %c0_i32 = arith.constant 0 : i32
    %c0_i32_0 = arith.constant 0 : i32
    %c0_i32_1 = arith.constant 0 : i32
    %c0_i32_2 = arith.constant 0 : i32
    return %c0_i32, %c0_i32_0, %c0_i32_1 : i32, i32, i32
  }
  func.func @transform_5(%arg0: i32) -> (i32, i32, i32) {
    %c0_i32 = arith.constant 0 : i32
    %c0_i32_0 = arith.constant 0 : i32
    %c0_i32_1 = arith.constant 0 : i32
    %c0_i32_2 = arith.constant 0 : i32
    return %c0_i32, %c0_i32_0, %c0_i32_1 : i32, i32, i32
  }
  func.func @transform_6(%arg0: i32) -> (i32, i32, i32) {
    %c0_i32 = arith.constant 0 : i32
    %c0_i32_0 = arith.constant 0 : i32
    %c0_i32_1 = arith.constant 0 : i32
    %c0_i32_2 = arith.constant 0 : i32
    return %c0_i32, %c0_i32_0, %c0_i32_1 : i32, i32, i32
  }
  func.func @transform_7(%arg0: i32) -> (i32, i32) {
    %c0_i32 = arith.constant 0 : i32
    %c0_i32_0 = arith.constant 0 : i32
    %c0_i32_1 = arith.constant 0 : i32
    return %c0_i32, %c0_i32_0 : i32, i32
  }
  func.func @transform_8(%arg0: i32) -> (i32, i32, i32) {
    %c0_i32 = arith.constant 0 : i32
    %c0_i32_0 = arith.constant 0 : i32
    %c0_i32_1 = arith.constant 0 : i32
    return %arg0, %c0_i32, %c0_i32_0 : i32, i32, i32
  }
}

</mosaic_0001>

<llo_original>
// kernel: lffb_forward.1
$region0: #{lffb_forward.1}
  #allocation0 [shape = 'u32[]', space=smem, size = 0x4, offset = 0x4, fixed_abs, tag = 'smem constant byte address 0x4 - core index']
  #allocation1 [shape = 'u32[144,128]{1,0:T(1,128)}', space=vmem, size = 0x12000, scoped, tag = 'internal scratch']
  #allocation2 [shape = 'f32[14,256]{1,0:T(8,128)}', space=vmem, size = 0x4000, scoped, tag = 'scratch operand']
  %s0 = inlined_call_operand.vmem [shape: f32[2,14,256], index: 0, kind: input, shape index: {}]
  %s1 = inlined_call_operand.vmem [shape: f32[3,256,256], index: 1, kind: input, shape index: {}]
  %s2 = inlined_call_operand.vmem [shape: f32[3,256,256], index: 2, kind: input, shape index: {}]
  %s3 = inlined_call_operand.vmem [shape: f32[5,256,256], index: 3, kind: input, shape index: {}]
  %s4 = inlined_call_operand.vmem [shape: f32[5,256,256], index: 4, kind: input, shape index: {}]
  %s5 = inlined_call_operand.vmem [shape: f32[7,256,256], index: 5, kind: input, shape index: {}]
  %s6 = inlined_call_operand.vmem [shape: f32[7,256,256], index: 6, kind: input, shape index: {}]
  %s7 = inlined_call_operand.vmem [shape: f32[256,256], index: 7, kind: input, shape index: {}]
  %s8 = inlined_call_operand.vmem [shape: f32[2,8,256], index: 8, kind: output, shape index: {}]
  %s9 = sld [smem:[#allocation0]]
  $region65: #{lffb_forward.1} parent=0
    _
  %s11 = ssub.s32 1, %s9
  %s12 = scalar_select 0, %s11, %s9
  loop: start=0, step=1, limit=4
  $region2: #{lffb_forward.1} parent=0 // loop_pre_header
    _
  $region3: #{lffb_forward.1} parent=0 // loop_header
    %s14 = sphi 0, %s18
    %p15 = scmp.ge.s32.totalorder %s14, 4
    %s24 = sphi 0, %s26
    %s27 = sphi 0, %s24
    %s28 = sphi 0, %s27
    %s44 = sphi 0, %s28
    %s48 = sphi 0, %s48
    %s50 = sphi 0, %s48
    %s51 = sphi 0, %s50
    %s65 = sphi 0, %s51
    %s69 = sphi 0, %s69
    %s71 = sphi 0, %s69
    %s72 = sphi 0, %s71
    %s86 = sphi 0, %s72
    %s90 = sphi 0, %s90
    %s92 = sphi 0, %s90
    %s93 = sphi 0, %s92
    %s107 = sphi 0, %s93
    %s111 = sphi 0, %s111
    %s113 = sphi 0, %s111
    %s114 = sphi 0, %s113
    %s128 = sphi 0, %s114
    %s132 = sphi 0, %s132
    %s134 = sphi 0, %s132
    %s135 = sphi 0, %s134
    %s149 = sphi 0, %s135
    %s153 = sphi 0, %s153
    %s155 = sphi 0, %s153
    %s156 = sphi 0, %s155
    %s170 = sphi 0, %s156
    %s174 = sphi 0, %s174
    %s176 = sphi 0, %s174
    %s177 = sphi 0, %s176
    %s191 = sphi 0, %s177
    %s197 = sphi 0, %s199
    %s200 = sphi 0, %s197
    %s201 = sphi 0, %s200
    %s217 = sphi 0, %s201
  $region4: #{lffb_forward.1} parent=0 // loop_header_branch
    %17 = sbr.rel (%p15) target = $region8
  $region5: #{lffb_forward.1} parent=0 // loop_body
    %s19 = ssub.s32 %s14, 1
    %s20 = ssub.s32 %s14, 2
    %s21 = sadd.s32 %s14, 1
    %s22 = ssub.s32 %s14, %s21
    %p23 = scmp.eq.s32.totalorder %s22, 0
    %s25 = sadd.s32 %s24, 1
    %s26 = scalar_select %p23, %s24, %s25
    %p29 = pneg %p23
    %p30 = scmp.eq.s32.totalorder %s14, 1
    %p31 = por %p29, %p30
    %p32 = scmp.ne.s32.totalorder %s24, %s27
    %p33 = scmp.eq.s32.totalorder %s14, 0
    %p34 = por %p32, %p33
    %p35 = scmp.ne.s32.totalorder %s24, %s27
    %p36 = scmp.eq.s32.totalorder %s19, 1
    %p37 = por %p35, %p36
    %p38 = scmp.ne.s32.totalorder %s27, %s28
    %p39 = scmp.eq.s32.totalorder %s19, 0
    %p40 = por %p38, %p39
    %p41 = scmp.ne.s32.totalorder %s27, %s28
    %p42 = scmp.eq.s32.totalorder %s20, 1
    %p43 = por %p41, %p42
    %p45 = scmp.ne.s32.totalorder %s28, %s44
    %p46 = scmp.eq.s32.totalorder %s20, 0
    %p47 = por %p45, %p46
    %s49 = sadd.s32 %s48, 1
    %p52 = scmp.eq.s32.totalorder %s14, 1
    %p53 = scmp.ne.s32.totalorder %s48, %s50
    %p54 = scmp.eq.s32.totalorder %s14, 0
    %p55 = por %p53, %p54
    %p56 = scmp.ne.s32.totalorder %s48, %s50
    %p57 = scmp.eq.s32.totalorder %s19, 1
    %p58 = por %p56, %p57
    %p59 = scmp.ne.s32.totalorder %s50, %s51
    %p60 = scmp.eq.s32.totalorder %s19, 0
    %p61 = por %p59, %p60
    %p62 = scmp.ne.s32.totalorder %s50, %s51
    %p63 = scmp.eq.s32.totalorder %s20, 1
    %p64 = por %p62, %p63
    %p66 = scmp.ne.s32.totalorder %s51, %s65
    %p67 = scmp.eq.s32.totalorder %s20, 0
    %p68 = por %p66, %p67
    %s70 = sadd.s32 %s69, 1
    %p73 = scmp.eq.s32.totalorder %s14, 1
    %p74 = scmp.ne.s32.totalorder %s69, %s71
    %p75 = scmp.eq.s32.totalorder %s14, 0
    %p76 = por %p74, %p75
    %p77 = scmp.ne.s32.totalorder %s69, %s71
    %p78 = scmp.eq.s32.totalorder %s19, 1
    %p79 = por %p77, %p78
    %p80 = scmp.ne.s32.totalorder %s71, %s72
    %p81 = scmp.eq.s32.totalorder %s19, 0
    %p82 = por %p80, %p81
    %p83 = scmp.ne.s32.totalorder %s71, %s72
    %p84 = scmp.eq.s32.totalorder %s20, 1
    %p85 = por %p83, %p84
    %p87 = scmp.ne.s32.totalorder %s72, %s86
    %p88 = scmp.eq.s32.totalorder %s20, 0
    %p89 = por %p87, %p88
    %s91 = sadd.s32 %s90, 1
    %p94 = scmp.eq.s32.totalorder %s14, 1
    %p95 = scmp.ne.s32.totalorder %s90, %s92
    %p96 = scmp.eq.s32.totalorder %s14, 0
    %p97 = por %p95, %p96
    %p98 = scmp.ne.s32.totalorder %s90, %s92
    %p99 = scmp.eq.s32.totalorder %s19, 1
    %p100 = por %p98, %p99
    %p101 = scmp.ne.s32.totalorder %s92, %s93
    %p102 = scmp.eq.s32.totalorder %s19, 0
    %p103 = por %p101, %p102
    %p104 = scmp.ne.s32.totalorder %s92, %s93
    %p105 = scmp.eq.s32.totalorder %s20, 1
    %p106 = por %p104, %p105
    %p108 = scmp.ne.s32.totalorder %s93, %s107
    %p109 = scmp.eq.s32.totalorder %s20, 0
    %p110 = por %p108, %p109
    %s112 = sadd.s32 %s111, 1
    %p115 = scmp.eq.s32.totalorder %s14, 1
    %p116 = scmp.ne.s32.totalorder %s111, %s113
    %p117 = scmp.eq.s32.totalorder %s14, 0
    %p118 = por %p116, %p117
    %p119 = scmp.ne.s32.totalorder %s111, %s113
    %p120 = scmp.eq.s32.totalorder %s19, 1
    %p121 = por %p119, %p120
    %p122 = scmp.ne.s32.totalorder %s113, %s114
    %p123 = scmp.eq.s32.totalorder %s19, 0
    %p124 = por %p122, %p123
    %p125 = scmp.ne.s32.totalorder %s113, %s114
    %p126 = scmp.eq.s32.totalorder %s20, 1
    %p127 = por %p125, %p126
    %p129 = scmp.ne.s32.totalorder %s114, %s128
    %p130 = scmp.eq.s32.totalorder %s20, 0
    %p131 = por %p129, %p130
    %s133 = sadd.s32 %s132, 1
    %p136 = scmp.eq.s32.totalorder %s14, 1
    %p137 = scmp.ne.s32.totalorder %s132, %s134
    %p138 = scmp.eq.s32.totalorder %s14, 0
    %p139 = por %p137, %p138
    %p140 = scmp.ne.s32.totalorder %s132, %s134
    %p141 = scmp.eq.s32.totalorder %s19, 1
    %p142 = por %p140, %p141
    %p143 = scmp.ne.s32.totalorder %s134, %s135
    %p144 = scmp.eq.s32.totalorder %s19, 0
    %p145 = por %p143, %p144
    %p146 = scmp.ne.s32.totalorder %s134, %s135
    %p147 = scmp.eq.s32.totalorder %s20, 1
    %p148 = por %p146, %p147
    %p150 = scmp.ne.s32.totalorder %s135, %s149
    %p151 = scmp.eq.s32.totalorder %s20, 0
    %p152 = por %p150, %p151
    %s154 = sadd.s32 %s153, 1
    %p157 = scmp.eq.s32.totalorder %s14, 1
    %p158 = scmp.ne.s32.totalorder %s153, %s155
    %p159 = scmp.eq.s32.totalorder %s14, 0
    %p160 = por %p158, %p159
    %p161 = scmp.ne.s32.totalorder %s153, %s155
    %p162 = scmp.eq.s32.totalorder %s19, 1
    %p163 = por %p161, %p162
    %p164 = scmp.ne.s32.totalorder %s155, %s156
    %p165 = scmp.eq.s32.totalorder %s19, 0
    %p166 = por %p164, %p165
    %p167 = scmp.ne.s32.totalorder %s155, %s156
    %p168 = scmp.eq.s32.totalorder %s20, 1
    %p169 = por %p167, %p168
    %p171 = scmp.ne.s32.totalorder %s156, %s170
    %p172 = scmp.eq.s32.totalorder %s20, 0
    %p173 = por %p171, %p172
    %s175 = sadd.s32 %s174, 1
    %p178 = scmp.eq.s32.totalorder %s14, 1
    %p179 = scmp.ne.s32.totalorder %s174, %s176
    %p180 = scmp.eq.s32.totalorder %s14, 0
    %p181 = por %p179, %p180
    %p182 = scmp.ne.s32.totalorder %s174, %s176
    %p183 = scmp.eq.s32.totalorder %s19, 1
    %p184 = por %p182, %p183
    %p185 = scmp.ne.s32.totalorder %s176, %s177
    %p186 = scmp.eq.s32.totalorder %s19, 0
    %p187 = por %p185, %p186
    %p188 = scmp.ne.s32.totalorder %s176, %s177
    %p189 = scmp.eq.s32.totalorder %s20, 1
    %p190 = por %p188, %p189
    %p192 = scmp.ne.s32.totalorder %s177, %s191
    %p193 = scmp.eq.s32.totalorder %s20, 0
    %p194 = por %p192, %p193
    %s195 = ssub.s32 %s14, %s21
    %p196 = scmp.eq.s32.totalorder %s195, 0
    %s198 = sadd.s32 %s197, 1
    %s199 = scalar_select %p196, %s197, %s198
    %p202 = pneg %p196
    %p203 = scmp.eq.s32.totalorder %s14, 1
    %p204 = por %p202, %p203
    %p205 = scmp.ne.s32.totalorder %s197, %s200
    %p206 = scmp.eq.s32.totalorder %s14, 0
    %p207 = por %p205, %p206
    %p208 = scmp.ne.s32.totalorder %s197, %s200
    %p209 = scmp.eq.s32.totalorder %s19, 1
    %p210 = por %p208, %p209
    %p211 = scmp.ne.s32.totalorder %s200, %s201
    %p212 = scmp.eq.s32.totalorder %s19, 0
    %p213 = por %p211, %p212
    %p214 = scmp.ne.s32.totalorder %s200, %s201
    %p215 = scmp.eq.s32.totalorder %s20, 1
    %p216 = por %p214, %p215
    %p218 = scmp.ne.s32.totalorder %s201, %s217
    %p219 = scmp.eq.s32.totalorder %s20, 0
    %p220 = por %p218, %p219
    %p221 = scmp.le.s32.totalorder 1, %s14
    %p222 = scmp.lt.s32.totalorder %s14, 3
    %p223 = pnand %p221, %p222
    %p224 = pneg %p223
    // Predicated region
    $region9: #{lffb_forward.1} parent=5 // pred_check
      _
    $region10: #{lffb_forward.1} parent=5 // pred_check_branch
      %226 = sbr.rel (%p223) target = $region12
    $region11: #{lffb_forward.1} parent=5 // pred_region
      %s227 = ssub.s32 %s14, 1
      // Predicated region
      $region13: #{lffb_forward.1} parent=11 // pred_check
        %p228 = pneg %p61
      $region14: #{lffb_forward.1} parent=11 // pred_check_branch
        %230 = sbr.rel (%p228) target = $region16
      $region15: #{lffb_forward.1} parent=11 // pred_region
        _
      $region16: #{lffb_forward.1} parent=11 // pred_fallthru
        _
      // Predicated region
      $region17: #{lffb_forward.1} parent=11 // pred_check
        %p231 = pneg %p82
      $region18: #{lffb_forward.1} parent=11 // pred_check_branch
        %233 = sbr.rel (%p231) target = $region20
      $region19: #{lffb_forward.1} parent=11 // pred_region
        _
      $region20: #{lffb_forward.1} parent=11 // pred_fallthru
        _
      // Predicated region
      $region21: #{lffb_forward.1} parent=11 // pred_check
        %p234 = pneg %p103
      $region22: #{lffb_forward.1} parent=11 // pred_check_branch
        %236 = sbr.rel (%p234) target = $region24
      $region23: #{lffb_forward.1} parent=11 // pred_region
        _
      $region24: #{lffb_forward.1} parent=11 // pred_fallthru
        _
      // Predicated region
      $region25: #{lffb_forward.1} parent=11 // pred_check
        %p237 = pneg %p124
      $region26: #{lffb_forward.1} parent=11 // pred_check_branch
        %239 = sbr.rel (%p237) target = $region28
      $region27: #{lffb_forward.1} parent=11 // pred_region
        _
      $region28: #{lffb_forward.1} parent=11 // pred_fallthru
        _
      // Predicated region
      $region29: #{lffb_forward.1} parent=11 // pred_check
        %p240 = pneg %p145
      $region30: #{lffb_forward.1} parent=11 // pred_check_branch
        %242 = sbr.rel (%p240) target = $region32
      $region31: #{lffb_forward.1} parent=11 // pred_region
        _
      $region32: #{lffb_forward.1} parent=11 // pred_fallthru
        _
      // Predicated region
      $region33: #{lffb_forward.1} parent=11 // pred_check
        %p243 = pneg %p166
      $region34: #{lffb_forward.1} parent=11 // pred_check_branch
        %245 = sbr.rel (%p243) target = $region36
      $region35: #{lffb_forward.1} parent=11 // pred_region
        _
      $region36: #{lffb_forward.1} parent=11 // pred_fallthru
        _
      // Predicated region
      $region37: #{lffb_forward.1} parent=11 // pred_check
        %p246 = pneg %p187
      $region38: #{lffb_forward.1} parent=11 // pred_check_branch
        %248 = sbr.rel (%p246) target = $region40
      $region39: #{lffb_forward.1} parent=11 // pred_region
        _
      $region40: #{lffb_forward.1} parent=11 // pred_fallthru
        _
    $region12: #{lffb_forward.1} parent=5 // pred_fallthru
      _
    %p249 = scmp.lt.s32.totalorder %s14, 2
    // Predicated region
    $region41: #{lffb_forward.1} parent=5 // pred_check
      %p250 = pneg %p249
    $region42: #{lffb_forward.1} parent=5 // pred_check_branch
      %252 = sbr.rel (%p250) target = $region44
    $region43: #{lffb_forward.1} parent=5 // pred_region
      // Predicated region
      $region45: #{lffb_forward.1} parent=43 // pred_check
        %p253 = pneg %p34
      $region46: #{lffb_forward.1} parent=43 // pred_check_branch
        %255 = sbr.rel (%p253) target = $region48
      $region47: #{lffb_forward.1} parent=43 // pred_region
        %p256 = scmp.lt.s32.totalorder %s14, 1
        %s257 = scalar_select %p256, %s14, 1
        %s258 = smul.addr %s257, 4
        %s259 = smul.addr %s258, 8
        %s260 = scalar_lea.vmem %s0, %s259
      $region48: #{lffb_forward.1} parent=43 // pred_fallthru
        _
    $region44: #{lffb_forward.1} parent=5 // pred_fallthru
      _
    %p261 = scmp.le.s32.totalorder 1, %s14
    %p262 = scmp.lt.s32.totalorder %s14, 3
    %p263 = pnand %p261, %p262
    %p264 = pneg %p263
    // Predicated region
    $region49: #{lffb_forward.1} parent=5 // pred_check
      _
    $region50: #{lffb_forward.1} parent=5 // pred_check_branch
      %266 = sbr.rel (%p263) target = $region52
    $region51: #{lffb_forward.1} parent=5 // pred_region
      %s267 = ssub.s32 %s14, 1
      %p268 = scmp.lt.s32.totalorder %s19, 1
      %s269 = scalar_select %p268, %s19, 1
      %s270 = smul.addr %s269, 4
      %s271 = smul.addr %s270, 8
      %s272 = scalar_lea.vmem %s0, %s271
      %p273 = pneg %p40
      %p274 = pneg %p37
      %p275 = pneg %p61
      %p276 = pneg %p58
      %p277 = pneg %p82
      %p278 = pneg %p79
      %p279 = pneg %p103
      %p280 = pneg %p100
      %p281 = pneg %p124
      %p282 = pneg %p121
      %p283 = pneg %p145
      %p284 = pneg %p142
      %p285 = pneg %p166
      %p286 = pneg %p163
      %p287 = pneg %p187
      %p288 = pneg %p184
      %p289 = pneg %p213
      %p290 = pneg %p210
      %p291 = scmp.lt.s32.totalorder %s19, 1
      %s292 = scalar_select %p291, %s19, 1
      %s293 = smul.addr %s292, 2
      %s294 = smul.addr %s293, 8
      %s295 = scalar_lea.vmem %s8, %s294
      %p296 = scmp.lt.s32.totalorder %s19, 1
      %s297 = scalar_select %p296, %s19, 1
      %s298 = smul.addr %s297, 4
      %s299 = smul.addr %s298, 8
      %s300 = scalar_lea.vmem %s0, %s299
      %p301 = scmp.lt.s32.totalorder %s19, 1
      %s302 = scalar_select %p301, %s19, 1
      %s303 = smul.addr %s302, 2
      %s304 = smul.addr %s303, 8
      %s305 = scalar_lea.vmem %s8, %s304
      %v306 = vld [vmem:[%s300] sm:$0xff]
      %v307 = vld [vmem:[%s300 + $0x8] sm:$0xff]
      %v308 = vld [vmem:[%s300 + $0x10] sm:$0x3f]
      %v309 = vld [vmem:[%s300 + $0x18] sm:$0x3f]
      %v310 = vld [vmem:[%s7] sm:$0xff]
      %v311 = vld [vmem:[%s7 + $0x8] sm:$0xff]
      %v312 = vld [vmem:[%s7 + $0x10] sm:$0xff]
      %v313 = vld [vmem:[%s7 + $0x18] sm:$0xff]
      %v314 = vld [vmem:[%s7 + $0x20] sm:$0xff]
      %v315 = vld [vmem:[%s7 + $0x28] sm:$0xff]
      %v316 = vld [vmem:[%s7 + $0x30] sm:$0xff]
      %v317 = vld [vmem:[%s7 + $0x38] sm:$0xff]
      %v318 = vld [vmem:[%s7 + $0x40] sm:$0xff]
      %v319 = vld [vmem:[%s7 + $0x48] sm:$0xff]
      %v320 = vld [vmem:[%s7 + $0x50] sm:$0xff]
      %v321 = vld [vmem:[%s7 + $0x58] sm:$0xff]
      %v322 = vld [vmem:[%s7 + $0x60] sm:$0xff]
      %v323 = vld [vmem:[%s7 + $0x68] sm:$0xff]
      %v324 = vld [vmem:[%s7 + $0x70] sm:$0xff]
      %v325 = vld [vmem:[%s7 + $0x78] sm:$0xff]
      %v326 = vld [vmem:[%s7 + $0x80] sm:$0xff]
      %v327 = vld [vmem:[%s7 + $0x88] sm:$0xff]
      %v328 = vld [vmem:[%s7 + $0x90] sm:$0xff]
      %v329 = vld [vmem:[%s7 + $0x98] sm:$0xff]
      %v330 = vld [vmem:[%s7 + $0xa0] sm:$0xff]
      %v331 = vld [vmem:[%s7 + $0xa8] sm:$0xff]
      %v332 = vld [vmem:[%s7 + $0xb0] sm:$0xff]
      %v333 = vld [vmem:[%s7 + $0xb8] sm:$0xff]
      %v334 = vld [vmem:[%s7 + $0xc0] sm:$0xff]
      %v335 = vld [vmem:[%s7 + $0xc8] sm:$0xff]
      %v336 = vld [vmem:[%s7 + $0xd0] sm:$0xff]
      %v337 = vld [vmem:[%s7 + $0xd8] sm:$0xff]
      %v338 = vld [vmem:[%s7 + $0xe0] sm:$0xff]
      %v339 = vld [vmem:[%s7 + $0xe8] sm:$0xff]
      %v340 = vld [vmem:[%s7 + $0xf0] sm:$0xff]
      %v341 = vld [vmem:[%s7 + $0xf8] sm:$0xff]
      %v342 = vld [vmem:[%s7 + $0x100] sm:$0xff]
      %v343 = vld [vmem:[%s7 + $0x108] sm:$0xff]
      %v344 = vld [vmem:[%s7 + $0x110] sm:$0xff]
      %v345 = vld [vmem:[%s7 + $0x118] sm:$0xff]
      %v346 = vld [vmem:[%s7 + $0x120] sm:$0xff]
      %v347 = vld [vmem:[%s7 + $0x128] sm:$0xff]
      %v348 = vld [vmem:[%s7 + $0x130] sm:$0xff]
      %v349 = vld [vmem:[%s7 + $0x138] sm:$0xff]
      %v350 = vld [vmem:[%s7 + $0x140] sm:$0xff]
      %v351 = vld [vmem:[%s7 + $0x148] sm:$0xff]
      %v352 = vld [vmem:[%s7 + $0x150] sm:$0xff]
      %v353 = vld [vmem:[%s7 + $0x158] sm:$0xff]
      %v354 = vld [vmem:[%s7 + $0x160] sm:$0xff]
      %v355 = vld [vmem:[%s7 + $0x168] sm:$0xff]
      %v356 = vld [vmem:[%s7 + $0x170] sm:$0xff]
      %v357 = vld [vmem:[%s7 + $0x178] sm:$0xff]
      %v358 = vld [vmem:[%s7 + $0x180] sm:$0xff]
      %v359 = vld [vmem:[%s7 + $0x188] sm:$0xff]
      %v360 = vld [vmem:[%s7 + $0x190] sm:$0xff]
      %v361 = vld [vmem:[%s7 + $0x198] sm:$0xff]
      %v362 = vld [vmem:[%s7 + $0x1a0] sm:$0xff]
      %v363 = vld [vmem:[%s7 + $0x1a8] sm:$0xff]
      %v364 = vld [vmem:[%s7 + $0x1b0] sm:$0xff]
      %v365 = vld [vmem:[%s7 + $0x1b8] sm:$0xff]
      %v366 = vld [vmem:[%s7 + $0x1c0] sm:$0xff]
      %v367 = vld [vmem:[%s7 + $0x1c8] sm:$0xff]
      %v368 = vld [vmem:[%s7 + $0x1d0] sm:$0xff]
      %v369 = vld [vmem:[%s7 + $0x1d8] sm:$0xff]
      %v370 = vld [vmem:[%s7 + $0x1e0] sm:$0xff]
      %v371 = vld [vmem:[%s7 + $0x1e8] sm:$0xff]
      %v372 = vld [vmem:[%s7 + $0x1f0] sm:$0xff]
      %v373 = vld [vmem:[%s7 + $0x1f8] sm:$0xff]
      %374 = vst [vmem:[#allocation2] sm:$0x7] 0.0
      %375 = vst [vmem:[#allocation2 + $0x8] sm:$0x7] 0.0
      %376 = vst [vmem:[#allocation2 + $0x10] sm:$0x38] 0.0
      %377 = vst [vmem:[#allocation2 + $0x18] sm:$0x38] 0.0
      %v378 = vld [vmem:[%s1] sm:$0xff]
      %v379 = vld [vmem:[%s1 + $0x8] sm:$0xff]
      %v380 = vld [vmem:[%s1 + $0x10] sm:$0xff]
      %v381 = vld [vmem:[%s1 + $0x18] sm:$0xff]
      %v382 = vld [vmem:[%s1 + $0x20] sm:$0xff]
      %v383 = vld [vmem:[%s1 + $0x28] sm:$0xff]
      %v384 = vld [vmem:[%s1 + $0x30] sm:$0xff]
      %v385 = vld [vmem:[%s1 + $0x38] sm:$0xff]
      %v386 = vld [vmem:[%s1 + $0x40] sm:$0xff]
      %v387 = vld [vmem:[%s1 + $0x48] sm:$0xff]
      %v388 = vld [vmem:[%s1 + $0x50] sm:$0xff]
      %v389 = vld [vmem:[%s1 + $0x58] sm:$0xff]
      %v390 = vld [vmem:[%s1 + $0x60] sm:$0xff]
      %v391 = vld [vmem:[%s1 + $0x68] sm:$0xff]
      %v392 = vld [vmem:[%s1 + $0x70] sm:$0xff]
      %v393 = vld [vmem:[%s1 + $0x78] sm:$0xff]
      %v394 = vld [vmem:[%s1 + $0x80] sm:$0xff]
      %v395 = vld [vmem:[%s1 + $0x88] sm:$0xff]
      %v396 = vld [vmem:[%s1 + $0x90] sm:$0xff]
      %v397 = vld [vmem:[%s1 + $0x98] sm:$0xff]
      %v398 = vld [vmem:[%s1 + $0xa0] sm:$0xff]
      %v399 = vld [vmem:[%s1 + $0xa8] sm:$0xff]
      %v400 = vld [vmem:[%s1 + $0xb0] sm:$0xff]
      %v401 = vld [vmem:[%s1 + $0xb8] sm:$0xff]
      %v402 = vld [vmem:[%s1 + $0xc0] sm:$0xff]
      %v403 = vld [vmem:[%s1 + $0xc8] sm:$0xff]
      %v404 = vld [vmem:[%s1 + $0xd0] sm:$0xff]
      %v405 = vld [vmem:[%s1 + $0xd8] sm:$0xff]
      %v406 = vld [vmem:[%s1 + $0xe0] sm:$0xff]
      %v407 = vld [vmem:[%s1 + $0xe8] sm:$0xff]
      %v408 = vld [vmem:[%s1 + $0xf0] sm:$0xff]
      %v409 = vld [vmem:[%s1 + $0xf8] sm:$0xff]
      %v410 = vld [vmem:[%s1 + $0x100] sm:$0xff]
      %v411 = vld [vmem:[%s1 + $0x108] sm:$0xff]
      %v412 = vld [vmem:[%s1 + $0x110] sm:$0xff]
      %v413 = vld [vmem:[%s1 + $0x118] sm:$0xff]
      %v414 = vld [vmem:[%s1 + $0x120] sm:$0xff]
      %v415 = vld [vmem:[%s1 + $0x128] sm:$0xff]
      %v416 = vld [vmem:[%s1 + $0x130] sm:$0xff]
      %v417 = vld [vmem:[%s1 + $0x138] sm:$0xff]
      %v418 = vld [vmem:[%s1 + $0x140] sm:$0xff]
      %v419 = vld [vmem:[%s1 + $0x148] sm:$0xff]
      %v420 = vld [vmem:[%s1 + $0x150] sm:$0xff]
      %v421 = vld [vmem:[%s1 + $0x158] sm:$0xff]
      %v422 = vld [vmem:[%s1 + $0x160] sm:$0xff]
      %v423 = vld [vmem:[%s1 + $0x168] sm:$0xff]
      %v424 = vld [vmem:[%s1 + $0x170] sm:$0xff]
      %v425 = vld [vmem:[%s1 + $0x178] sm:$0xff]
      %v426 = vld [vmem:[%s1 + $0x180] sm:$0xff]
      %v427 = vld [vmem:[%s1 + $0x188] sm:$0xff]
      %v428 = vld [vmem:[%s1 + $0x190] sm:$0xff]
      %v429 = vld [vmem:[%s1 + $0x198] sm:$0xff]
      %v430 = vld [vmem:[%s1 + $0x1a0] sm:$0xff]
      %v431 = vld [vmem:[%s1 + $0x1a8] sm:$0xff]
      %v432 = vld [vmem:[%s1 + $0x1b0] sm:$0xff]
      %v433 = vld [vmem:[%s1 + $0x1b8] sm:$0xff]
      %v434 = vld [vmem:[%s1 + $0x1c0] sm:$0xff]
      %v435 = vld [vmem:[%s1 + $0x1c8] sm:$0xff]
      %v436 = vld [vmem:[%s1 + $0x1d0] sm:$0xff]
      %v437 = vld [vmem:[%s1 + $0x1d8] sm:$0xff]
      %v438 = vld [vmem:[%s1 + $0x1e0] sm:$0xff]
      %v439 = vld [vmem:[%s1 + $0x1e8] sm:$0xff]
      %v440 = vld [vmem:[%s1 + $0x1f0] sm:$0xff]
      %v441 = vld [vmem:[%s1 + $0x1f8] sm:$0xff]
      %s442 = scalar_lea.vmem %s1, 512
      %v443 = vld [vmem:[%s442] sm:$0xff]
      %v444 = vld [vmem:[%s442 + $0x8] sm:$0xff]
      %v445 = vld [vmem:[%s442 + $0x10] sm:$0xff]
      %v446 = vld [vmem:[%s442 + $0x18] sm:$0xff]
      %v447 = vld [vmem:[%s442 + $0x20] sm:$0xff]
      %v448 = vld [vmem:[%s442 + $0x28] sm:$0xff]
      %v449 = vld [vmem:[%s442 + $0x30] sm:$0xff]
      %v450 = vld [vmem:[%s442 + $0x38] sm:$0xff]
      %v451 = vld [vmem:[%s442 + $0x40] sm:$0xff]
      %v452 = vld [vmem:[%s442 + $0x48] sm:$0xff]
      %v453 = vld [vmem:[%s442 + $0x50] sm:$0xff]
      %v454 = vld [vmem:[%s442 + $0x58] sm:$0xff]
      %v455 = vld [vmem:[%s442 + $0x60] sm:$0xff]
      %v456 = vld [vmem:[%s442 + $0x68] sm:$0xff]
      %v457 = vld [vmem:[%s442 + $0x70] sm:$0xff]
      %v458 = vld [vmem:[%s442 + $0x78] sm:$0xff]
      %v459 = vld [vmem:[%s442 + $0x80] sm:$0xff]
      %v460 = vld [vmem:[%s442 + $0x88] sm:$0xff]
      %v461 = vld [vmem:[%s442 + $0x90] sm:$0xff]
      %v462 = vld [vmem:[%s442 + $0x98] sm:$0xff]
      %v463 = vld [vmem:[%s442 + $0xa0] sm:$0xff]
      %v464 = vld [vmem:[%s442 + $0xa8] sm:$0xff]
      %v465 = vld [vmem:[%s442 + $0xb0] sm:$0xff]
      %v466 = vld [vmem:[%s442 + $0xb8] sm:$0xff]
      %v467 = vld [vmem:[%s442 + $0xc0] sm:$0xff]
      %v468 = vld [vmem:[%s442 + $0xc8] sm:$0xff]
      %v469 = vld [vmem:[%s442 + $0xd0] sm:$0xff]
      %v470 = vld [vmem:[%s442 + $0xd8] sm:$0xff]
      %v471 = vld [vmem:[%s442 + $0xe0] sm:$0xff]
      %v472 = vld [vmem:[%s442 + $0xe8] sm:$0xff]
      %v473 = vld [vmem:[%s442 + $0xf0] sm:$0xff]
      %v474 = vld [vmem:[%s442 + $0xf8] sm:$0xff]
      %v475 = vld [vmem:[%s442 + $0x100] sm:$0xff]
      %v476 = vld [vmem:[%s442 + $0x108] sm:$0xff]
      %v477 = vld [vmem:[%s442 + $0x110] sm:$0xff]
      %v478 = vld [vmem:[%s442 + $0x118] sm:$0xff]
      %v479 = vld [vmem:[%s442 + $0x120] sm:$0xff]
      %v480 = vld [vmem:[%s442 + $0x128] sm:$0xff]
      %v481 = vld [vmem:[%s442 + $0x130] sm:$0xff]
      %v482 = vld [vmem:[%s442 + $0x138] sm:$0xff]
      %v483 = vld [vmem:[%s442 + $0x140] sm:$0xff]
      %v484 = vld [vmem:[%s442 + $0x148] sm:$0xff]
      %v485 = vld [vmem:[%s442 + $0x150] sm:$0xff]
      %v486 = vld [vmem:[%s442 + $0x158] sm:$0xff]
      %v487 = vld [vmem:[%s442 + $0x160] sm:$0xff]
      %v488 = vld [vmem:[%s442 + $0x168] sm:$0xff]
      %v489 = vld [vmem:[%s442 + $0x170] sm:$0xff]
      %v490 = vld [vmem:[%s442 + $0x178] sm:$0xff]
      %v491 = vld [vmem:[%s442 + $0x180] sm:$0xff]
      %v492 = vld [vmem:[%s442 + $0x188] sm:$0xff]
      %v493 = vld [vmem:[%s442 + $0x190] sm:$0xff]
      %v494 = vld [vmem:[%s442 + $0x198] sm:$0xff]
      %v495 = vld [vmem:[%s442 + $0x1a0] sm:$0xff]
      %v496 = vld [vmem:[%s442 + $0x1a8] sm:$0xff]
      %v497 = vld [vmem:[%s442 + $0x1b0] sm:$0xff]
      %v498 = vld [vmem:[%s442 + $0x1b8] sm:$0xff]
      %v499 = vld [vmem:[%s442 + $0x1c0] sm:$0xff]
      %v500 = vld [vmem:[%s442 + $0x1c8] sm:$0xff]
      %v501 = vld [vmem:[%s442 + $0x1d0] sm:$0xff]
      %v502 = vld [vmem:[%s442 + $0x1d8] sm:$0xff]
      %v503 = vld [vmem:[%s442 + $0x1e0] sm:$0xff]
      %v504 = vld [vmem:[%s442 + $0x1e8] sm:$0xff]
      %v505 = vld [vmem:[%s442 + $0x1f0] sm:$0xff]
      %v506 = vld [vmem:[%s442 + $0x1f8] sm:$0xff]
      %vm511 = vcmask 1044480
      %v512 = vrot.slane %v306, 3
      %v513 = vrot.slane %v308, 3
      %v514 = vsel %vm511, %v512, %v513
      %v515 = vrot.slane %v307, 3
      %v516 = vrot.slane %v309, 3
      %v517 = vsel %vm511, %v515, %v516
      %520 = vmatprep.subr.mxu0 %v444
      %521 = vmatpush1.msra.mxu0 %v443
      %522 = vmatprep.subr.mxu0 %v446
      %523 = vmatpush1.msra.mxu0 %v445
      %524 = vmatprep.subr.mxu0 %v448
      %525 = vmatpush1.msra.mxu0 %v447
      %526 = vmatprep.subr.mxu0 %v450
      %527 = vmatpush1.msra.mxu0 %v449
      %528 = vmatprep.subr.mxu0 %v452
      %529 = vmatpush1.msra.mxu0 %v451
      %530 = vmatprep.subr.mxu0 %v454
      %531 = vmatpush1.msra.mxu0 %v453
      %532 = vmatprep.subr.mxu0 %v456
      %533 = vmatpush1.msra.mxu0 %v455
      %534 = vmatprep.subr.mxu0 %v458
      %535 = vmatpush1.msra.mxu0 %v457
      %536 = vmatprep.subr.mxu0 %v460
      %537 = vmatpush1.msra.mxu0 %v459
      %538 = vmatprep.subr.mxu0 %v462
      %539 = vmatpush1.msra.mxu0 %v461
      %540 = vmatprep.subr.mxu0 %v464
      %541 = vmatpush1.msra.mxu0 %v463
      %542 = vmatprep.subr.mxu0 %v466
      %543 = vmatpush1.msra.mxu0 %v465
      %544 = vmatprep.subr.mxu0 %v468
      %545 = vmatpush1.msra.mxu0 %v467
      %546 = vmatprep.subr.mxu0 %v470
      %547 = vmatpush1.msra.mxu0 %v469
      %548 = vmatprep.subr.mxu0 %v472
      %549 = vmatpush1.msra.mxu0 %v471
      %550 = vmatprep.subr.mxu0 %v474
      %551 = vmatpush1.msra.mxu0 %v473
      %552 = vmatprep.subr.mxu0 %v476
      %553 = vmatpush1.msra.mxu0 %v475
      %554 = vmatprep.subr.mxu0 %v478
      %555 = vmatpush1.msra.mxu0 %v477
      %556 = vmatprep.subr.mxu0 %v480
      %557 = vmatpush1.msra.mxu0 %v479
      %558 = vmatprep.subr.mxu0 %v482
      %559 = vmatpush1.msra.mxu0 %v481
      %560 = vmatprep.subr.mxu0 %v484
      %561 = vmatpush1.msra.mxu0 %v483
      %562 = vmatprep.subr.mxu0 %v486
      %563 = vmatpush1.msra.mxu0 %v485
      %564 = vmatprep.subr.mxu0 %v488
      %565 = vmatpush1.msra.mxu0 %v487
      %566 = vmatprep.subr.mxu0 %v490
      %567 = vmatpush1.msra.mxu0 %v489
      %568 = vmatprep.subr.mxu0 %v492
      %569 = vmatpush1.msra.mxu0 %v491
      %570 = vmatprep.subr.mxu0 %v494
      %571 = vmatpush1.msra.mxu0 %v493
      %572 = vmatprep.subr.mxu0 %v496
      %573 = vmatpush1.msra.mxu0 %v495
      %574 = vmatprep.subr.mxu0 %v498
      %575 = vmatpush1.msra.mxu0 %v497
      %576 = vmatprep.subr.mxu0 %v500
      %577 = vmatpush1.msra.mxu0 %v499
      %578 = vmatprep.subr.mxu0 %v502
      %579 = vmatpush1.msra.mxu0 %v501
      %580 = vmatprep.subr.mxu0 %v504
      %581 = vmatpush1.msra.mxu0 %v503
      %582 = vmatprep.subr.mxu0 %v506
      %583 = vmatpush1.msra.mxu0 %v505
      %584 = vmatprep.mubr.f32.mxu0 %v517
      %585 = vmatmul.mubr.f32.gmra.mrb[0].mxu0 %v514
      %v586 = vpop.f32.mrb[0].mxu0
      %v587 = vadd.f32 0.0, %v586
      %v588 = vpop.f32.mrb[0].mxu0
      %v589 = vadd.f32 0.0, %v588
      %590 = vdwg.mxu0
      %vm591 = vcmask 1045504
      %v592 = vrot.slane %v306, 2
      %v593 = vrot.slane %v308, 2
      %v594 = vsel %vm591, %v592, %v593
      %v595 = vrot.slane %v307, 2
      %v596 = vrot.slane %v309, 2
      %v597 = vsel %vm591, %v595, %v596
      %600 = vmatprep.subr.mxu0 %v379
      %601 = vmatpush1.msra.mxu0 %v378
      %602 = vmatprep.subr.mxu0 %v381
      %603 = vmatpush1.msra.mxu0 %v380
      %604 = vmatprep.subr.mxu0 %v383
      %605 = vmatpush1.msra.mxu0 %v382
      %606 = vmatprep.subr.mxu0 %v385
      %607 = vmatpush1.msra.mxu0 %v384
      %608 = vmatprep.subr.mxu0 %v387
      %609 = vmatpush1.msra.mxu0 %v386
      %610 = vmatprep.subr.mxu0 %v389
      %611 = vmatpush1.msra.mxu0 %v388
      %612 = vmatprep.subr.mxu0 %v391
      %613 = vmatpush1.msra.mxu0 %v390
      %614 = vmatprep.subr.mxu0 %v393
      %615 = vmatpush1.msra.mxu0 %v392
      %616 = vmatprep.subr.mxu0 %v395
      %617 = vmatpush1.msra.mxu0 %v394
      %618 = vmatprep.subr.mxu0 %v397
      %619 = vmatpush1.msra.mxu0 %v396
      %620 = vmatprep.subr.mxu0 %v399
      %621 = vmatpush1.msra.mxu0 %v398
      %622 = vmatprep.subr.mxu0 %v401
      %623 = vmatpush1.msra.mxu0 %v400
      %624 = vmatprep.subr.mxu0 %v403
      %625 = vmatpush1.msra.mxu0 %v402
      %626 = vmatprep.subr.mxu0 %v405
      %627 = vmatpush1.msra.mxu0 %v404
      %628 = vmatprep.subr.mxu0 %v407
      %629 = vmatpush1.msra.mxu0 %v406
      %630 = vmatprep.subr.mxu0 %v409
      %631 = vmatpush1.msra.mxu0 %v408
      %632 = vmatprep.subr.mxu0 %v411
      %633 = vmatpush1.msra.mxu0 %v410
      %634 = vmatprep.subr.mxu0 %v413
      %635 = vmatpush1.msra.mxu0 %v412
      %636 = vmatprep.subr.mxu0 %v415
      %637 = vmatpush1.msra.mxu0 %v414
      %638 = vmatprep.subr.mxu0 %v417
      %639 = vmatpush1.msra.mxu0 %v416
      %640 = vmatprep.subr.mxu0 %v419
      %641 = vmatpush1.msra.mxu0 %v418
      %642 = vmatprep.subr.mxu0 %v421
      %643 = vmatpush1.msra.mxu0 %v420
      %644 = vmatprep.subr.mxu0 %v423
      %645 = vmatpush1.msra.mxu0 %v422
      %646 = vmatprep.subr.mxu0 %v425
      %647 = vmatpush1.msra.mxu0 %v424
      %648 = vmatprep.subr.mxu0 %v427
      %649 = vmatpush1.msra.mxu0 %v426
      %650 = vmatprep.subr.mxu0 %v429
      %651 = vmatpush1.msra.mxu0 %v428
      %652 = vmatprep.subr.mxu0 %v431
      %653 = vmatpush1.msra.mxu0 %v430
      %654 = vmatprep.subr.mxu0 %v433
      %655 = vmatpush1.msra.mxu0 %v432
      %656 = vmatprep.subr.mxu0 %v435
      %657 = vmatpush1.msra.mxu0 %v434
      %658 = vmatprep.subr.mxu0 %v437
      %659 = vmatpush1.msra.mxu0 %v436
      %660 = vmatprep.subr.mxu0 %v439
      %661 = vmatpush1.msra.mxu0 %v438
      %662 = vmatprep.subr.mxu0 %v441
      %663 = vmatpush1.msra.mxu0 %v440
      %664 = vmatprep.mubr.f32.mxu0 %v597
      %665 = vmatmul.mubr.f32.gmra.mrb[0].mxu0 %v594
      %v666 = vpop.f32.mrb[0].mxu0
      %v667 = vadd.f32 %v587, %v666
      %v668 = vpop.f32.mrb[0].mxu0
      %v669 = vadd.f32 %v589, %v668
      %670 = vdwg.mxu0
      %s671 = scalar_lea.vmem %s1, 1024
      %v672 = vld [vmem:[%s671] sm:$0xff]
      %v673 = vld [vmem:[%s671 + $0x8] sm:$0xff]
      %v674 = vld [vmem:[%s671 + $0x10] sm:$0xff]
      %v675 = vld [vmem:[%s671 + $0x18] sm:$0xff]
      %v676 = vld [vmem:[%s671 + $0x20] sm:$0xff]
      %v677 = vld [vmem:[%s671 + $0x28] sm:$0xff]
      %v678 = vld [vmem:[%s671 + $0x30] sm:$0xff]
      %v679 = vld [vmem:[%s671 + $0x38] sm:$0xff]
      %v680 = vld [vmem:[%s671 + $0x40] sm:$0xff]
      %v681 = vld [vmem:[%s671 + $0x48] sm:$0xff]
      %v682 = vld [vmem:[%s671 + $0x50] sm:$0xff]
      %v683 = vld [vmem:[%s671 + $0x58] sm:$0xff]
      %v684 = vld [vmem:[%s671 + $0x60] sm:$0xff]
      %v685 = vld [vmem:[%s671 + $0x68] sm:$0xff]
      %v686 = vld [vmem:[%s671 + $0x70] sm:$0xff]
      %v687 = vld [vmem:[%s671 + $0x78] sm:$0xff]
      %v688 = vld [vmem:[%s671 + $0x80] sm:$0xff]
      %v689 = vld [vmem:[%s671 + $0x88] sm:$0xff]
      %v690 = vld [vmem:[%s671 + $0x90] sm:$0xff]
      %v691 = vld [vmem:[%s671 + $0x98] sm:$0xff]
      %v692 = vld [vmem:[%s671 + $0xa0] sm:$0xff]
      %v693 = vld [vmem:[%s671 + $0xa8] sm:$0xff]
      %v694 = vld [vmem:[%s671 + $0xb0] sm:$0xff]
      %v695 = vld [vmem:[%s671 + $0xb8] sm:$0xff]
      %v696 = vld [vmem:[%s671 + $0xc0] sm:$0xff]
      %v697 = vld [vmem:[%s671 + $0xc8] sm:$0xff]
      %v698 = vld [vmem:[%s671 + $0xd0] sm:$0xff]
      %v699 = vld [vmem:[%s671 + $0xd8] sm:$0xff]
      %v700 = vld [vmem:[%s671 + $0xe0] sm:$0xff]
      %v701 = vld [vmem:[%s671 + $0xe8] sm:$0xff]
      %v702 = vld [vmem:[%s671 + $0xf0] sm:$0xff]
      %v703 = vld [vmem:[%s671 + $0xf8] sm:$0xff]
      %v704 = vld [vmem:[%s671 + $0x100] sm:$0xff]
      %v705 = vld [vmem:[%s671 + $0x108] sm:$0xff]
      %v706 = vld [vmem:[%s671 + $0x110] sm:$0xff]
      %v707 = vld [vmem:[%s671 + $0x118] sm:$0xff]
      %v708 = vld [vmem:[%s671 + $0x120] sm:$0xff]
      %v709 = vld [vmem:[%s671 + $0x128] sm:$0xff]
      %v710 = vld [vmem:[%s671 + $0x130] sm:$0xff]
      %v711 = vld [vmem:[%s671 + $0x138] sm:$0xff]
      %v712 = vld [vmem:[%s671 + $0x140] sm:$0xff]
      %v713 = vld [vmem:[%s671 + $0x148] sm:$0xff]
      %v714 = vld [vmem:[%s671 + $0x150] sm:$0xff]
      %v715 = vld [vmem:[%s671 + $0x158] sm:$0xff]
      %v716 = vld [vmem:[%s671 + $0x160] sm:$0xff]
      %v717 = vld [vmem:[%s671 + $0x168] sm:$0xff]
      %v718 = vld [vmem:[%s671 + $0x170] sm:$0xff]
      %v719 = vld [vmem:[%s671 + $0x178] sm:$0xff]
      %v720 = vld [vmem:[%s671 + $0x180] sm:$0xff]
      %v721 = vld [vmem:[%s671 + $0x188] sm:$0xff]
      %v722 = vld [vmem:[%s671 + $0x190] sm:$0xff]
      %v723 = vld [vmem:[%s671 + $0x198] sm:$0xff]
      %v724 = vld [vmem:[%s671 + $0x1a0] sm:$0xff]
      %v725 = vld [vmem:[%s671 + $0x1a8] sm:$0xff]
      %v726 = vld [vmem:[%s671 + $0x1b0] sm:$0xff]
      %v727 = vld [vmem:[%s671 + $0x1b8] sm:$0xff]
      %v728 = vld [vmem:[%s671 + $0x1c0] sm:$0xff]
      %v729 = vld [vmem:[%s671 + $0x1c8] sm:$0xff]
      %v730 = vld [vmem:[%s671 + $0x1d0] sm:$0xff]
      %v731 = vld [vmem:[%s671 + $0x1d8] sm:$0xff]
      %v732 = vld [vmem:[%s671 + $0x1e0] sm:$0xff]
      %v733 = vld [vmem:[%s671 + $0x1e8] sm:$0xff]
      %v734 = vld [vmem:[%s671 + $0x1f0] sm:$0xff]
      %v735 = vld [vmem:[%s671 + $0x1f8] sm:$0xff]
      %vm736 = vcmask 1043456
      %v737 = vrot.slane %v306, 4
      %v738 = vrot.slane %v308, 4
      %v739 = vsel %vm736, %v737, %v738
      %v740 = vrot.slane %v307, 4
      %v741 = vrot.slane %v309, 4
      %v742 = vsel %vm736, %v740, %v741
      %745 = vmatprep.subr.mxu0 %v673
      %746 = vmatpush1.msra.mxu0 %v672
      %747 = vmatprep.subr.mxu0 %v675
      %748 = vmatpush1.msra.mxu0 %v674
      %749 = vmatprep.subr.mxu0 %v677
      %750 = vmatpush1.msra.mxu0 %v676
      %751 = vmatprep.subr.mxu0 %v679
      %752 = vmatpush1.msra.mxu0 %v678
      %753 = vmatprep.subr.mxu0 %v681
      %754 = vmatpush1.msra.mxu0 %v680
      %755 = vmatprep.subr.mxu0 %v683
      %756 = vmatpush1.msra.mxu0 %v682
      %757 = vmatprep.subr.mxu0 %v685
      %758 = vmatpush1.msra.mxu0 %v684
      %759 = vmatprep.subr.mxu0 %v687
      %760 = vmatpush1.msra.mxu0 %v686
      %761 = vmatprep.subr.mxu0 %v689
      %762 = vmatpush1.msra.mxu0 %v688
      %763 = vmatprep.subr.mxu0 %v691
      %764 = vmatpush1.msra.mxu0 %v690
      %765 = vmatprep.subr.mxu0 %v693
      %766 = vmatpush1.msra.mxu0 %v692
      %767 = vmatprep.subr.mxu0 %v695
      %768 = vmatpush1.msra.mxu0 %v694
      %769 = vmatprep.subr.mxu0 %v697
      %770 = vmatpush1.msra.mxu0 %v696
      %771 = vmatprep.subr.mxu0 %v699
      %772 = vmatpush1.msra.mxu0 %v698
      %773 = vmatprep.subr.mxu0 %v701
      %774 = vmatpush1.msra.mxu0 %v700
      %775 = vmatprep.subr.mxu0 %v703
      %776 = vmatpush1.msra.mxu0 %v702
      %777 = vmatprep.subr.mxu0 %v705
      %778 = vmatpush1.msra.mxu0 %v704
      %779 = vmatprep.subr.mxu0 %v707
      %780 = vmatpush1.msra.mxu0 %v706
      %781 = vmatprep.subr.mxu0 %v709
      %782 = vmatpush1.msra.mxu0 %v708
      %783 = vmatprep.subr.mxu0 %v711
      %784 = vmatpush1.msra.mxu0 %v710
      %785 = vmatprep.subr.mxu0 %v713
      %786 = vmatpush1.msra.mxu0 %v712
      %787 = vmatprep.subr.mxu0 %v715
      %788 = vmatpush1.msra.mxu0 %v714
      %789 = vmatprep.subr.mxu0 %v717
      %790 = vmatpush1.msra.mxu0 %v716
      %791 = vmatprep.subr.mxu0 %v719
      %792 = vmatpush1.msra.mxu0 %v718
      %793 = vmatprep.subr.mxu0 %v721
      %794 = vmatpush1.msra.mxu0 %v720
      %795 = vmatprep.subr.mxu0 %v723
      %796 = vmatpush1.msra.mxu0 %v722
      %797 = vmatprep.subr.mxu0 %v725
      %798 = vmatpush1.msra.mxu0 %v724
      %799 = vmatprep.subr.mxu0 %v727
      %800 = vmatpush1.msra.mxu0 %v726
      %801 = vmatprep.subr.mxu0 %v729
      %802 = vmatpush1.msra.mxu0 %v728
      %803 = vmatprep.subr.mxu0 %v731
      %804 = vmatpush1.msra.mxu0 %v730
      %805 = vmatprep.subr.mxu0 %v733
      %806 = vmatpush1.msra.mxu0 %v732
      %807 = vmatprep.subr.mxu0 %v735
      %808 = vmatpush1.msra.mxu0 %v734
      %809 = vmatprep.mubr.f32.mxu0 %v742
      %810 = vmatmul.mubr.f32.gmra.mrb[0].mxu0 %v739
      %v811 = vpop.f32.mrb[0].mxu0
      %v812 = vadd.f32 0.0, %v811
      %v813 = vpop.f32.mrb[0].mxu0
      %v814 = vadd.f32 0.0, %v813
      %815 = vdwg.mxu0
      %v816 = vadd.f32 %v667, %v812
      %v817 = vadd.f32 %v669, %v814
      %v818 = vmax.f32 %v816, 0.0
      %v819 = vmax.f32 %v817, 0.0
      %v822 = vrot.slane %v818, 5
      %v823 = vrot.slane %v819, 5
      %826 = vst [vmem:[#allocation2] sm:$0xf8] %v822
      %827 = vst [vmem:[#allocation2 + $0x8] sm:$0xf8] %v823
      %828 = vst [vmem:[#allocation2 + $0x10] sm:$0x7] %v822
      %829 = vst [vmem:[#allocation2 + $0x18] sm:$0x7] %v823
      %v830 = vld [vmem:[#allocation2] sm:$0xff]
      %v831 = vld [vmem:[#allocation2 + $0x8] sm:$0xff]
      %v832 = vld [vmem:[#allocation2 + $0x10] sm:$0x3f]
      %v833 = vld [vmem:[#allocation2 + $0x18] sm:$0x3f]
      %v834 = vld [vmem:[%s2] sm:$0xff]
      %v835 = vld [vmem:[%s2 + $0x8] sm:$0xff]
      %v836 = vld [vmem:[%s2 + $0x10] sm:$0xff]
      %v837 = vld [vmem:[%s2 + $0x18] sm:$0xff]
      %v838 = vld [vmem:[%s2 + $0x20] sm:$0xff]
      %v839 = vld [vmem:[%s2 + $0x28] sm:$0xff]
      %v840 = vld [vmem:[%s2 + $0x30] sm:$0xff]
      %v841 = vld [vmem:[%s2 + $0x38] sm:$0xff]
      %v842 = vld [vmem:[%s2 + $0x40] sm:$0xff]
      %v843 = vld [vmem:[%s2 + $0x48] sm:$0xff]
      %v844 = vld [vmem:[%s2 + $0x50] sm:$0xff]
      %v845 = vld [vmem:[%s2 + $0x58] sm:$0xff]
      %v846 = vld [vmem:[%s2 + $0x60] sm:$0xff]
      %v847 = vld [vmem:[%s2 + $0x68] sm:$0xff]
      %v848 = vld [vmem:[%s2 + $0x70] sm:$0xff]
      %v849 = vld [vmem:[%s2 + $0x78] sm:$0xff]
      %v850 = vld [vmem:[%s2 + $0x80] sm:$0xff]
      %v851 = vld [vmem:[%s2 + $0x88] sm:$0xff]
      %v852 = vld [vmem:[%s2 + $0x90] sm:$0xff]
      %v853 = vld [vmem:[%s2 + $0x98] sm:$0xff]
      %v854 = vld [vmem:[%s2 + $0xa0] sm:$0xff]
      %v855 = vld [vmem:[%s2 + $0xa8] sm:$0xff]
      %v856 = vld [vmem:[%s2 + $0xb0] sm:$0xff]
      %v857 = vld [vmem:[%s2 + $0xb8] sm:$0xff]
      %v858 = vld [vmem:[%s2 + $0xc0] sm:$0xff]
      %v859 = vld [vmem:[%s2 + $0xc8] sm:$0xff]
      %v860 = vld [vmem:[%s2 + $0xd0] sm:$0xff]
      %v861 = vld [vmem:[%s2 + $0xd8] sm:$0xff]
      %v862 = vld [vmem:[%s2 + $0xe0] sm:$0xff]
      %v863 = vld [vmem:[%s2 + $0xe8] sm:$0xff]
      %v864 = vld [vmem:[%s2 + $0xf0] sm:$0xff]
      %v865 = vld [vmem:[%s2 + $0xf8] sm:$0xff]
      %v866 = vld [vmem:[%s2 + $0x100] sm:$0xff]
      %v867 = vld [vmem:[%s2 + $0x108] sm:$0xff]
      %v868 = vld [vmem:[%s2 + $0x110] sm:$0xff]
      %v869 = vld [vmem:[%s2 + $0x118] sm:$0xff]
      %v870 = vld [vmem:[%s2 + $0x120] sm:$0xff]
      %v871 = vld [vmem:[%s2 + $0x128] sm:$0xff]
      %v872 = vld [vmem:[%s2 + $0x130] sm:$0xff]
      %v873 = vld [vmem:[%s2 + $0x138] sm:$0xff]
      %v874 = vld [vmem:[%s2 + $0x140] sm:$0xff]
      %v875 = vld [vmem:[%s2 + $0x148] sm:$0xff]
      %v876 = vld [vmem:[%s2 + $0x150] sm:$0xff]
      %v877 = vld [vmem:[%s2 + $0x158] sm:$0xff]
      %v878 = vld [vmem:[%s2 + $0x160] sm:$0xff]
      %v879 = vld [vmem:[%s2 + $0x168] sm:$0xff]
      %v880 = vld [vmem:[%s2 + $0x170] sm:$0xff]
      %v881 = vld [vmem:[%s2 + $0x178] sm:$0xff]
      %v882 = vld [vmem:[%s2 + $0x180] sm:$0xff]
      %v883 = vld [vmem:[%s2 + $0x188] sm:$0xff]
      %v884 = vld [vmem:[%s2 + $0x190] sm:$0xff]
      %v885 = vld [vmem:[%s2 + $0x198] sm:$0xff]
      %v886 = vld [vmem:[%s2 + $0x1a0] sm:$0xff]
      %v887 = vld [vmem:[%s2 + $0x1a8] sm:$0xff]
      %v888 = vld [vmem:[%s2 + $0x1b0] sm:$0xff]
      %v889 = vld [vmem:[%s2 + $0x1b8] sm:$0xff]
      %v890 = vld [vmem:[%s2 + $0x1c0] sm:$0xff]
      %v891 = vld [vmem:[%s2 + $0x1c8] sm:$0xff]
      %v892 = vld [vmem:[%s2 + $0x1d0] sm:$0xff]
      %v893 = vld [vmem:[%s2 + $0x1d8] sm:$0xff]
      %v894 = vld [vmem:[%s2 + $0x1e0] sm:$0xff]
      %v895 = vld [vmem:[%s2 + $0x1e8] sm:$0xff]
      %v896 = vld [vmem:[%s2 + $0x1f0] sm:$0xff]
      %v897 = vld [vmem:[%s2 + $0x1f8] sm:$0xff]
      %s898 = scalar_lea.vmem %s2, 512
      %v899 = vld [vmem:[%s898] sm:$0xff]
      %v900 = vld [vmem:[%s898 + $0x8] sm:$0xff]
      %v901 = vld [vmem:[%s898 + $0x10] sm:$0xff]
      %v902 = vld [vmem:[%s898 + $0x18] sm:$0xff]
      %v903 = vld [vmem:[%s898 + $0x20] sm:$0xff]
      %v904 = vld [vmem:[%s898 + $0x28] sm:$0xff]
      %v905 = vld [vmem:[%s898 + $0x30] sm:$0xff]
      %v906 = vld [vmem:[%s898 + $0x38] sm:$0xff]
      %v907 = vld [vmem:[%s898 + $0x40] sm:$0xff]
      %v908 = vld [vmem:[%s898 + $0x48] sm:$0xff]
      %v909 = vld [vmem:[%s898 + $0x50] sm:$0xff]
      %v910 = vld [vmem:[%s898 + $0x58] sm:$0xff]
      %v911 = vld [vmem:[%s898 + $0x60] sm:$0xff]
      %v912 = vld [vmem:[%s898 + $0x68] sm:$0xff]
      %v913 = vld [vmem:[%s898 + $0x70] sm:$0xff]
      %v914 = vld [vmem:[%s898 + $0x78] sm:$0xff]
      %v915 = vld [vmem:[%s898 + $0x80] sm:$0xff]
      %v916 = vld [vmem:[%s898 + $0x88] sm:$0xff]
      %v917 = vld [vmem:[%s898 + $0x90] sm:$0xff]
      %v918 = vld [vmem:[%s898 + $0x98] sm:$0xff]
      %v919 = vld [vmem:[%s898 + $0xa0] sm:$0xff]
      %v920 = vld [vmem:[%s898 + $0xa8] sm:$0xff]
      %v921 = vld [vmem:[%s898 + $0xb0] sm:$0xff]
      %v922 = vld [vmem:[%s898 + $0xb8] sm:$0xff]
      %v923 = vld [vmem:[%s898 + $0xc0] sm:$0xff]
      %v924 = vld [vmem:[%s898 + $0xc8] sm:$0xff]
      %v925 = vld [vmem:[%s898 + $0xd0] sm:$0xff]
      %v926 = vld [vmem:[%s898 + $0xd8] sm:$0xff]
      %v927 = vld [vmem:[%s898 + $0xe0] sm:$0xff]
      %v928 = vld [vmem:[%s898 + $0xe8] sm:$0xff]
      %v929 = vld [vmem:[%s898 + $0xf0] sm:$0xff]
      %v930 = vld [vmem:[%s898 + $0xf8] sm:$0xff]
      %v931 = vld [vmem:[%s898 + $0x100] sm:$0xff]
      %v932 = vld [vmem:[%s898 + $0x108] sm:$0xff]
      %v933 = vld [vmem:[%s898 + $0x110] sm:$0xff]
      %v934 = vld [vmem:[%s898 + $0x118] sm:$0xff]
      %v935 = vld [vmem:[%s898 + $0x120] sm:$0xff]
      %v936 = vld [vmem:[%s898 + $0x128] sm:$0xff]
      %v937 = vld [vmem:[%s898 + $0x130] sm:$0xff]
      %v938 = vld [vmem:[%s898 + $0x138] sm:$0xff]
      %v939 = vld [vmem:[%s898 + $0x140] sm:$0xff]
      %v940 = vld [vmem:[%s898 + $0x148] sm:$0xff]
      %v941 = vld [vmem:[%s898 + $0x150] sm:$0xff]
      %v942 = vld [vmem:[%s898 + $0x158] sm:$0xff]
      %v943 = vld [vmem:[%s898 + $0x160] sm:$0xff]
      %v944 = vld [vmem:[%s898 + $0x168] sm:$0xff]
      %v945 = vld [vmem:[%s898 + $0x170] sm:$0xff]
      %v946 = vld [vmem:[%s898 + $0x178] sm:$0xff]
      %v947 = vld [vmem:[%s898 + $0x180] sm:$0xff]
      %v948 = vld [vmem:[%s898 + $0x188] sm:$0xff]
      %v949 = vld [vmem:[%s898 + $0x190] sm:$0xff]
      %v950 = vld [vmem:[%s898 + $0x198] sm:$0xff]
      %v951 = vld [vmem:[%s898 + $0x1a0] sm:$0xff]
      %v952 = vld [vmem:[%s898 + $0x1a8] sm:$0xff]
      %v953 = vld [vmem:[%s898 + $0x1b0] sm:$0xff]
      %v954 = vld [vmem:[%s898 + $0x1b8] sm:$0xff]
      %v955 = vld [vmem:[%s898 + $0x1c0] sm:$0xff]
      %v956 = vld [vmem:[%s898 + $0x1c8] sm:$0xff]
      %v957 = vld [vmem:[%s898 + $0x1d0] sm:$0xff]
      %v958 = vld [vmem:[%s898 + $0x1d8] sm:$0xff]
      %v959 = vld [vmem:[%s898 + $0x1e0] sm:$0xff]
      %v960 = vld [vmem:[%s898 + $0x1e8] sm:$0xff]
      %v961 = vld [vmem:[%s898 + $0x1f0] sm:$0xff]
      %v962 = vld [vmem:[%s898 + $0x1f8] sm:$0xff]
      %v967 = vrot.slane %v830, 3
      %v968 = vrot.slane %v832, 3
      %v969 = vsel %vm511, %v967, %v968
      %v970 = vrot.slane %v831, 3
      %v971 = vrot.slane %v833, 3
      %v972 = vsel %vm511, %v970, %v971
      %975 = vmatprep.subr.mxu0 %v900
      %976 = vmatpush1.msra.mxu0 %v899
      %977 = vmatprep.subr.mxu0 %v902
      %978 = vmatpush1.msra.mxu0 %v901
      %979 = vmatprep.subr.mxu0 %v904
      %980 = vmatpush1.msra.mxu0 %v903
      %981 = vmatprep.subr.mxu0 %v906
      %982 = vmatpush1.msra.mxu0 %v905
      %983 = vmatprep.subr.mxu0 %v908
      %984 = vmatpush1.msra.mxu0 %v907
      %985 = vmatprep.subr.mxu0 %v910
      %986 = vmatpush1.msra.mxu0 %v909
      %987 = vmatprep.subr.mxu0 %v912
      %988 = vmatpush1.msra.mxu0 %v911
      %989 = vmatprep.subr.mxu0 %v914
      %990 = vmatpush1.msra.mxu0 %v913
      %991 = vmatprep.subr.mxu0 %v916
      %992 = vmatpush1.msra.mxu0 %v915
      %993 = vmatprep.subr.mxu0 %v918
      %994 = vmatpush1.msra.mxu0 %v917
      %995 = vmatprep.subr.mxu0 %v920
      %996 = vmatpush1.msra.mxu0 %v919
      %997 = vmatprep.subr.mxu0 %v922
      %998 = vmatpush1.msra.mxu0 %v921
      %999 = vmatprep.subr.mxu0 %v924
      %1000 = vmatpush1.msra.mxu0 %v923
      %1001 = vmatprep.subr.mxu0 %v926
      %1002 = vmatpush1.msra.mxu0 %v925
      %1003 = vmatprep.subr.mxu0 %v928
      %1004 = vmatpush1.msra.mxu0 %v927
      %1005 = vmatprep.subr.mxu0 %v930
      %1006 = vmatpush1.msra.mxu0 %v929
      %1007 = vmatprep.subr.mxu0 %v932
      %1008 = vmatpush1.msra.mxu0 %v931
      %1009 = vmatprep.subr.mxu0 %v934
      %1010 = vmatpush1.msra.mxu0 %v933
      %1011 = vmatprep.subr.mxu0 %v936
      %1012 = vmatpush1.msra.mxu0 %v935
      %1013 = vmatprep.subr.mxu0 %v938
      %1014 = vmatpush1.msra.mxu0 %v937
      %1015 = vmatprep.subr.mxu0 %v940
      %1016 = vmatpush1.msra.mxu0 %v939
      %1017 = vmatprep.subr.mxu0 %v942
      %1018 = vmatpush1.msra.mxu0 %v941
      %1019 = vmatprep.subr.mxu0 %v944
      %1020 = vmatpush1.msra.mxu0 %v943
      %1021 = vmatprep.subr.mxu0 %v946
      %1022 = vmatpush1.msra.mxu0 %v945
      %1023 = vmatprep.subr.mxu0 %v948
      %1024 = vmatpush1.msra.mxu0 %v947
      %1025 = vmatprep.subr.mxu0 %v950
      %1026 = vmatpush1.msra.mxu0 %v949
      %1027 = vmatprep.subr.mxu0 %v952
      %1028 = vmatpush1.msra.mxu0 %v951
      %1029 = vmatprep.subr.mxu0 %v954
      %1030 = vmatpush1.msra.mxu0 %v953
      %1031 = vmatprep.subr.mxu0 %v956
      %1032 = vmatpush1.msra.mxu0 %v955
      %1033 = vmatprep.subr.mxu0 %v958
      %1034 = vmatpush1.msra.mxu0 %v957
      %1035 = vmatprep.subr.mxu0 %v960
      %1036 = vmatpush1.msra.mxu0 %v959
      %1037 = vmatprep.subr.mxu0 %v962
      %1038 = vmatpush1.msra.mxu0 %v961
      %1039 = vmatprep.mubr.f32.mxu0 %v972
      %1040 = vmatmul.mubr.f32.gmra.mrb[0].mxu0 %v969
      %v1041 = vpop.f32.mrb[0].mxu0
      %v1042 = vadd.f32 0.0, %v1041
      %v1043 = vpop.f32.mrb[0].mxu0
      %v1044 = vadd.f32 0.0, %v1043
      %1045 = vdwg.mxu0
      %v1046 = vrot.slane %v830, 2
      %v1047 = vrot.slane %v832, 2
      %v1048 = vsel %vm591, %v1046, %v1047
      %v1049 = vrot.slane %v831, 2
      %v1050 = vrot.slane %v833, 2
      %v1051 = vsel %vm591, %v1049, %v1050
      %1054 = vmatprep.subr.mxu0 %v835
      %1055 = vmatpush1.msra.mxu0 %v834
      %1056 = vmatprep.subr.mxu0 %v837
      %1057 = vmatpush1.msra.mxu0 %v836
      %1058 = vmatprep.subr.mxu0 %v839
      %1059 = vmatpush1.msra.mxu0 %v838
      %1060 = vmatprep.subr.mxu0 %v841
      %1061 = vmatpush1.msra.mxu0 %v840
      %1062 = vmatprep.subr.mxu0 %v843
      %1063 = vmatpush1.msra.mxu0 %v842
      %1064 = vmatprep.subr.mxu0 %v845
      %1065 = vmatpush1.msra.mxu0 %v844
      %1066 = vmatprep.subr.mxu0 %v847
      %1067 = vmatpush1.msra.mxu0 %v846
      %1068 = vmatprep.subr.mxu0 %v849
      %1069 = vmatpush1.msra.mxu0 %v848
      %1070 = vmatprep.subr.mxu0 %v851
      %1071 = vmatpush1.msra.mxu0 %v850
      %1072 = vmatprep.subr.mxu0 %v853
      %1073 = vmatpush1.msra.mxu0 %v852
      %1074 = vmatprep.subr.mxu0 %v855
      %1075 = vmatpush1.msra.mxu0 %v854
      %1076 = vmatprep.subr.mxu0 %v857
      %1077 = vmatpush1.msra.mxu0 %v856
      %1078 = vmatprep.subr.mxu0 %v859
      %1079 = vmatpush1.msra.mxu0 %v858
      %1080 = vmatprep.subr.mxu0 %v861
      %1081 = vmatpush1.msra.mxu0 %v860
      %1082 = vmatprep.subr.mxu0 %v863
      %1083 = vmatpush1.msra.mxu0 %v862
      %1084 = vmatprep.subr.mxu0 %v865
      %1085 = vmatpush1.msra.mxu0 %v864
      %1086 = vmatprep.subr.mxu0 %v867
      %1087 = vmatpush1.msra.mxu0 %v866
      %1088 = vmatprep.subr.mxu0 %v869
      %1089 = vmatpush1.msra.mxu0 %v868
      %1090 = vmatprep.subr.mxu0 %v871
      %1091 = vmatpush1.msra.mxu0 %v870
      %1092 = vmatprep.subr.mxu0 %v873
      %1093 = vmatpush1.msra.mxu0 %v872
      %1094 = vmatprep.subr.mxu0 %v875
      %1095 = vmatpush1.msra.mxu0 %v874
      %1096 = vmatprep.subr.mxu0 %v877
      %1097 = vmatpush1.msra.mxu0 %v876
      %1098 = vmatprep.subr.mxu0 %v879
      %1099 = vmatpush1.msra.mxu0 %v878
      %1100 = vmatprep.subr.mxu0 %v881
      %1101 = vmatpush1.msra.mxu0 %v880
      %1102 = vmatprep.subr.mxu0 %v883
      %1103 = vmatpush1.msra.mxu0 %v882
      %1104 = vmatprep.subr.mxu0 %v885
      %1105 = vmatpush1.msra.mxu0 %v884
      %1106 = vmatprep.subr.mxu0 %v887
      %1107 = vmatpush1.msra.mxu0 %v886
      %1108 = vmatprep.subr.mxu0 %v889
      %1109 = vmatpush1.msra.mxu0 %v888
      %1110 = vmatprep.subr.mxu0 %v891
      %1111 = vmatpush1.msra.mxu0 %v890
      %1112 = vmatprep.subr.mxu0 %v893
      %1113 = vmatpush1.msra.mxu0 %v892
      %1114 = vmatprep.subr.mxu0 %v895
      %1115 = vmatpush1.msra.mxu0 %v894
      %1116 = vmatprep.subr.mxu0 %v897
      %1117 = vmatpush1.msra.mxu0 %v896
      %1118 = vmatprep.mubr.f32.mxu0 %v1051
      %1119 = vmatmul.mubr.f32.gmra.mrb[0].mxu0 %v1048
      %v1120 = vpop.f32.mrb[0].mxu0
      %v1121 = vadd.f32 %v1042, %v1120
      %v1122 = vpop.f32.mrb[0].mxu0
      %v1123 = vadd.f32 %v1044, %v1122
      %1124 = vdwg.mxu0
      %s1125 = scalar_lea.vmem %s2, 1024
      %v1126 = vld [vmem:[%s1125] sm:$0xff]
      %v1127 = vld [vmem:[%s1125 + $0x8] sm:$0xff]
      %v1128 = vld [vmem:[%s1125 + $0x10] sm:$0xff]
      %v1129 = vld [vmem:[%s1125 + $0x18] sm:$0xff]
      %v1130 = vld [vmem:[%s1125 + $0x20] sm:$0xff]
      %v1131 = vld [vmem:[%s1125 + $0x28] sm:$0xff]
      %v1132 = vld [vmem:[%s1125 + $0x30] sm:$0xff]
      %v1133 = vld [vmem:[%s1125 + $0x38] sm:$0xff]
      %v1134 = vld [vmem:[%s1125 + $0x40] sm:$0xff]
      %v1135 = vld [vmem:[%s1125 + $0x48] sm:$0xff]
      %v1136 = vld [vmem:[%s1125 + $0x50] sm:$0xff]
      %v1137 = vld [vmem:[%s1125 + $0x58] sm:$0xff]
      %v1138 = vld [vmem:[%s1125 + $0x60] sm:$0xff]
      %v1139 = vld [vmem:[%s1125 + $0x68] sm:$0xff]
      %v1140 = vld [vmem:[%s1125 + $0x70] sm:$0xff]
      %v1141 = vld [vmem:[%s1125 + $0x78] sm:$0xff]
      %v1142 = vld [vmem:[%s1125 + $0x80] sm:$0xff]
      %v1143 = vld [vmem:[%s1125 + $0x88] sm:$0xff]
      %v1144 = vld [vmem:[%s1125 + $0x90] sm:$0xff]
      %v1145 = vld [vmem:[%s1125 + $0x98] sm:$0xff]
      %v1146 = vld [vmem:[%s1125 + $0xa0] sm:$0xff]
      %v1147 = vld [vmem:[%s1125 + $0xa8] sm:$0xff]
      %v1148 = vld [vmem:[%s1125 + $0xb0] sm:$0xff]
      %v1149 = vld [vmem:[%s1125 + $0xb8] sm:$0xff]
      %v1150 = vld [vmem:[%s1125 + $0xc0] sm:$0xff]
      %v1151 = vld [vmem:[%s1125 + $0xc8] sm:$0xff]
      %v1152 = vld [vmem:[%s1125 + $0xd0] sm:$0xff]
      %v1153 = vld [vmem:[%s1125 + $0xd8] sm:$0xff]
      %v1154 = vld [vmem:[%s1125 + $0xe0] sm:$0xff]
      %v1155 = vld [vmem:[%s1125 + $0xe8] sm:$0xff]
      %v1156 = vld [vmem:[%s1125 + $0xf0] sm:$0xff]
      %v1157 = vld [vmem:[%s1125 + $0xf8] sm:$0xff]
      %v1158 = vld [vmem:[%s1125 + $0x100] sm:$0xff]
      %v1159 = vld [vmem:[%s1125 + $0x108] sm:$0xff]
      %v1160 = vld [vmem:[%s1125 + $0x110] sm:$0xff]
      %v1161 = vld [vmem:[%s1125 + $0x118] sm:$0xff]
      %v1162 = vld [vmem:[%s1125 + $0x120] sm:$0xff]
      %v1163 = vld [vmem:[%s1125 + $0x128] sm:$0xff]
      %v1164 = vld [vmem:[%s1125 + $0x130] sm:$0xff]
      %v1165 = vld [vmem:[%s1125 + $0x138] sm:$0xff]
      %v1166 = vld [vmem:[%s1125 + $0x140] sm:$0xff]
      %v1167 = vld [vmem:[%s1125 + $0x148] sm:$0xff]
      %v1168 = vld [vmem:[%s1125 + $0x150] sm:$0xff]
      %v1169 = vld [vmem:[%s1125 + $0x158] sm:$0xff]
      %v1170 = vld [vmem:[%s1125 + $0x160] sm:$0xff]
      %v1171 = vld [vmem:[%s1125 + $0x168] sm:$0xff]
      %v1172 = vld [vmem:[%s1125 + $0x170] sm:$0xff]
      %v1173 = vld [vmem:[%s1125 + $0x178] sm:$0xff]
      %v1174 = vld [vmem:[%s1125 + $0x180] sm:$0xff]
      %v1175 = vld [vmem:[%s1125 + $0x188] sm:$0xff]
      %v1176 = vld [vmem:[%s1125 + $0x190] sm:$0xff]
      %v1177 = vld [vmem:[%s1125 + $0x198] sm:$0xff]
      %v1178 = vld [vmem:[%s1125 + $0x1a0] sm:$0xff]
      %v1179 = vld [vmem:[%s1125 + $0x1a8] sm:$0xff]
      %v1180 = vld [vmem:[%s1125 + $0x1b0] sm:$0xff]
      %v1181 = vld [vmem:[%s1125 + $0x1b8] sm:$0xff]
      %v1182 = vld [vmem:[%s1125 + $0x1c0] sm:$0xff]
      %v1183 = vld [vmem:[%s1125 + $0x1c8] sm:$0xff]
      %v1184 = vld [vmem:[%s1125 + $0x1d0] sm:$0xff]
      %v1185 = vld [vmem:[%s1125 + $0x1d8] sm:$0xff]
      %v1186 = vld [vmem:[%s1125 + $0x1e0] sm:$0xff]
      %v1187 = vld [vmem:[%s1125 + $0x1e8] sm:$0xff]
      %v1188 = vld [vmem:[%s1125 + $0x1f0] sm:$0xff]
      %v1189 = vld [vmem:[%s1125 + $0x1f8] sm:$0xff]
      %v1190 = vrot.slane %v830, 4
      %v1191 = vrot.slane %v832, 4
      %v1192 = vsel %vm736, %v1190, %v1191
      %v1193 = vrot.slane %v831, 4
      %v1194 = vrot.slane %v833, 4
      %v1195 = vsel %vm736, %v1193, %v1194
      %1198 = vmatprep.subr.mxu0 %v1127
      %1199 = vmatpush1.msra.mxu0 %v1126
      %1200 = vmatprep.subr.mxu0 %v1129
      %1201 = vmatpush1.msra.mxu0 %v1128
      %1202 = vmatprep.subr.mxu0 %v1131
      %1203 = vmatpush1.msra.mxu0 %v1130
      %1204 = vmatprep.subr.mxu0 %v1133
      %1205 = vmatpush1.msra.mxu0 %v1132
      %1206 = vmatprep.subr.mxu0 %v1135
      %1207 = vmatpush1.msra.mxu0 %v1134
      %1208 = vmatprep.subr.mxu0 %v1137
      %1209 = vmatpush1.msra.mxu0 %v1136
      %1210 = vmatprep.subr.mxu0 %v1139
      %1211 = vmatpush1.msra.mxu0 %v1138
      %1212 = vmatprep.subr.mxu0 %v1141
      %1213 = vmatpush1.msra.mxu0 %v1140
      %1214 = vmatprep.subr.mxu0 %v1143
      %1215 = vmatpush1.msra.mxu0 %v1142
      %1216 = vmatprep.subr.mxu0 %v1145
      %1217 = vmatpush1.msra.mxu0 %v1144
      %1218 = vmatprep.subr.mxu0 %v1147
      %1219 = vmatpush1.msra.mxu0 %v1146
      %1220 = vmatprep.subr.mxu0 %v1149
      %1221 = vmatpush1.msra.mxu0 %v1148
      %1222 = vmatprep.subr.mxu0 %v1151
      %1223 = vmatpush1.msra.mxu0 %v1150
      %1224 = vmatprep.subr.mxu0 %v1153
      %1225 = vmatpush1.msra.mxu0 %v1152
      %1226 = vmatprep.subr.mxu0 %v1155
      %1227 = vmatpush1.msra.mxu0 %v1154
      %1228 = vmatprep.subr.mxu0 %v1157
      %1229 = vmatpush1.msra.mxu0 %v1156
      %1230 = vmatprep.subr.mxu0 %v1159
      %1231 = vmatpush1.msra.mxu0 %v1158
      %1232 = vmatprep.subr.mxu0 %v1161
      %1233 = vmatpush1.msra.mxu0 %v1160
      %1234 = vmatprep.subr.mxu0 %v1163
      %1235 = vmatpush1.msra.mxu0 %v1162
      %1236 = vmatprep.subr.mxu0 %v1165
      %1237 = vmatpush1.msra.mxu0 %v1164
      %1238 = vmatprep.subr.mxu0 %v1167
      %1239 = vmatpush1.msra.mxu0 %v1166
      %1240 = vmatprep.subr.mxu0 %v1169
      %1241 = vmatpush1.msra.mxu0 %v1168
      %1242 = vmatprep.subr.mxu0 %v1171
      %1243 = vmatpush1.msra.mxu0 %v1170
      %1244 = vmatprep.subr.mxu0 %v1173
      %1245 = vmatpush1.msra.mxu0 %v1172
      %1246 = vmatprep.subr.mxu0 %v1175
      %1247 = vmatpush1.msra.mxu0 %v1174
      %1248 = vmatprep.subr.mxu0 %v1177
      %1249 = vmatpush1.msra.mxu0 %v1176
      %1250 = vmatprep.subr.mxu0 %v1179
      %1251 = vmatpush1.msra.mxu0 %v1178
      %1252 = vmatprep.subr.mxu0 %v1181
      %1253 = vmatpush1.msra.mxu0 %v1180
      %1254 = vmatprep.subr.mxu0 %v1183
      %1255 = vmatpush1.msra.mxu0 %v1182
      %1256 = vmatprep.subr.mxu0 %v1185
      %1257 = vmatpush1.msra.mxu0 %v1184
      %1258 = vmatprep.subr.mxu0 %v1187
      %1259 = vmatpush1.msra.mxu0 %v1186
      %1260 = vmatprep.subr.mxu0 %v1189
      %1261 = vmatpush1.msra.mxu0 %v1188
      %1262 = vmatprep.mubr.f32.mxu0 %v1195
      %1263 = vmatmul.mubr.f32.gmra.mrb[0].mxu0 %v1192
      %v1264 = vpop.f32.mrb[0].mxu0
      %v1265 = vadd.f32 0.0, %v1264
      %v1266 = vpop.f32.mrb[0].mxu0
      %v1267 = vadd.f32 0.0, %v1266
      %1268 = vdwg.mxu0
      %v1269 = vadd.f32 %v1121, %v1265
      %v1270 = vadd.f32 %v1123, %v1267
      %1271 = vmatprep.subr.mxu0 %v311
      %1272 = vmatpush1.msra.mxu0 %v310
      %1273 = vmatprep.subr.mxu0 %v313
      %1274 = vmatpush1.msra.mxu0 %v312
      %1275 = vmatprep.subr.mxu0 %v315
      %1276 = vmatpush1.msra.mxu0 %v314
      %1277 = vmatprep.subr.mxu0 %v317
      %1278 = vmatpush1.msra.mxu0 %v316
      %1279 = vmatprep.subr.mxu0 %v319
      %1280 = vmatpush1.msra.mxu0 %v318
      %1281 = vmatprep.subr.mxu0 %v321
      %1282 = vmatpush1.msra.mxu0 %v320
      %1283 = vmatprep.subr.mxu0 %v323
      %1284 = vmatpush1.msra.mxu0 %v322
      %1285 = vmatprep.subr.mxu0 %v325
      %1286 = vmatpush1.msra.mxu0 %v324
      %1287 = vmatprep.subr.mxu0 %v327
      %1288 = vmatpush1.msra.mxu0 %v326
      %1289 = vmatprep.subr.mxu0 %v329
      %1290 = vmatpush1.msra.mxu0 %v328
      %1291 = vmatprep.subr.mxu0 %v331
      %1292 = vmatpush1.msra.mxu0 %v330
      %1293 = vmatprep.subr.mxu0 %v333
      %1294 = vmatpush1.msra.mxu0 %v332
      %1295 = vmatprep.subr.mxu0 %v335
      %1296 = vmatpush1.msra.mxu0 %v334
      %1297 = vmatprep.subr.mxu0 %v337
      %1298 = vmatpush1.msra.mxu0 %v336
      %1299 = vmatprep.subr.mxu0 %v339
      %1300 = vmatpush1.msra.mxu0 %v338
      %1301 = vmatprep.subr.mxu0 %v341
      %1302 = vmatpush1.msra.mxu0 %v340
      %1303 = vmatprep.subr.mxu0 %v343
      %1304 = vmatpush1.msra.mxu0 %v342
      %1305 = vmatprep.subr.mxu0 %v345
      %1306 = vmatpush1.msra.mxu0 %v344
      %1307 = vmatprep.subr.mxu0 %v347
      %1308 = vmatpush1.msra.mxu0 %v346
      %1309 = vmatprep.subr.mxu0 %v349
      %1310 = vmatpush1.msra.mxu0 %v348
      %1311 = vmatprep.subr.mxu0 %v351
      %1312 = vmatpush1.msra.mxu0 %v350
      %1313 = vmatprep.subr.mxu0 %v353
      %1314 = vmatpush1.msra.mxu0 %v352
      %1315 = vmatprep.subr.mxu0 %v355
      %1316 = vmatpush1.msra.mxu0 %v354
      %1317 = vmatprep.subr.mxu0 %v357
      %1318 = vmatpush1.msra.mxu0 %v356
      %1319 = vmatprep.subr.mxu0 %v359
      %1320 = vmatpush1.msra.mxu0 %v358
      %1321 = vmatprep.subr.mxu0 %v361
      %1322 = vmatpush1.msra.mxu0 %v360
      %1323 = vmatprep.subr.mxu0 %v363
      %1324 = vmatpush1.msra.mxu0 %v362
      %1325 = vmatprep.subr.mxu0 %v365
      %1326 = vmatpush1.msra.mxu0 %v364
      %1327 = vmatprep.subr.mxu0 %v367
      %1328 = vmatpush1.msra.mxu0 %v366
      %1329 = vmatprep.subr.mxu0 %v369
      %1330 = vmatpush1.msra.mxu0 %v368
      %1331 = vmatprep.subr.mxu0 %v371
      %1332 = vmatpush1.msra.mxu0 %v370
      %1333 = vmatprep.subr.mxu0 %v373
      %1334 = vmatpush1.msra.mxu0 %v372
      %1335 = vmatprep.mubr.f32.mxu0 %v517
      %1336 = vmatmul.mubr.f32.gmra.mrb[0].mxu0 %v514
      %v1337 = vpop.f32.mrb[0].mxu0
      %v1338 = vadd.f32 0.0, %v1337
      %v1339 = vpop.f32.mrb[0].mxu0
      %v1340 = vadd.f32 0.0, %v1339
      %1341 = vdwg.mxu0
      %v1342 = vadd.f32 %v1269, %v1338
      %v1343 = vadd.f32 %v1270, %v1340
      %v1344 = vld [vmem:[%s3] sm:$0xff]
      %v1345 = vld [vmem:[%s3 + $0x8] sm:$0xff]
      %v1346 = vld [vmem:[%s3 + $0x10] sm:$0xff]
      %v1347 = vld [vmem:[%s3 + $0x18] sm:$0xff]
      %v1348 = vld [vmem:[%s3 + $0x20] sm:$0xff]
      %v1349 = vld [vmem:[%s3 + $0x28] sm:$0xff]
      %v1350 = vld [vmem:[%s3 + $0x30] sm:$0xff]
      %v1351 = vld [vmem:[%s3 + $0x38] sm:$0xff]
      %v1352 = vld [vmem:[%s3 + $0x40] sm:$0xff]
      %v1353 = vld [vmem:[%s3 + $0x48] sm:$0xff]
      %v1354 = vld [vmem:[%s3 + $0x50] sm:$0xff]
      %v1355 = vld [vmem:[%s3 + $0x58] sm:$0xff]
      %v1356 = vld [vmem:[%s3 + $0x60] sm:$0xff]
      %v1357 = vld [vmem:[%s3 + $0x68] sm:$0xff]
      %v1358 = vld [vmem:[%s3 + $0x70] sm:$0xff]
      %v1359 = vld [vmem:[%s3 + $0x78] sm:$0xff]
      %v1360 = vld [vmem:[%s3 + $0x80] sm:$0xff]
      %v1361 = vld [vmem:[%s3 + $0x88] sm:$0xff]
      %v1362 = vld [vmem:[%s3 + $0x90] sm:$0xff]
      %v1363 = vld [vmem:[%s3 + $0x98] sm:$0xff]
      %v1364 = vld [vmem:[%s3 + $0xa0] sm:$0xff]
      %v1365 = vld [vmem:[%s3 + $0xa8] sm:$0xff]
      %v1366 = vld [vmem:[%s3 + $0xb0] sm:$0xff]
      %v1367 = vld [vmem:[%s3 + $0xb8] sm:$0xff]
      %v1368 = vld [vmem:[%s3 + $0xc0] sm:$0xff]
      %v1369 = vld [vmem:[%s3 + $0xc8] sm:$0xff]
      %v1370 = vld [vmem:[%s3 + $0xd0] sm:$0xff]
      %v1371 = vld [vmem:[%s3 + $0xd8] sm:$0xff]
      %v1372 = vld [vmem:[%s3 + $0xe0] sm:$0xff]
      %v1373 = vld [vmem:[%s3 + $0xe8] sm:$0xff]
      %v1374 = vld [vmem:[%s3 + $0xf0] sm:$0xff]
      %v1375 = vld [vmem:[%s3 + $0xf8] sm:$0xff]
      %v1376 = vld [vmem:[%s3 + $0x100] sm:$0xff]
      %v1377 = vld [vmem:[%s3 + $0x108] sm:$0xff]
      %v1378 = vld [vmem:[%s3 + $0x110] sm:$0xff]
      %v1379 = vld [vmem:[%s3 + $0x118] sm:$0xff]
      %v1380 = vld [vmem:[%s3 + $0x120] sm:$0xff]
      %v1381 = vld [vmem:[%s3 + $0x128] sm:$0xff]
      %v1382 = vld [vmem:[%s3 + $0x130] sm:$0xff]
      %v1383 = vld [vmem:[%s3 + $0x138] sm:$0xff]
      %v1384 = vld [vmem:[%s3 + $0x140] sm:$0xff]
      %v1385 = vld [vmem:[%s3 + $0x148] sm:$0xff]
      %v1386 = vld [vmem:[%s3 + $0x150] sm:$0xff]
      %v1387 = vld [vmem:[%s3 + $0x158] sm:$0xff]
      %v1388 = vld [vmem:[%s3 + $0x160] sm:$0xff]
      %v1389 = vld [vmem:[%s3 + $0x168] sm:$0xff]
      %v1390 = vld [vmem:[%s3 + $0x170] sm:$0xff]
      %v1391 = vld [vmem:[%s3 + $0x178] sm:$0xff]
      %v1392 = vld [vmem:[%s3 + $0x180] sm:$0xff]
      %v1393 = vld [vmem:[%s3 + $0x188] sm:$0xff]
      %v1394 = vld [vmem:[%s3 + $0x190] sm:$0xff]
      %v1395 = vld [vmem:[%s3 + $0x198] sm:$0xff]
      %v1396 = vld [vmem:[%s3 + $0x1a0] sm:$0xff]
      %v1397 = vld [vmem:[%s3 + $0x1a8] sm:$0xff]
      %v1398 = vld [vmem:[%s3 + $0x1b0] sm:$0xff]
      %v1399 = vld [vmem:[%s3 + $0x1b8] sm:$0xff]
      %v1400 = vld [vmem:[%s3 + $0x1c0] sm:$0xff]
      %v1401 = vld [vmem:[%s3 + $0x1c8] sm:$0xff]
      %v1402 = vld [vmem:[%s3 + $0x1d0] sm:$0xff]
      %v1403 = vld [vmem:[%s3 + $0x1d8] sm:$0xff]
      %v1404 = vld [vmem:[%s3 + $0x1e0] sm:$0xff]
      %v1405 = vld [vmem:[%s3 + $0x1e8] sm:$0xff]
      %v1406 = vld [vmem:[%s3 + $0x1f0] sm:$0xff]
      %v1407 = vld [vmem:[%s3 + $0x1f8] sm:$0xff]
      %s1408 = scalar_lea.vmem %s3, 512
      %v1409 = vld [vmem:[%s1408] sm:$0xff]
      %v1410 = vld [vmem:[%s1408 + $0x8] sm:$0xff]
      %v1411 = vld [vmem:[%s1408 + $0x10] sm:$0xff]
      %v1412 = vld [vmem:[%s1408 + $0x18] sm:$0xff]
      %v1413 = vld [vmem:[%s1408 + $0x20] sm:$0xff]
      %v1414 = vld [vmem:[%s1408 + $0x28] sm:$0xff]
      %v1415 = vld [vmem:[%s1408 + $0x30] sm:$0xff]
      %v1416 = vld [vmem:[%s1408 + $0x38] sm:$0xff]
      %v1417 = vld [vmem:[%s1408 + $0x40] sm:$0xff]
      %v1418 = vld [vmem:[%s1408 + $0x48] sm:$0xff]
      %v1419 = vld [vmem:[%s1408 + $0x50] sm:$0xff]
      %v1420 = vld [vmem:[%s1408 + $0x58] sm:$0xff]
      %v1421 = vld [vmem:[%s1408 + $0x60] sm:$0xff]
      %v1422 = vld [vmem:[%s1408 + $0x68] sm:$0xff]
      %v1423 = vld [vmem:[%s1408 + $0x70] sm:$0xff]
      %v1424 = vld [vmem:[%s1408 + $0x78] sm:$0xff]
      %v1425 = vld [vmem:[%s1408 + $0x80] sm:$0xff]
      %v1426 = vld [vmem:[%s1408 + $0x88] sm:$0xff]
      %v1427 = vld [vmem:[%s1408 + $0x90] sm:$0xff]
      %v1428 = vld [vmem:[%s1408 + $0x98] sm:$0xff]
      %v1429 = vld [vmem:[%s1408 + $0xa0] sm:$0xff]
      %v1430 = vld [vmem:[%s1408 + $0xa8] sm:$0xff]
      %v1431 = vld [vmem:[%s1408 + $0xb0] sm:$0xff]
      %v1432 = vld [vmem:[%s1408 + $0xb8] sm:$0xff]
      %v1433 = vld [vmem:[%s1408 + $0xc0] sm:$0xff]
      %v1434 = vld [vmem:[%s1408 + $0xc8] sm:$0xff]
      %v1435 = vld [vmem:[%s1408 + $0xd0] sm:$0xff]
      %v1436 = vld [vmem:[%s1408 + $0xd8] sm:$0xff]
      %v1437 = vld [vmem:[%s1408 + $0xe0] sm:$0xff]
      %v1438 = vld [vmem:[%s1408 + $0xe8] sm:$0xff]
      %v1439 = vld [vmem:[%s1408 + $0xf0] sm:$0xff]
      %v1440 = vld [vmem:[%s1408 + $0xf8] sm:$0xff]
      %v1441 = vld [vmem:[%s1408 + $0x100] sm:$0xff]
      %v1442 = vld [vmem:[%s1408 + $0x108] sm:$0xff]
      %v1443 = vld [vmem:[%s1408 + $0x110] sm:$0xff]
      %v1444 = vld [vmem:[%s1408 + $0x118] sm:$0xff]
      %v1445 = vld [vmem:[%s1408 + $0x120] sm:$0xff]
      %v1446 = vld [vmem:[%s1408 + $0x128] sm:$0xff]
      %v1447 = vld [vmem:[%s1408 + $0x130] sm:$0xff]
      %v1448 = vld [vmem:[%s1408 + $0x138] sm:$0xff]
      %v1449 = vld [vmem:[%s1408 + $0x140] sm:$0xff]
      %v1450 = vld [vmem:[%s1408 + $0x148] sm:$0xff]
      %v1451 = vld [vmem:[%s1408 + $0x150] sm:$0xff]
      %v1452 = vld [vmem:[%s1408 + $0x158] sm:$0xff]
      %v1453 = vld [vmem:[%s1408 + $0x160] sm:$0xff]
      %v1454 = vld [vmem:[%s1408 + $0x168] sm:$0xff]
      %v1455 = vld [vmem:[%s1408 + $0x170] sm:$0xff]
      %v1456 = vld [vmem:[%s1408 + $0x178] sm:$0xff]
      %v1457 = vld [vmem:[%s1408 + $0x180] sm:$0xff]
      %v1458 = vld [vmem:[%s1408 + $0x188] sm:$0xff]
      %v1459 = vld [vmem:[%s1408 + $0x190] sm:$0xff]
      %v1460 = vld [vmem:[%s1408 + $0x198] sm:$0xff]
      %v1461 = vld [vmem:[%s1408 + $0x1a0] sm:$0xff]
      %v1462 = vld [vmem:[%s1408 + $0x1a8] sm:$0xff]
      %v1463 = vld [vmem:[%s1408 + $0x1b0] sm:$0xff]
      %v1464 = vld [vmem:[%s1408 + $0x1b8] sm:$0xff]
      %v1465 = vld [vmem:[%s1408 + $0x1c0] sm:$0xff]
      %v1466 = vld [vmem:[%s1408 + $0x1c8] sm:$0xff]
      %v1467 = vld [vmem:[%s1408 + $0x1d0] sm:$0xff]
      %v1468 = vld [vmem:[%s1408 + $0x1d8] sm:$0xff]
      %v1469 = vld [vmem:[%s1408 + $0x1e0] sm:$0xff]
      %v1470 = vld [vmem:[%s1408 + $0x1e8] sm:$0xff]
      %v1471 = vld [vmem:[%s1408 + $0x1f0] sm:$0xff]
      %v1472 = vld [vmem:[%s1408 + $0x1f8] sm:$0xff]
      %1473 = vmatprep.subr.mxu0 %v1410
      %1474 = vmatpush1.msra.mxu0 %v1409
      %1475 = vmatprep.subr.mxu0 %v1412
      %1476 = vmatpush1.msra.mxu0 %v1411
      %1477 = vmatprep.subr.mxu0 %v1414
      %1478 = vmatpush1.msra.mxu0 %v1413
      %1479 = vmatprep.subr.mxu0 %v1416
      %1480 = vmatpush1.msra.mxu0 %v1415
      %1481 = vmatprep.subr.mxu0 %v1418
      %1482 = vmatpush1.msra.mxu0 %v1417
      %1483 = vmatprep.subr.mxu0 %v1420
      %1484 = vmatpush1.msra.mxu0 %v1419
      %1485 = vmatprep.subr.mxu0 %v1422
      %1486 = vmatpush1.msra.mxu0 %v1421
      %1487 = vmatprep.subr.mxu0 %v1424
      %1488 = vmatpush1.msra.mxu0 %v1423
      %1489 = vmatprep.subr.mxu0 %v1426
      %1490 = vmatpush1.msra.mxu0 %v1425
      %1491 = vmatprep.subr.mxu0 %v1428
      %1492 = vmatpush1.msra.mxu0 %v1427
      %1493 = vmatprep.subr.mxu0 %v1430
      %1494 = vmatpush1.msra.mxu0 %v1429
      %1495 = vmatprep.subr.mxu0 %v1432
      %1496 = vmatpush1.msra.mxu0 %v1431
      %1497 = vmatprep.subr.mxu0 %v1434
      %1498 = vmatpush1.msra.mxu0 %v1433
      %1499 = vmatprep.subr.mxu0 %v1436
      %1500 = vmatpush1.msra.mxu0 %v1435
      %1501 = vmatprep.subr.mxu0 %v1438
      %1502 = vmatpush1.msra.mxu0 %v1437
      %1503 = vmatprep.subr.mxu0 %v1440
      %1504 = vmatpush1.msra.mxu0 %v1439
      %1505 = vmatprep.subr.mxu0 %v1442
      %1506 = vmatpush1.msra.mxu0 %v1441
      %1507 = vmatprep.subr.mxu0 %v1444
      %1508 = vmatpush1.msra.mxu0 %v1443
      %1509 = vmatprep.subr.mxu0 %v1446
      %1510 = vmatpush1.msra.mxu0 %v1445
      %1511 = vmatprep.subr.mxu0 %v1448
      %1512 = vmatpush1.msra.mxu0 %v1447
      %1513 = vmatprep.subr.mxu0 %v1450
      %1514 = vmatpush1.msra.mxu0 %v1449
      %1515 = vmatprep.subr.mxu0 %v1452
      %1516 = vmatpush1.msra.mxu0 %v1451
      %1517 = vmatprep.subr.mxu0 %v1454
      %1518 = vmatpush1.msra.mxu0 %v1453
      %1519 = vmatprep.subr.mxu0 %v1456
      %1520 = vmatpush1.msra.mxu0 %v1455
      %1521 = vmatprep.subr.mxu0 %v1458
      %1522 = vmatpush1.msra.mxu0 %v1457
      %1523 = vmatprep.subr.mxu0 %v1460
      %1524 = vmatpush1.msra.mxu0 %v1459
      %1525 = vmatprep.subr.mxu0 %v1462
      %1526 = vmatpush1.msra.mxu0 %v1461
      %1527 = vmatprep.subr.mxu0 %v1464
      %1528 = vmatpush1.msra.mxu0 %v1463
      %1529 = vmatprep.subr.mxu0 %v1466
      %1530 = vmatpush1.msra.mxu0 %v1465
      %1531 = vmatprep.subr.mxu0 %v1468
      %1532 = vmatpush1.msra.mxu0 %v1467
      %1533 = vmatprep.subr.mxu0 %v1470
      %1534 = vmatpush1.msra.mxu0 %v1469
      %1535 = vmatprep.subr.mxu0 %v1472
      %1536 = vmatpush1.msra.mxu0 %v1471
      %1537 = vmatprep.mubr.f32.mxu0 %v597
      %1538 = vmatmul.mubr.f32.gmra.mrb[0].mxu0 %v594
      %v1539 = vpop.f32.mrb[0].mxu0
      %v1540 = vadd.f32 0.0, %v1539
      %v1541 = vpop.f32.mrb[0].mxu0
      %v1542 = vadd.f32 0.0, %v1541
      %1543 = vdwg.mxu0
      %vm1544 = vcmask 1046528
      %v1545 = vrot.slane %v306, 1
      %v1546 = vrot.slane %v308, 1
      %v1547 = vsel %vm1544, %v1545, %v1546
      %v1548 = vrot.slane %v307, 1
      %v1549 = vrot.slane %v309, 1
      %v1550 = vsel %vm1544, %v1548, %v1549
      %1553 = vmatprep.subr.mxu0 %v1345
      %1554 = vmatpush1.msra.mxu0 %v1344
      %1555 = vmatprep.subr.mxu0 %v1347
      %1556 = vmatpush1.msra.mxu0 %v1346
      %1557 = vmatprep.subr.mxu0 %v1349
      %1558 = vmatpush1.msra.mxu0 %v1348
      %1559 = vmatprep.subr.mxu0 %v1351
      %1560 = vmatpush1.msra.mxu0 %v1350
      %1561 = vmatprep.subr.mxu0 %v1353
      %1562 = vmatpush1.msra.mxu0 %v1352
      %1563 = vmatprep.subr.mxu0 %v1355
      %1564 = vmatpush1.msra.mxu0 %v1354
      %1565 = vmatprep.subr.mxu0 %v1357
      %1566 = vmatpush1.msra.mxu0 %v1356
      %1567 = vmatprep.subr.mxu0 %v1359
      %1568 = vmatpush1.msra.mxu0 %v1358
      %1569 = vmatprep.subr.mxu0 %v1361
      %1570 = vmatpush1.msra.mxu0 %v1360
      %1571 = vmatprep.subr.mxu0 %v1363
      %1572 = vmatpush1.msra.mxu0 %v1362
      %1573 = vmatprep.subr.mxu0 %v1365
      %1574 = vmatpush1.msra.mxu0 %v1364
      %1575 = vmatprep.subr.mxu0 %v1367
      %1576 = vmatpush1.msra.mxu0 %v1366
      %1577 = vmatprep.subr.mxu0 %v1369
      %1578 = vmatpush1.msra.mxu0 %v1368
      %1579 = vmatprep.subr.mxu0 %v1371
      %1580 = vmatpush1.msra.mxu0 %v1370
      %1581 = vmatprep.subr.mxu0 %v1373
      %1582 = vmatpush1.msra.mxu0 %v1372
      %1583 = vmatprep.subr.mxu0 %v1375
      %1584 = vmatpush1.msra.mxu0 %v1374
      %1585 = vmatprep.subr.mxu0 %v1377
      %1586 = vmatpush1.msra.mxu0 %v1376
      %1587 = vmatprep.subr.mxu0 %v1379
      %1588 = vmatpush1.msra.mxu0 %v1378
      %1589 = vmatprep.subr.mxu0 %v1381
      %1590 = vmatpush1.msra.mxu0 %v1380
      %1591 = vmatprep.subr.mxu0 %v1383
      %1592 = vmatpush1.msra.mxu0 %v1382
      %1593 = vmatprep.subr.mxu0 %v1385
      %1594 = vmatpush1.msra.mxu0 %v1384
      %1595 = vmatprep.subr.mxu0 %v1387
      %1596 = vmatpush1.msra.mxu0 %v1386
      %1597 = vmatprep.subr.mxu0 %v1389
      %1598 = vmatpush1.msra.mxu0 %v1388
      %1599 = vmatprep.subr.mxu0 %v1391
      %1600 = vmatpush1.msra.mxu0 %v1390
      %1601 = vmatprep.subr.mxu0 %v1393
      %1602 = vmatpush1.msra.mxu0 %v1392
      %1603 = vmatprep.subr.mxu0 %v1395
      %1604 = vmatpush1.msra.mxu0 %v1394
      %1605 = vmatprep.subr.mxu0 %v1397
      %1606 = vmatpush1.msra.mxu0 %v1396
      %1607 = vmatprep.subr.mxu0 %v1399
      %1608 = vmatpush1.msra.mxu0 %v1398
      %1609 = vmatprep.subr.mxu0 %v1401
      %1610 = vmatpush1.msra.mxu0 %v1400
      %1611 = vmatprep.subr.mxu0 %v1403
      %1612 = vmatpush1.msra.mxu0 %v1402
      %1613 = vmatprep.subr.mxu0 %v1405
      %1614 = vmatpush1.msra.mxu0 %v1404
      %1615 = vmatprep.subr.mxu0 %v1407
      %1616 = vmatpush1.msra.mxu0 %v1406
      %1617 = vmatprep.mubr.f32.mxu0 %v1550
      %1618 = vmatmul.mubr.f32.gmra.mrb[0].mxu0 %v1547
      %v1619 = vpop.f32.mrb[0].mxu0
      %v1620 = vadd.f32 %v1540, %v1619
      %v1621 = vpop.f32.mrb[0].mxu0
      %v1622 = vadd.f32 %v1542, %v1621
      %1623 = vdwg.mxu0
      %s1624 = scalar_lea.vmem %s3, 1024
      %v1625 = vld [vmem:[%s1624] sm:$0xff]
      %v1626 = vld [vmem:[%s1624 + $0x8] sm:$0xff]
      %v1627 = vld [vmem:[%s1624 + $0x10] sm:$0xff]
      %v1628 = vld [vmem:[%s1624 + $0x18] sm:$0xff]
      %v1629 = vld [vmem:[%s1624 + $0x20] sm:$0xff]
      %v1630 = vld [vmem:[%s1624 + $0x28] sm:$0xff]
      %v1631 = vld [vmem:[%s1624 + $0x30] sm:$0xff]
      %v1632 = vld [vmem:[%s1624 + $0x38] sm:$0xff]
      %v1633 = vld [vmem:[%s1624 + $0x40] sm:$0xff]
      %v1634 = vld [vmem:[%s1624 + $0x48] sm:$0xff]
      %v1635 = vld [vmem:[%s1624 + $0x50] sm:$0xff]
      %v1636 = vld [vmem:[%s1624 + $0x58] sm:$0xff]
      %v1637 = vld [vmem:[%s1624 + $0x60] sm:$0xff]
      %v1638 = vld [vmem:[%s1624 + $0x68] sm:$0xff]
      %v1639 = vld [vmem:[%s1624 + $0x70] sm:$0xff]
      %v1640 = vld [vmem:[%s1624 + $0x78] sm:$0xff]
      %v1641 = vld [vmem:[%s1624 + $0x80] sm:$0xff]
      %v1642 = vld [vmem:[%s1624 + $0x88] sm:$0xff]
      %v1643 = vld [vmem:[%s1624 + $0x90] sm:$0xff]
      %v1644 = vld [vmem:[%s1624 + $0x98] sm:$0xff]
      %v1645 = vld [vmem:[%s1624 + $0xa0] sm:$0xff]
      %v1646 = vld [vmem:[%s1624 + $0xa8] sm:$0xff]
      %v1647 = vld [vmem:[%s1624 + $0xb0] sm:$0xff]
      %v1648 = vld [vmem:[%s1624 + $0xb8] sm:$0xff]
      %v1649 = vld [vmem:[%s1624 + $0xc0] sm:$0xff]
      %v1650 = vld [vmem:[%s1624 + $0xc8] sm:$0xff]
      %v1651 = vld [vmem:[%s1624 + $0xd0] sm:$0xff]
      %v1652 = vld [vmem:[%s1624 + $0xd8] sm:$0xff]
      %v1653 = vld [vmem:[%s1624 + $0xe0] sm:$0xff]
      %v1654 = vld [vmem:[%s1624 + $0xe8] sm:$0xff]
      %v1655 = vld [vmem:[%s1624 + $0xf0] sm:$0xff]
      %v1656 = vld [vmem:[%s1624 + $0xf8] sm:$0xff]
      %v1657 = vld [vmem:[%s1624 + $0x100] sm:$0xff]
      %v1658 = vld [vmem:[%s1624 + $0x108] sm:$0xff]
      %v1659 = vld [vmem:[%s1624 + $0x110] sm:$0xff]
      %v1660 = vld [vmem:[%s1624 + $0x118] sm:$0xff]
      %v1661 = vld [vmem:[%s1624 + $0x120] sm:$0xff]
      %v1662 = vld [vmem:[%s1624 + $0x128] sm:$0xff]
      %v1663 = vld [vmem:[%s1624 + $0x130] sm:$0xff]
      %v1664 = vld [vmem:[%s1624 + $0x138] sm:$0xff]
      %v1665 = vld [vmem:[%s1624 + $0x140] sm:$0xff]
      %v1666 = vld [vmem:[%s1624 + $0x148] sm:$0xff]
      %v1667 = vld [vmem:[%s1624 + $0x150] sm:$0xff]
      %v1668 = vld [vmem:[%s1624 + $0x158] sm:$0xff]
      %v1669 = vld [vmem:[%s1624 + $0x160] sm:$0xff]
      %v1670 = vld [vmem:[%s1624 + $0x168] sm:$0xff]
      %v1671 = vld [vmem:[%s1624 + $0x170] sm:$0xff]
      %v1672 = vld [vmem:[%s1624 + $0x178] sm:$0xff]
      %v1673 = vld [vmem:[%s1624 + $0x180] sm:$0xff]
      %v1674 = vld [vmem:[%s1624 + $0x188] sm:$0xff]
      %v1675 = vld [vmem:[%s1624 + $0x190] sm:$0xff]
      %v1676 = vld [vmem:[%s1624 + $0x198] sm:$0xff]
      %v1677 = vld [vmem:[%s1624 + $0x1a0] sm:$0xff]
      %v1678 = vld [vmem:[%s1624 + $0x1a8] sm:$0xff]
      %v1679 = vld [vmem:[%s1624 + $0x1b0] sm:$0xff]
      %v1680 = vld [vmem:[%s1624 + $0x1b8] sm:$0xff]
      %v1681 = vld [vmem:[%s1624 + $0x1c0] sm:$0xff]
      %v1682 = vld [vmem:[%s1624 + $0x1c8] sm:$0xff]
      %v1683 = vld [vmem:[%s1624 + $0x1d0] sm:$0xff]
      %v1684 = vld [vmem:[%s1624 + $0x1d8] sm:$0xff]
      %v1685 = vld [vmem:[%s1624 + $0x1e0] sm:$0xff]
      %v1686 = vld [vmem:[%s1624 + $0x1e8] sm:$0xff]
      %v1687 = vld [vmem:[%s1624 + $0x1f0] sm:$0xff]
      %v1688 = vld [vmem:[%s1624 + $0x1f8] sm:$0xff]
      %1689 = vmatprep.subr.mxu0 %v1626
      %1690 = vmatpush1.msra.mxu0 %v1625
      %1691 = vmatprep.subr.mxu0 %v1628
      %1692 = vmatpush1.msra.mxu0 %v1627
      %1693 = vmatprep.subr.mxu0 %v1630
      %1694 = vmatpush1.msra.mxu0 %v1629
      %1695 = vmatprep.subr.mxu0 %v1632
      %1696 = vmatpush1.msra.mxu0 %v1631
      %1697 = vmatprep.subr.mxu0 %v1634
      %1698 = vmatpush1.msra.mxu0 %v1633
      %1699 = vmatprep.subr.mxu0 %v1636
      %1700 = vmatpush1.msra.mxu0 %v1635
      %1701 = vmatprep.subr.mxu0 %v1638
      %1702 = vmatpush1.msra.mxu0 %v1637
      %1703 = vmatprep.subr.mxu0 %v1640
      %1704 = vmatpush1.msra.mxu0 %v1639
      %1705 = vmatprep.subr.mxu0 %v1642
      %1706 = vmatpush1.msra.mxu0 %v1641
      %1707 = vmatprep.subr.mxu0 %v1644
      %1708 = vmatpush1.msra.mxu0 %v1643
      %1709 = vmatprep.subr.mxu0 %v1646
      %1710 = vmatpush1.msra.mxu0 %v1645
      %1711 = vmatprep.subr.mxu0 %v1648
      %1712 = vmatpush1.msra.mxu0 %v1647
      %1713 = vmatprep.subr.mxu0 %v1650
      %1714 = vmatpush1.msra.mxu0 %v1649
      %1715 = vmatprep.subr.mxu0 %v1652
      %1716 = vmatpush1.msra.mxu0 %v1651
      %1717 = vmatprep.subr.mxu0 %v1654
      %1718 = vmatpush1.msra.mxu0 %v1653
      %1719 = vmatprep.subr.mxu0 %v1656
      %1720 = vmatpush1.msra.mxu0 %v1655
      %1721 = vmatprep.subr.mxu0 %v1658
      %1722 = vmatpush1.msra.mxu0 %v1657
      %1723 = vmatprep.subr.mxu0 %v1660
      %1724 = vmatpush1.msra.mxu0 %v1659
      %1725 = vmatprep.subr.mxu0 %v1662
      %1726 = vmatpush1.msra.mxu0 %v1661
      %1727 = vmatprep.subr.mxu0 %v1664
      %1728 = vmatpush1.msra.mxu0 %v1663
      %1729 = vmatprep.subr.mxu0 %v1666
      %1730 = vmatpush1.msra.mxu0 %v1665
      %1731 = vmatprep.subr.mxu0 %v1668
      %1732 = vmatpush1.msra.mxu0 %v1667
      %1733 = vmatprep.subr.mxu0 %v1670
      %1734 = vmatpush1.msra.mxu0 %v1669
      %1735 = vmatprep.subr.mxu0 %v1672
      %1736 = vmatpush1.msra.mxu0 %v1671
      %1737 = vmatprep.subr.mxu0 %v1674
      %1738 = vmatpush1.msra.mxu0 %v1673
      %1739 = vmatprep.subr.mxu0 %v1676
      %1740 = vmatpush1.msra.mxu0 %v1675
      %1741 = vmatprep.subr.mxu0 %v1678
      %1742 = vmatpush1.msra.mxu0 %v1677
      %1743 = vmatprep.subr.mxu0 %v1680
      %1744 = vmatpush1.msra.mxu0 %v1679
      %1745 = vmatprep.subr.mxu0 %v1682
      %1746 = vmatpush1.msra.mxu0 %v1681
      %1747 = vmatprep.subr.mxu0 %v1684
      %1748 = vmatpush1.msra.mxu0 %v1683
      %1749 = vmatprep.subr.mxu0 %v1686
      %1750 = vmatpush1.msra.mxu0 %v1685
      %1751 = vmatprep.subr.mxu0 %v1688
      %1752 = vmatpush1.msra.mxu0 %v1687
      %1753 = vmatprep.mubr.f32.mxu0 %v517
      %1754 = vmatmul.mubr.f32.gmra.mrb[0].mxu0 %v514
      %v1755 = vpop.f32.mrb[0].mxu0
      %v1756 = vadd.f32 0.0, %v1755
      %v1757 = vpop.f32.mrb[0].mxu0
      %v1758 = vadd.f32 0.0, %v1757
      %1759 = vdwg.mxu0
      %v1760 = vadd.f32 %v1620, %v1756
      %v1761 = vadd.f32 %v1622, %v1758
      %s1762 = scalar_lea.vmem %s3, 1536
      %v1763 = vld [vmem:[%s1762] sm:$0xff]
      %v1764 = vld [vmem:[%s1762 + $0x8] sm:$0xff]
      %v1765 = vld [vmem:[%s1762 + $0x10] sm:$0xff]
      %v1766 = vld [vmem:[%s1762 + $0x18] sm:$0xff]
      %v1767 = vld [vmem:[%s1762 + $0x20] sm:$0xff]
      %v1768 = vld [vmem:[%s1762 + $0x28] sm:$0xff]
      %v1769 = vld [vmem:[%s1762 + $0x30] sm:$0xff]
      %v1770 = vld [vmem:[%s1762 + $0x38] sm:$0xff]
      %v1771 = vld [vmem:[%s1762 + $0x40] sm:$0xff]
      %v1772 = vld [vmem:[%s1762 + $0x48] sm:$0xff]
      %v1773 = vld [vmem:[%s1762 + $0x50] sm:$0xff]
      %v1774 = vld [vmem:[%s1762 + $0x58] sm:$0xff]
      %v1775 = vld [vmem:[%s1762 + $0x60] sm:$0xff]
      %v1776 = vld [vmem:[%s1762 + $0x68] sm:$0xff]
      %v1777 = vld [vmem:[%s1762 + $0x70] sm:$0xff]
      %v1778 = vld [vmem:[%s1762 + $0x78] sm:$0xff]
      %v1779 = vld [vmem:[%s1762 + $0x80] sm:$0xff]
      %v1780 = vld [vmem:[%s1762 + $0x88] sm:$0xff]
      %v1781 = vld [vmem:[%s1762 + $0x90] sm:$0xff]
      %v1782 = vld [vmem:[%s1762 + $0x98] sm:$0xff]
      %v1783 = vld [vmem:[%s1762 + $0xa0] sm:$0xff]
      %v1784 = vld [vmem:[%s1762 + $0xa8] sm:$0xff]
      %v1785 = vld [vmem:[%s1762 + $0xb0] sm:$0xff]
      %v1786 = vld [vmem:[%s1762 + $0xb8] sm:$0xff]
      %v1787 = vld [vmem:[%s1762 + $0xc0] sm:$0xff]
      %v1788 = vld [vmem:[%s1762 + $0xc8] sm:$0xff]
      %v1789 = vld [vmem:[%s1762 + $0xd0] sm:$0xff]
      %v1790 = vld [vmem:[%s1762 + $0xd8] sm:$0xff]
      %v1791 = vld [vmem:[%s1762 + $0xe0] sm:$0xff]
      %v1792 = vld [vmem:[%s1762 + $0xe8] sm:$0xff]
      %v1793 = vld [vmem:[%s1762 + $0xf0] sm:$0xff]
      %v1794 = vld [vmem:[%s1762 + $0xf8] sm:$0xff]
      %v1795 = vld [vmem:[%s1762 + $0x100] sm:$0xff]
      %v1796 = vld [vmem:[%s1762 + $0x108] sm:$0xff]
      %v1797 = vld [vmem:[%s1762 + $0x110] sm:$0xff]
      %v1798 = vld [vmem:[%s1762 + $0x118] sm:$0xff]
      %v1799 = vld [vmem:[%s1762 + $0x120] sm:$0xff]
      %v1800 = vld [vmem:[%s1762 + $0x128] sm:$0xff]
      %v1801 = vld [vmem:[%s1762 + $0x130] sm:$0xff]
      %v1802 = vld [vmem:[%s1762 + $0x138] sm:$0xff]
      %v1803 = vld [vmem:[%s1762 + $0x140] sm:$0xff]
      %v1804 = vld [vmem:[%s1762 + $0x148] sm:$0xff]
      %v1805 = vld [vmem:[%s1762 + $0x150] sm:$0xff]
      %v1806 = vld [vmem:[%s1762 + $0x158] sm:$0xff]
      %v1807 = vld [vmem:[%s1762 + $0x160] sm:$0xff]
      %v1808 = vld [vmem:[%s1762 + $0x168] sm:$0xff]
      %v1809 = vld [vmem:[%s1762 + $0x170] sm:$0xff]
      %v1810 = vld [vmem:[%s1762 + $0x178] sm:$0xff]
      %v1811 = vld [vmem:[%s1762 + $0x180] sm:$0xff]
      %v1812 = vld [vmem:[%s1762 + $0x188] sm:$0xff]
      %v1813 = vld [vmem:[%s1762 + $0x190] sm:$0xff]
      %v1814 = vld [vmem:[%s1762 + $0x198] sm:$0xff]
      %v1815 = vld [vmem:[%s1762 + $0x1a0] sm:$0xff]
      %v1816 = vld [vmem:[%s1762 + $0x1a8] sm:$0xff]
      %v1817 = vld [vmem:[%s1762 + $0x1b0] sm:$0xff]
      %v1818 = vld [vmem:[%s1762 + $0x1b8] sm:$0xff]
      %v1819 = vld [vmem:[%s1762 + $0x1c0] sm:$0xff]
      %v1820 = vld [vmem:[%s1762 + $0x1c8] sm:$0xff]
      %v1821 = vld [vmem:[%s1762 + $0x1d0] sm:$0xff]
      %v1822 = vld [vmem:[%s1762 + $0x1d8] sm:$0xff]
      %v1823 = vld [vmem:[%s1762 + $0x1e0] sm:$0xff]
      %v1824 = vld [vmem:[%s1762 + $0x1e8] sm:$0xff]
      %v1825 = vld [vmem:[%s1762 + $0x1f0] sm:$0xff]
      %v1826 = vld [vmem:[%s1762 + $0x1f8] sm:$0xff]
      %1827 = vmatprep.subr.mxu0 %v1764
      %1828 = vmatpush1.msra.mxu0 %v1763
      %1829 = vmatprep.subr.mxu0 %v1766
      %1830 = vmatpush1.msra.mxu0 %v1765
      %1831 = vmatprep.subr.mxu0 %v1768
      %1832 = vmatpush1.msra.mxu0 %v1767
      %1833 = vmatprep.subr.mxu0 %v1770
      %1834 = vmatpush1.msra.mxu0 %v1769
      %1835 = vmatprep.subr.mxu0 %v1772
      %1836 = vmatpush1.msra.mxu0 %v1771
      %1837 = vmatprep.subr.mxu0 %v1774
      %1838 = vmatpush1.msra.mxu0 %v1773
      %1839 = vmatprep.subr.mxu0 %v1776
      %1840 = vmatpush1.msra.mxu0 %v1775
      %1841 = vmatprep.subr.mxu0 %v1778
      %1842 = vmatpush1.msra.mxu0 %v1777
      %1843 = vmatprep.subr.mxu0 %v1780
      %1844 = vmatpush1.msra.mxu0 %v1779
      %1845 = vmatprep.subr.mxu0 %v1782
      %1846 = vmatpush1.msra.mxu0 %v1781
      %1847 = vmatprep.subr.mxu0 %v1784
      %1848 = vmatpush1.msra.mxu0 %v1783
      %1849 = vmatprep.subr.mxu0 %v1786
      %1850 = vmatpush1.msra.mxu0 %v1785
      %1851 = vmatprep.subr.mxu0 %v1788
      %1852 = vmatpush1.msra.mxu0 %v1787
      %1853 = vmatprep.subr.mxu0 %v1790
      %1854 = vmatpush1.msra.mxu0 %v1789
      %1855 = vmatprep.subr.mxu0 %v1792
      %1856 = vmatpush1.msra.mxu0 %v1791
      %1857 = vmatprep.subr.mxu0 %v1794
      %1858 = vmatpush1.msra.mxu0 %v1793
      %1859 = vmatprep.subr.mxu0 %v1796
      %1860 = vmatpush1.msra.mxu0 %v1795
      %1861 = vmatprep.subr.mxu0 %v1798
      %1862 = vmatpush1.msra.mxu0 %v1797
      %1863 = vmatprep.subr.mxu0 %v1800
      %1864 = vmatpush1.msra.mxu0 %v1799
      %1865 = vmatprep.subr.mxu0 %v1802
      %1866 = vmatpush1.msra.mxu0 %v1801
      %1867 = vmatprep.subr.mxu0 %v1804
      %1868 = vmatpush1.msra.mxu0 %v1803
      %1869 = vmatprep.subr.mxu0 %v1806
      %1870 = vmatpush1.msra.mxu0 %v1805
      %1871 = vmatprep.subr.mxu0 %v1808
      %1872 = vmatpush1.msra.mxu0 %v1807
      %1873 = vmatprep.subr.mxu0 %v1810
      %1874 = vmatpush1.msra.mxu0 %v1809
      %1875 = vmatprep.subr.mxu0 %v1812
      %1876 = vmatpush1.msra.mxu0 %v1811
      %1877 = vmatprep.subr.mxu0 %v1814
      %1878 = vmatpush1.msra.mxu0 %v1813
      %1879 = vmatprep.subr.mxu0 %v1816
      %1880 = vmatpush1.msra.mxu0 %v1815
      %1881 = vmatprep.subr.mxu0 %v1818
      %1882 = vmatpush1.msra.mxu0 %v1817
      %1883 = vmatprep.subr.mxu0 %v1820
      %1884 = vmatpush1.msra.mxu0 %v1819
      %1885 = vmatprep.subr.mxu0 %v1822
      %1886 = vmatpush1.msra.mxu0 %v1821
      %1887 = vmatprep.subr.mxu0 %v1824
      %1888 = vmatpush1.msra.mxu0 %v1823
      %1889 = vmatprep.subr.mxu0 %v1826
      %1890 = vmatpush1.msra.mxu0 %v1825
      %1891 = vmatprep.mubr.f32.mxu0 %v742
      %1892 = vmatmul.mubr.f32.gmra.mrb[0].mxu0 %v739
      %v1893 = vpop.f32.mrb[0].mxu0
      %v1894 = vadd.f32 0.0, %v1893
      %v1895 = vpop.f32.mrb[0].mxu0
      %v1896 = vadd.f32 0.0, %v1895
      %1897 = vdwg.mxu0
      %v1898 = vadd.f32 %v1760, %v1894
      %v1899 = vadd.f32 %v1761, %v1896
      %s1900 = scalar_lea.vmem %s3, 2048
      %v1901 = vld [vmem:[%s1900] sm:$0xff]
      %v1902 = vld [vmem:[%s1900 + $0x8] sm:$0xff]
      %v1903 = vld [vmem:[%s1900 + $0x10] sm:$0xff]
      %v1904 = vld [vmem:[%s1900 + $0x18] sm:$0xff]
      %v1905 = vld [vmem:[%s1900 + $0x20] sm:$0xff]
      %v1906 = vld [vmem:[%s1900 + $0x28] sm:$0xff]
      %v1907 = vld [vmem:[%s1900 + $0x30] sm:$0xff]
      %v1908 = vld [vmem:[%s1900 + $0x38] sm:$0xff]
      %v1909 = vld [vmem:[%s1900 + $0x40] sm:$0xff]
      %v1910 = vld [vmem:[%s1900 + $0x48] sm:$0xff]
      %v1911 = vld [vmem:[%s1900 + $0x50] sm:$0xff]
      %v1912 = vld [vmem:[%s1900 + $0x58] sm:$0xff]
      %v1913 = vld [vmem:[%s1900 + $0x60] sm:$0xff]
      %v1914 = vld [vmem:[%s1900 + $0x68] sm:$0xff]
      %v1915 = vld [vmem:[%s1900 + $0x70] sm:$0xff]
      %v1916 = vld [vmem:[%s1900 + $0x78] sm:$0xff]
      %v1917 = vld [vmem:[%s1900 + $0x80] sm:$0xff]
      %v1918 = vld [vmem:[%s1900 + $0x88] sm:$0xff]
      %v1919 = vld [vmem:[%s1900 + $0x90] sm:$0xff]
      %v1920 = vld [vmem:[%s1900 + $0x98] sm:$0xff]
      %v1921 = vld [vmem:[%s1900 + $0xa0] sm:$0xff]
      %v1922 = vld [vmem:[%s1900 + $0xa8] sm:$0xff]
      %v1923 = vld [vmem:[%s1900 + $0xb0] sm:$0xff]
      %v1924 = vld [vmem:[%s1900 + $0xb8] sm:$0xff]
      %v1925 = vld [vmem:[%s1900 + $0xc0] sm:$0xff]
      %v1926 = vld [vmem:[%s1900 + $0xc8] sm:$0xff]
      %v1927 = vld [vmem:[%s1900 + $0xd0] sm:$0xff]
      %v1928 = vld [vmem:[%s1900 + $0xd8] sm:$0xff]
      %v1929 = vld [vmem:[%s1900 + $0xe0] sm:$0xff]
      %v1930 = vld [vmem:[%s1900 + $0xe8] sm:$0xff]
      %v1931 = vld [vmem:[%s1900 + $0xf0] sm:$0xff]
      %v1932 = vld [vmem:[%s1900 + $0xf8] sm:$0xff]
      %v1933 = vld [vmem:[%s1900 + $0x100] sm:$0xff]
      %v1934 = vld [vmem:[%s1900 + $0x108] sm:$0xff]
      %v1935 = vld [vmem:[%s1900 + $0x110] sm:$0xff]
      %v1936 = vld [vmem:[%s1900 + $0x118] sm:$0xff]
      %v1937 = vld [vmem:[%s1900 + $0x120] sm:$0xff]
      %v1938 = vld [vmem:[%s1900 + $0x128] sm:$0xff]
      %v1939 = vld [vmem:[%s1900 + $0x130] sm:$0xff]
      %v1940 = vld [vmem:[%s1900 + $0x138] sm:$0xff]
      %v1941 = vld [vmem:[%s1900 + $0x140] sm:$0xff]
      %v1942 = vld [vmem:[%s1900 + $0x148] sm:$0xff]
      %v1943 = vld [vmem:[%s1900 + $0x150] sm:$0xff]
      %v1944 = vld [vmem:[%s1900 + $0x158] sm:$0xff]
      %v1945 = vld [vmem:[%s1900 + $0x160] sm:$0xff]
      %v1946 = vld [vmem:[%s1900 + $0x168] sm:$0xff]
      %v1947 = vld [vmem:[%s1900 + $0x170] sm:$0xff]
      %v1948 = vld [vmem:[%s1900 + $0x178] sm:$0xff]
      %v1949 = vld [vmem:[%s1900 + $0x180] sm:$0xff]
      %v1950 = vld [vmem:[%s1900 + $0x188] sm:$0xff]
      %v1951 = vld [vmem:[%s1900 + $0x190] sm:$0xff]
      %v1952 = vld [vmem:[%s1900 + $0x198] sm:$0xff]
      %v1953 = vld [vmem:[%s1900 + $0x1a0] sm:$0xff]
      %v1954 = vld [vmem:[%s1900 + $0x1a8] sm:$0xff]
      %v1955 = vld [vmem:[%s1900 + $0x1b0] sm:$0xff]
      %v1956 = vld [vmem:[%s1900 + $0x1b8] sm:$0xff]
      %v1957 = vld [vmem:[%s1900 + $0x1c0] sm:$0xff]
      %v1958 = vld [vmem:[%s1900 + $0x1c8] sm:$0xff]
      %v1959 = vld [vmem:[%s1900 + $0x1d0] sm:$0xff]
      %v1960 = vld [vmem:[%s1900 + $0x1d8] sm:$0xff]
      %v1961 = vld [vmem:[%s1900 + $0x1e0] sm:$0xff]
      %v1962 = vld [vmem:[%s1900 + $0x1e8] sm:$0xff]
      %v1963 = vld [vmem:[%s1900 + $0x1f0] sm:$0xff]
      %v1964 = vld [vmem:[%s1900 + $0x1f8] sm:$0xff]
      %vm1965 = vcmask 1042432
      %v1966 = vrot.slane %v306, 5
      %v1967 = vrot.slane %v308, 5
      %v1968 = vsel %vm1965, %v1966, %v1967
      %v1969 = vrot.slane %v307, 5
      %v1970 = vrot.slane %v309, 5
      %v1971 = vsel %vm1965, %v1969, %v1970
      %1974 = vmatprep.subr.mxu0 %v1902
      %1975 = vmatpush1.msra.mxu0 %v1901
      %1976 = vmatprep.subr.mxu0 %v1904
      %1977 = vmatpush1.msra.mxu0 %v1903
      %1978 = vmatprep.subr.mxu0 %v1906
      %1979 = vmatpush1.msra.mxu0 %v1905
      %1980 = vmatprep.subr.mxu0 %v1908
      %1981 = vmatpush1.msra.mxu0 %v1907
      %1982 = vmatprep.subr.mxu0 %v1910
      %1983 = vmatpush1.msra.mxu0 %v1909
      %1984 = vmatprep.subr.mxu0 %v1912
      %1985 = vmatpush1.msra.mxu0 %v1911
      %1986 = vmatprep.subr.mxu0 %v1914
      %1987 = vmatpush1.msra.mxu0 %v1913
      %1988 = vmatprep.subr.mxu0 %v1916
      %1989 = vmatpush1.msra.mxu0 %v1915
      %1990 = vmatprep.subr.mxu0 %v1918
      %1991 = vmatpush1.msra.mxu0 %v1917
      %1992 = vmatprep.subr.mxu0 %v1920
      %1993 = vmatpush1.msra.mxu0 %v1919
      %1994 = vmatprep.subr.mxu0 %v1922
      %1995 = vmatpush1.msra.mxu0 %v1921
      %1996 = vmatprep.subr.mxu0 %v1924
      %1997 = vmatpush1.msra.mxu0 %v1923
      %1998 = vmatprep.subr.mxu0 %v1926
      %1999 = vmatpush1.msra.mxu0 %v1925
      %2000 = vmatprep.subr.mxu0 %v1928
      %2001 = vmatpush1.msra.mxu0 %v1927
      %2002 = vmatprep.subr.mxu0 %v1930
      %2003 = vmatpush1.msra.mxu0 %v1929
      %2004 = vmatprep.subr.mxu0 %v1932
      %2005 = vmatpush1.msra.mxu0 %v1931
      %2006 = vmatprep.subr.mxu0 %v1934
      %2007 = vmatpush1.msra.mxu0 %v1933
      %2008 = vmatprep.subr.mxu0 %v1936
      %2009 = vmatpush1.msra.mxu0 %v1935
      %2010 = vmatprep.subr.mxu0 %v1938
      %2011 = vmatpush1.msra.mxu0 %v1937
      %2012 = vmatprep.subr.mxu0 %v1940
      %2013 = vmatpush1.msra.mxu0 %v1939
      %2014 = vmatprep.subr.mxu0 %v1942
      %2015 = vmatpush1.msra.mxu0 %v1941
      %2016 = vmatprep.subr.mxu0 %v1944
      %2017 = vmatpush1.msra.mxu0 %v1943
      %2018 = vmatprep.subr.mxu0 %v1946
      %2019 = vmatpush1.msra.mxu0 %v1945
      %2020 = vmatprep.subr.mxu0 %v1948
      %2021 = vmatpush1.msra.mxu0 %v1947
      %2022 = vmatprep.subr.mxu0 %v1950
      %2023 = vmatpush1.msra.mxu0 %v1949
      %2024 = vmatprep.subr.mxu0 %v1952
      %2025 = vmatpush1.msra.mxu0 %v1951
      %2026 = vmatprep.subr.mxu0 %v1954
      %2027 = vmatpush1.msra.mxu0 %v1953
      %2028 = vmatprep.subr.mxu0 %v1956
      %2029 = vmatpush1.msra.mxu0 %v1955
      %2030 = vmatprep.subr.mxu0 %v1958
      %2031 = vmatpush1.msra.mxu0 %v1957
      %2032 = vmatprep.subr.mxu0 %v1960
      %2033 = vmatpush1.msra.mxu0 %v1959
      %2034 = vmatprep.subr.mxu0 %v1962
      %2035 = vmatpush1.msra.mxu0 %v1961
      %2036 = vmatprep.subr.mxu0 %v1964
      %2037 = vmatpush1.msra.mxu0 %v1963
      %2038 = vmatprep.mubr.f32.mxu0 %v1971
      %2039 = vmatmul.mubr.f32.gmra.mrb[0].mxu0 %v1968
      %v2040 = vpop.f32.mrb[0].mxu0
      %v2041 = vadd.f32 0.0, %v2040
      %v2042 = vpop.f32.mrb[0].mxu0
      %v2043 = vadd.f32 0.0, %v2042
      %2044 = vdwg.mxu0
      %v2045 = vadd.f32 %v1898, %v2041
      %v2046 = vadd.f32 %v1899, %v2043
      %v2047 = vmax.f32 %v2045, 0.0
      %v2048 = vmax.f32 %v2046, 0.0
      %v2051 = vrot.slane %v2047, 5
      %v2052 = vrot.slane %v2048, 5
      %2055 = vst [vmem:[#allocation2] sm:$0xf8] %v2051
      %2056 = vst [vmem:[#allocation2 + $0x8] sm:$0xf8] %v2052
      %2057 = vst [vmem:[#allocation2 + $0x10] sm:$0x7] %v2051
      %2058 = vst [vmem:[#allocation2 + $0x18] sm:$0x7] %v2052
      %v2059 = vld [vmem:[#allocation2] sm:$0xff]
      %v2060 = vld [vmem:[#allocation2 + $0x8] sm:$0xff]
      %v2061 = vld [vmem:[#allocation2 + $0x10] sm:$0x3f]
      %v2062 = vld [vmem:[#allocation2 + $0x18] sm:$0x3f]
      %v2063 = vld [vmem:[%s4] sm:$0xff]
      %v2064 = vld [vmem:[%s4 + $0x8] sm:$0xff]
      %v2065 = vld [vmem:[%s4 + $0x10] sm:$0xff]
      %v2066 = vld [vmem:[%s4 + $0x18] sm:$0xff]
      %v2067 = vld [vmem:[%s4 + $0x20] sm:$0xff]
      %v2068 = vld [vmem:[%s4 + $0x28] sm:$0xff]
      %v2069 = vld [vmem:[%s4 + $0x30] sm:$0xff]
      %v2070 = vld [vmem:[%s4 + $0x38] sm:$0xff]
      %v2071 = vld [vmem:[%s4 + $0x40] sm:$0xff]
      %v2072 = vld [vmem:[%s4 + $0x48] sm:$0xff]
      %v2073 = vld [vmem:[%s4 + $0x50] sm:$0xff]
      %v2074 = vld [vmem:[%s4 + $0x58] sm:$0xff]
      %v2075 = vld [vmem:[%s4 + $0x60] sm:$0xff]
      %v2076 = vld [vmem:[%s4 + $0x68] sm:$0xff]
      %v2077 = vld [vmem:[%s4 + $0x70] sm:$0xff]
      %v2078 = vld [vmem:[%s4 + $0x78] sm:$0xff]
      %v2079 = vld [vmem:[%s4 + $0x80] sm:$0xff]
      %v2080 = vld [vmem:[%s4 + $0x88] sm:$0xff]
      %v2081 = vld [vmem:[%s4 + $0x90] sm:$0xff]
      %v2082 = vld [vmem:[%s4 + $0x98] sm:$0xff]
      %v2083 = vld [vmem:[%s4 + $0xa0] sm:$0xff]
      %v2084 = vld [vmem:[%s4 + $0xa8] sm:$0xff]
      %v2085 = vld [vmem:[%s4 + $0xb0] sm:$0xff]
      %v2086 = vld [vmem:[%s4 + $0xb8] sm:$0xff]
      %v2087 = vld [vmem:[%s4 + $0xc0] sm:$0xff]
      %v2088 = vld [vmem:[%s4 + $0xc8] sm:$0xff]
      %v2089 = vld [vmem:[%s4 + $0xd0] sm:$0xff]
      %v2090 = vld [vmem:[%s4 + $0xd8] sm:$0xff]
      %v2091 = vld [vmem:[%s4 + $0xe0] sm:$0xff]
      %v2092 = vld [vmem:[%s4 + $0xe8] sm:$0xff]
      %v2093 = vld [vmem:[%s4 + $0xf0] sm:$0xff]
      %v2094 = vld [vmem:[%s4 + $0xf8] sm:$0xff]
      %v2095 = vld [vmem:[%s4 + $0x100] sm:$0xff]
      %v2096 = vld [vmem:[%s4 + $0x108] sm:$0xff]
      %v2097 = vld [vmem:[%s4 + $0x110] sm:$0xff]
      %v2098 = vld [vmem:[%s4 + $0x118] sm:$0xff]
      %v2099 = vld [vmem:[%s4 + $0x120] sm:$0xff]
      %v2100 = vld [vmem:[%s4 + $0x128] sm:$0xff]
      %v2101 = vld [vmem:[%s4 + $0x130] sm:$0xff]
      %v2102 = vld [vmem:[%s4 + $0x138] sm:$0xff]
      %v2103 = vld [vmem:[%s4 + $0x140] sm:$0xff]
      %v2104 = vld [vmem:[%s4 + $0x148] sm:$0xff]
      %v2105 = vld [vmem:[%s4 + $0x150] sm:$0xff]
      %v2106 = vld [vmem:[%s4 + $0x158] sm:$0xff]
      %v2107 = vld [vmem:[%s4 + $0x160] sm:$0xff]
      %v2108 = vld [vmem:[%s4 + $0x168] sm:$0xff]
      %v2109 = vld [vmem:[%s4 + $0x170] sm:$0xff]
      %v2110 = vld [vmem:[%s4 + $0x178] sm:$0xff]
      %v2111 = vld [vmem:[%s4 + $0x180] sm:$0xff]
      %v2112 = vld [vmem:[%s4 + $0x188] sm:$0xff]
      %v2113 = vld [vmem:[%s4 + $0x190] sm:$0xff]
      %v2114 = vld [vmem:[%s4 + $0x198] sm:$0xff]
      %v2115 = vld [vmem:[%s4 + $0x1a0] sm:$0xff]
      %v2116 = vld [vmem:[%s4 + $0x1a8] sm:$0xff]
      %v2117 = vld [vmem:[%s4 + $0x1b0] sm:$0xff]
      %v2118 = vld [vmem:[%s4 + $0x1b8] sm:$0xff]
      %v2119 = vld [vmem:[%s4 + $0x1c0] sm:$0xff]
      %v2120 = vld [vmem:[%s4 + $0x1c8] sm:$0xff]
      %v2121 = vld [vmem:[%s4 + $0x1d0] sm:$0xff]
      %v2122 = vld [vmem:[%s4 + $0x1d8] sm:$0xff]
      %v2123 = vld [vmem:[%s4 + $0x1e0] sm:$0xff]
      %v2124 = vld [vmem:[%s4 + $0x1e8] sm:$0xff]
      %v2125 = vld [vmem:[%s4 + $0x1f0] sm:$0xff]
      %v2126 = vld [vmem:[%s4 + $0x1f8] sm:$0xff]
      %s2127 = scalar_lea.vmem %s4, 512
      %v2128 = vld [vmem:[%s2127] sm:$0xff]
      %v2129 = vld [vmem:[%s2127 + $0x8] sm:$0xff]
      %v2130 = vld [vmem:[%s2127 + $0x10] sm:$0xff]
      %v2131 = vld [vmem:[%s2127 + $0x18] sm:$0xff]
      %v2132 = vld [vmem:[%s2127 + $0x20] sm:$0xff]
      %v2133 = vld [vmem:[%s2127 + $0x28] sm:$0xff]
      %v2134 = vld [vmem:[%s2127 + $0x30] sm:$0xff]
      %v2135 = vld [vmem:[%s2127 + $0x38] sm:$0xff]
      %v2136 = vld [vmem:[%s2127 + $0x40] sm:$0xff]
      %v2137 = vld [vmem:[%s2127 + $0x48] sm:$0xff]
      %v2138 = vld [vmem:[%s2127 + $0x50] sm:$0xff]
      %v2139 = vld [vmem:[%s2127 + $0x58] sm:$0xff]
      %v2140 = vld [vmem:[%s2127 + $0x60] sm:$0xff]
      %v2141 = vld [vmem:[%s2127 + $0x68] sm:$0xff]
      %v2142 = vld [vmem:[%s2127 + $0x70] sm:$0xff]
      %v2143 = vld [vmem:[%s2127 + $0x78] sm:$0xff]
      %v2144 = vld [vmem:[%s2127 + $0x80] sm:$0xff]
      %v2145 = vld [vmem:[%s2127 + $0x88] sm:$0xff]
      %v2146 = vld [vmem:[%s2127 + $0x90] sm:$0xff]
      %v2147 = vld [vmem:[%s2127 + $0x98] sm:$0xff]
      %v2148 = vld [vmem:[%s2127 + $0xa0] sm:$0xff]
      %v2149 = vld [vmem:[%s2127 + $0xa8] sm:$0xff]
      %v2150 = vld [vmem:[%s2127 + $0xb0] sm:$0xff]
      %v2151 = vld [vmem:[%s2127 + $0xb8] sm:$0xff]
      %v2152 = vld [vmem:[%s2127 + $0xc0] sm:$0xff]
      %v2153 = vld [vmem:[%s2127 + $0xc8] sm:$0xff]
      %v2154 = vld [vmem:[%s2127 + $0xd0] sm:$0xff]
      %v2155 = vld [vmem:[%s2127 + $0xd8] sm:$0xff]
      %v2156 = vld [vmem:[%s2127 + $0xe0] sm:$0xff]
      %v2157 = vld [vmem:[%s2127 + $0xe8] sm:$0xff]
      %v2158 = vld [vmem:[%s2127 + $0xf0] sm:$0xff]
      %v2159 = vld [vmem:[%s2127 + $0xf8] sm:$0xff]
      %v2160 = vld [vmem:[%s2127 + $0x100] sm:$0xff]
      %v2161 = vld [vmem:[%s2127 + $0x108] sm:$0xff]
      %v2162 = vld [vmem:[%s2127 + $0x110] sm:$0xff]
      %v2163 = vld [vmem:[%s2127 + $0x118] sm:$0xff]
      %v2164 = vld [vmem:[%s2127 + $0x120] sm:$0xff]
      %v2165 = vld [vmem:[%s2127 + $0x128] sm:$0xff]
      %v2166 = vld [vmem:[%s2127 + $0x130] sm:$0xff]
      %v2167 = vld [vmem:[%s2127 + $0x138] sm:$0xff]
      %v2168 = vld [vmem:[%s2127 + $0x140] sm:$0xff]
      %v2169 = vld [vmem:[%s2127 + $0x148] sm:$0xff]
      %v2170 = vld [vmem:[%s2127 + $0x150] sm:$0xff]
      %v2171 = vld [vmem:[%s2127 + $0x158] sm:$0xff]
      %v2172 = vld [vmem:[%s2127 + $0x160] sm:$0xff]
      %v2173 = vld [vmem:[%s2127 + $0x168] sm:$0xff]
      %v2174 = vld [vmem:[%s2127 + $0x170] sm:$0xff]
      %v2175 = vld [vmem:[%s2127 + $0x178] sm:$0xff]
      %v2176 = vld [vmem:[%s2127 + $0x180] sm:$0xff]
      %v2177 = vld [vmem:[%s2127 + $0x188] sm:$0xff]
      %v2178 = vld [vmem:[%s2127 + $0x190] sm:$0xff]
      %v2179 = vld [vmem:[%s2127 + $0x198] sm:$0xff]
      %v2180 = vld [vmem:[%s2127 + $0x1a0] sm:$0xff]
      %v2181 = vld [vmem:[%s2127 + $0x1a8] sm:$0xff]
      %v2182 = vld [vmem:[%s2127 + $0x1b0] sm:$0xff]
      %v2183 = vld [vmem:[%s2127 + $0x1b8] sm:$0xff]
      %v2184 = vld [vmem:[%s2127 + $0x1c0] sm:$0xff]
      %v2185 = vld [vmem:[%s2127 + $0x1c8] sm:$0xff]
      %v2186 = vld [vmem:[%s2127 + $0x1d0] sm:$0xff]
      %v2187 = vld [vmem:[%s2127 + $0x1d8] sm:$0xff]
      %v2188 = vld [vmem:[%s2127 + $0x1e0] sm:$0xff]
      %v2189 = vld [vmem:[%s2127 + $0x1e8] sm:$0xff]
      %v2190 = vld [vmem:[%s2127 + $0x1f0] sm:$0xff]
      %v2191 = vld [vmem:[%s2127 + $0x1f8] sm:$0xff]
      %v2196 = vrot.slane %v2059, 2
      %v2197 = vrot.slane %v2061, 2
      %v2198 = vsel %vm591, %v2196, %v2197
      %v2199 = vrot.slane %v2060, 2
      %v2200 = vrot.slane %v2062, 2
      %v2201 = vsel %vm591, %v2199, %v2200
      %2204 = vmatprep.subr.mxu0 %v2129
      %2205 = vmatpush1.msra.mxu0 %v2128
      %2206 = vmatprep.subr.mxu0 %v2131
      %2207 = vmatpush1.msra.mxu0 %v2130
      %2208 = vmatprep.subr.mxu0 %v2133
      %2209 = vmatpush1.msra.mxu0 %v2132
      %2210 = vmatprep.subr.mxu0 %v2135
      %2211 = vmatpush1.msra.mxu0 %v2134
      %2212 = vmatprep.subr.mxu0 %v2137
      %2213 = vmatpush1.msra.mxu0 %v2136
      %2214 = vmatprep.subr.mxu0 %v2139
      %2215 = vmatpush1.msra.mxu0 %v2138
      %2216 = vmatprep.subr.mxu0 %v2141
      %2217 = vmatpush1.msra.mxu0 %v2140
      %2218 = vmatprep.subr.mxu0 %v2143
      %2219 = vmatpush1.msra.mxu0 %v2142
      %2220 = vmatprep.subr.mxu0 %v2145
      %2221 = vmatpush1.msra.mxu0 %v2144
      %2222 = vmatprep.subr.mxu0 %v2147
      %2223 = vmatpush1.msra.mxu0 %v2146
      %2224 = vmatprep.subr.mxu0 %v2149
      %2225 = vmatpush1.msra.mxu0 %v2148
      %2226 = vmatprep.subr.mxu0 %v2151
      %2227 = vmatpush1.msra.mxu0 %v2150
      %2228 = vmatprep.subr.mxu0 %v2153
      %2229 = vmatpush1.msra.mxu0 %v2152
      %2230 = vmatprep.subr.mxu0 %v2155
      %2231 = vmatpush1.msra.mxu0 %v2154
      %2232 = vmatprep.subr.mxu0 %v2157
      %2233 = vmatpush1.msra.mxu0 %v2156
      %2234 = vmatprep.subr.mxu0 %v2159
      %2235 = vmatpush1.msra.mxu0 %v2158
      %2236 = vmatprep.subr.mxu0 %v2161
      %2237 = vmatpush1.msra.mxu0 %v2160
      %2238 = vmatprep.subr.mxu0 %v2163
      %2239 = vmatpush1.msra.mxu0 %v2162
      %2240 = vmatprep.subr.mxu0 %v2165
      %2241 = vmatpush1.msra.mxu0 %v2164
      %2242 = vmatprep.subr.mxu0 %v2167
      %2243 = vmatpush1.msra.mxu0 %v2166
      %2244 = vmatprep.subr.mxu0 %v2169
      %2245 = vmatpush1.msra.mxu0 %v2168
      %2246 = vmatprep.subr.mxu0 %v2171
      %2247 = vmatpush1.msra.mxu0 %v2170
      %2248 = vmatprep.subr.mxu0 %v2173
      %2249 = vmatpush1.msra.mxu0 %v2172
      %2250 = vmatprep.subr.mxu0 %v2175
      %2251 = vmatpush1.msra.mxu0 %v2174
      %2252 = vmatprep.subr.mxu0 %v2177
      %2253 = vmatpush1.msra.mxu0 %v2176
      %2254 = vmatprep.subr.mxu0 %v2179
      %2255 = vmatpush1.msra.mxu0 %v2178
      %2256 = vmatprep.subr.mxu0 %v2181
      %2257 = vmatpush1.msra.mxu0 %v2180
      %2258 = vmatprep.subr.mxu0 %v2183
      %2259 = vmatpush1.msra.mxu0 %v2182
      %2260 = vmatprep.subr.mxu0 %v2185
      %2261 = vmatpush1.msra.mxu0 %v2184
      %2262 = vmatprep.subr.mxu0 %v2187
      %2263 = vmatpush1.msra.mxu0 %v2186
      %2264 = vmatprep.subr.mxu0 %v2189
      %2265 = vmatpush1.msra.mxu0 %v2188
      %2266 = vmatprep.subr.mxu0 %v2191
      %2267 = vmatpush1.msra.mxu0 %v2190
      %2268 = vmatprep.mubr.f32.mxu0 %v2201
      %2269 = vmatmul.mubr.f32.gmra.mrb[0].mxu0 %v2198
      %v2270 = vpop.f32.mrb[0].mxu0
      %v2271 = vadd.f32 0.0, %v2270
      %v2272 = vpop.f32.mrb[0].mxu0
      %v2273 = vadd.f32 0.0, %v2272
      %2274 = vdwg.mxu0
      %v2275 = vrot.slane %v2059, 1
      %v2276 = vrot.slane %v2061, 1
      %v2277 = vsel %vm1544, %v2275, %v2276
      %v2278 = vrot.slane %v2060, 1
      %v2279 = vrot.slane %v2062, 1
      %v2280 = vsel %vm1544, %v2278, %v2279
      %2283 = vmatprep.subr.mxu0 %v2064
      %2284 = vmatpush1.msra.mxu0 %v2063
      %2285 = vmatprep.subr.mxu0 %v2066
      %2286 = vmatpush1.msra.mxu0 %v2065
      %2287 = vmatprep.subr.mxu0 %v2068
      %2288 = vmatpush1.msra.mxu0 %v2067
      %2289 = vmatprep.subr.mxu0 %v2070
      %2290 = vmatpush1.msra.mxu0 %v2069
      %2291 = vmatprep.subr.mxu0 %v2072
      %2292 = vmatpush1.msra.mxu0 %v2071
      %2293 = vmatprep.subr.mxu0 %v2074
      %2294 = vmatpush1.msra.mxu0 %v2073
      %2295 = vmatprep.subr.mxu0 %v2076
      %2296 = vmatpush1.msra.mxu0 %v2075
      %2297 = vmatprep.subr.mxu0 %v2078
      %2298 = vmatpush1.msra.mxu0 %v2077
      %2299 = vmatprep.subr.mxu0 %v2080
      %2300 = vmatpush1.msra.mxu0 %v2079
      %2301 = vmatprep.subr.mxu0 %v2082
      %2302 = vmatpush1.msra.mxu0 %v2081
      %2303 = vmatprep.subr.mxu0 %v2084
      %2304 = vmatpush1.msra.mxu0 %v2083
      %2305 = vmatprep.subr.mxu0 %v2086
      %2306 = vmatpush1.msra.mxu0 %v2085
      %2307 = vmatprep.subr.mxu0 %v2088
      %2308 = vmatpush1.msra.mxu0 %v2087
      %2309 = vmatprep.subr.mxu0 %v2090
      %2310 = vmatpush1.msra.mxu0 %v2089
      %2311 = vmatprep.subr.mxu0 %v2092
      %2312 = vmatpush1.msra.mxu0 %v2091
      %2313 = vmatprep.subr.mxu0 %v2094
      %2314 = vmatpush1.msra.mxu0 %v2093
      %2315 = vmatprep.subr.mxu0 %v2096
      %2316 = vmatpush1.msra.mxu0 %v2095
      %2317 = vmatprep.subr.mxu0 %v2098
      %2318 = vmatpush1.msra.mxu0 %v2097
      %2319 = vmatprep.subr.mxu0 %v2100
      %2320 = vmatpush1.msra.mxu0 %v2099
      %2321 = vmatprep.subr.mxu0 %v2102
      %2322 = vmatpush1.msra.mxu0 %v2101
      %2323 = vmatprep.subr.mxu0 %v2104
      %2324 = vmatpush1.msra.mxu0 %v2103
      %2325 = vmatprep.subr.mxu0 %v2106
      %2326 = vmatpush1.msra.mxu0 %v2105
      %2327 = vmatprep.subr.mxu0 %v2108
      %2328 = vmatpush1.msra.mxu0 %v2107
      %2329 = vmatprep.subr.mxu0 %v2110
      %2330 = vmatpush1.msra.mxu0 %v2109
      %2331 = vmatprep.subr.mxu0 %v2112
      %2332 = vmatpush1.msra.mxu0 %v2111
      %2333 = vmatprep.subr.mxu0 %v2114
      %2334 = vmatpush1.msra.mxu0 %v2113
      %2335 = vmatprep.subr.mxu0 %v2116
      %2336 = vmatpush1.msra.mxu0 %v2115
      %2337 = vmatprep.subr.mxu0 %v2118
      %2338 = vmatpush1.msra.mxu0 %v2117
      %2339 = vmatprep.subr.mxu0 %v2120
      %2340 = vmatpush1.msra.mxu0 %v2119
      %2341 = vmatprep.subr.mxu0 %v2122
      %2342 = vmatpush1.msra.mxu0 %v2121
      %2343 = vmatprep.subr.mxu0 %v2124
      %2344 = vmatpush1.msra.mxu0 %v2123
      %2345 = vmatprep.subr.mxu0 %v2126
      %2346 = vmatpush1.msra.mxu0 %v2125
      %2347 = vmatprep.mubr.f32.mxu0 %v2280
      %2348 = vmatmul.mubr.f32.gmra.mrb[0].mxu0 %v2277
      %v2349 = vpop.f32.mrb[0].mxu0
      %v2350 = vadd.f32 %v2271, %v2349
      %v2351 = vpop.f32.mrb[0].mxu0
      %v2352 = vadd.f32 %v2273, %v2351
      %2353 = vdwg.mxu0
      %s2354 = scalar_lea.vmem %s4, 1024
      %v2355 = vld [vmem:[%s2354] sm:$0xff]
      %v2356 = vld [vmem:[%s2354 + $0x8] sm:$0xff]
      %v2357 = vld [vmem:[%s2354 + $0x10] sm:$0xff]
      %v2358 = vld [vmem:[%s2354 + $0x18] sm:$0xff]
      %v2359 = vld [vmem:[%s2354 + $0x20] sm:$0xff]
      %v2360 = vld [vmem:[%s2354 + $0x28] sm:$0xff]
      %v2361 = vld [vmem:[%s2354 + $0x30] sm:$0xff]
      %v2362 = vld [vmem:[%s2354 + $0x38] sm:$0xff]
      %v2363 = vld [vmem:[%s2354 + $0x40] sm:$0xff]
      %v2364 = vld [vmem:[%s2354 + $0x48] sm:$0xff]
      %v2365 = vld [vmem:[%s2354 + $0x50] sm:$0xff]
      %v2366 = vld [vmem:[%s2354 + $0x58] sm:$0xff]
      %v2367 = vld [vmem:[%s2354 + $0x60] sm:$0xff]
      %v2368 = vld [vmem:[%s2354 + $0x68] sm:$0xff]
      %v2369 = vld [vmem:[%s2354 + $0x70] sm:$0xff]
      %v2370 = vld [vmem:[%s2354 + $0x78] sm:$0xff]
      %v2371 = vld [vmem:[%s2354 + $0x80] sm:$0xff]
      %v2372 = vld [vmem:[%s2354 + $0x88] sm:$0xff]
      %v2373 = vld [vmem:[%s2354 + $0x90] sm:$0xff]
      %v2374 = vld [vmem:[%s2354 + $0x98] sm:$0xff]
      %v2375 = vld [vmem:[%s2354 + $0xa0] sm:$0xff]
      %v2376 = vld [vmem:[%s2354 + $0xa8] sm:$0xff]
      %v2377 = vld [vmem:[%s2354 + $0xb0] sm:$0xff]
      %v2378 = vld [vmem:[%s2354 + $0xb8] sm:$0xff]
      %v2379 = vld [vmem:[%s2354 + $0xc0] sm:$0xff]
      %v2380 = vld [vmem:[%s2354 + $0xc8] sm:$0xff]
      %v2381 = vld [vmem:[%s2354 + $0xd0] sm:$0xff]
      %v2382 = vld [vmem:[%s2354 + $0xd8] sm:$0xff]
      %v2383 = vld [vmem:[%s2354 + $0xe0] sm:$0xff]
      %v2384 = vld [vmem:[%s2354 + $0xe8] sm:$0xff]
      %v2385 = vld [vmem:[%s2354 + $0xf0] sm:$0xff]
      %v2386 = vld [vmem:[%s2354 + $0xf8] sm:$0xff]
      %v2387 = vld [vmem:[%s2354 + $0x100] sm:$0xff]
      %v2388 = vld [vmem:[%s2354 + $0x108] sm:$0xff]
      %v2389 = vld [vmem:[%s2354 + $0x110] sm:$0xff]
      %v2390 = vld [vmem:[%s2354 + $0x118] sm:$0xff]
      %v2391 = vld [vmem:[%s2354 + $0x120] sm:$0xff]
      %v2392 = vld [vmem:[%s2354 + $0x128] sm:$0xff]
      %v2393 = vld [vmem:[%s2354 + $0x130] sm:$0xff]
      %v2394 = vld [vmem:[%s2354 + $0x138] sm:$0xff]
      %v2395 = vld [vmem:[%s2354 + $0x140] sm:$0xff]
      %v2396 = vld [vmem:[%s2354 + $0x148] sm:$0xff]
      %v2397 = vld [vmem:[%s2354 + $0x150] sm:$0xff]
      %v2398 = vld [vmem:[%s2354 + $0x158] sm:$0xff]
      %v2399 = vld [vmem:[%s2354 + $0x160] sm:$0xff]
      %v2400 = vld [vmem:[%s2354 + $0x168] sm:$0xff]
      %v2401 = vld [vmem:[%s2354 + $0x170] sm:$0xff]
      %v2402 = vld [vmem:[%s2354 + $0x178] sm:$0xff]
      %v2403 = vld [vmem:[%s2354 + $0x180] sm:$0xff]
      %v2404 = vld [vmem:[%s2354 + $0x188] sm:$0xff]
      %v2405 = vld [vmem:[%s2354 + $0x190] sm:$0xff]
      %v2406 = vld [vmem:[%s2354 + $0x198] sm:$0xff]
      %v2407 = vld [vmem:[%s2354 + $0x1a0] sm:$0xff]
      %v2408 = vld [vmem:[%s2354 + $0x1a8] sm:$0xff]
      %v2409 = vld [vmem:[%s2354 + $0x1b0] sm:$0xff]
      %v2410 = vld [vmem:[%s2354 + $0x1b8] sm:$0xff]
      %v2411 = vld [vmem:[%s2354 + $0x1c0] sm:$0xff]
      %v2412 = vld [vmem:[%s2354 + $0x1c8] sm:$0xff]
      %v2413 = vld [vmem:[%s2354 + $0x1d0] sm:$0xff]
      %v2414 = vld [vmem:[%s2354 + $0x1d8] sm:$0xff]
      %v2415 = vld [vmem:[%s2354 + $0x1e0] sm:$0xff]
      %v2416 = vld [vmem:[%s2354 + $0x1e8] sm:$0xff]
      %v2417 = vld [vmem:[%s2354 + $0x1f0] sm:$0xff]
      %v2418 = vld [vmem:[%s2354 + $0x1f8] sm:$0xff]
      %v2419 = vrot.slane %v2059, 3
      %v2420 = vrot.slane %v2061, 3
      %v2421 = vsel %vm511, %v2419, %v2420
      %v2422 = vrot.slane %v2060, 3
      %v2423 = vrot.slane %v2062, 3
      %v2424 = vsel %vm511, %v2422, %v2423
      %2427 = vmatprep.subr.mxu0 %v2356
      %2428 = vmatpush1.msra.mxu0 %v2355
      %2429 = vmatprep.subr.mxu0 %v2358
      %2430 = vmatpush1.msra.mxu0 %v2357
      %2431 = vmatprep.subr.mxu0 %v2360
      %2432 = vmatpush1.msra.mxu0 %v2359
      %2433 = vmatprep.subr.mxu0 %v2362
      %2434 = vmatpush1.msra.mxu0 %v2361
      %2435 = vmatprep.subr.mxu0 %v2364
      %2436 = vmatpush1.msra.mxu0 %v2363
      %2437 = vmatprep.subr.mxu0 %v2366
      %2438 = vmatpush1.msra.mxu0 %v2365
      %2439 = vmatprep.subr.mxu0 %v2368
      %2440 = vmatpush1.msra.mxu0 %v2367
      %2441 = vmatprep.subr.mxu0 %v2370
      %2442 = vmatpush1.msra.mxu0 %v2369
      %2443 = vmatprep.subr.mxu0 %v2372
      %2444 = vmatpush1.msra.mxu0 %v2371
      %2445 = vmatprep.subr.mxu0 %v2374
      %2446 = vmatpush1.msra.mxu0 %v2373
      %2447 = vmatprep.subr.mxu0 %v2376
      %2448 = vmatpush1.msra.mxu0 %v2375
      %2449 = vmatprep.subr.mxu0 %v2378
      %2450 = vmatpush1.msra.mxu0 %v2377
      %2451 = vmatprep.subr.mxu0 %v2380
      %2452 = vmatpush1.msra.mxu0 %v2379
      %2453 = vmatprep.subr.mxu0 %v2382
      %2454 = vmatpush1.msra.mxu0 %v2381
      %2455 = vmatprep.subr.mxu0 %v2384
      %2456 = vmatpush1.msra.mxu0 %v2383
      %2457 = vmatprep.subr.mxu0 %v2386
      %2458 = vmatpush1.msra.mxu0 %v2385
      %2459 = vmatprep.subr.mxu0 %v2388
      %2460 = vmatpush1.msra.mxu0 %v2387
      %2461 = vmatprep.subr.mxu0 %v2390
      %2462 = vmatpush1.msra.mxu0 %v2389
      %2463 = vmatprep.subr.mxu0 %v2392
      %2464 = vmatpush1.msra.mxu0 %v2391
      %2465 = vmatprep.subr.mxu0 %v2394
      %2466 = vmatpush1.msra.mxu0 %v2393
      %2467 = vmatprep.subr.mxu0 %v2396
      %2468 = vmatpush1.msra.mxu0 %v2395
      %2469 = vmatprep.subr.mxu0 %v2398
      %2470 = vmatpush1.msra.mxu0 %v2397
      %2471 = vmatprep.subr.mxu0 %v2400
      %2472 = vmatpush1.msra.mxu0 %v2399
      %2473 = vmatprep.subr.mxu0 %v2402
      %2474 = vmatpush1.msra.mxu0 %v2401
      %2475 = vmatprep.subr.mxu0 %v2404
      %2476 = vmatpush1.msra.mxu0 %v2403
      %2477 = vmatprep.subr.mxu0 %v2406
      %2478 = vmatpush1.msra.mxu0 %v2405
      %2479 = vmatprep.subr.mxu0 %v2408
      %2480 = vmatpush1.msra.mxu0 %v2407
      %2481 = vmatprep.subr.mxu0 %v2410
      %2482 = vmatpush1.msra.mxu0 %v2409
      %2483 = vmatprep.subr.mxu0 %v2412
      %2484 = vmatpush1.msra.mxu0 %v2411
      %2485 = vmatprep.subr.mxu0 %v2414
      %2486 = vmatpush1.msra.mxu0 %v2413
      %2487 = vmatprep.subr.mxu0 %v2416
      %2488 = vmatpush1.msra.mxu0 %v2415
      %2489 = vmatprep.subr.mxu0 %v2418
      %2490 = vmatpush1.msra.mxu0 %v2417
      %2491 = vmatprep.mubr.f32.mxu0 %v2424
      %2492 = vmatmul.mubr.f32.gmra.mrb[0].mxu0 %v2421
      %v2493 = vpop.f32.mrb[0].mxu0
      %v2494 = vadd.f32 0.0, %v2493
      %v2495 = vpop.f32.mrb[0].mxu0
      %v2496 = vadd.f32 0.0, %v2495
      %2497 = vdwg.mxu0
      %v2498 = vadd.f32 %v2350, %v2494
      %v2499 = vadd.f32 %v2352, %v2496
      %s2500 = scalar_lea.vmem %s4, 1536
      %v2501 = vld [vmem:[%s2500] sm:$0xff]
      %v2502 = vld [vmem:[%s2500 + $0x8] sm:$0xff]
      %v2503 = vld [vmem:[%s2500 + $0x10] sm:$0xff]
      %v2504 = vld [vmem:[%s2500 + $0x18] sm:$0xff]
      %v2505 = vld [vmem:[%s2500 + $0x20] sm:$0xff]
      %v2506 = vld [vmem:[%s2500 + $0x28] sm:$0xff]
      %v2507 = vld [vmem:[%s2500 + $0x30] sm:$0xff]
      %v2508 = vld [vmem:[%s2500 + $0x38] sm:$0xff]
      %v2509 = vld [vmem:[%s2500 + $0x40] sm:$0xff]
      %v2510 = vld [vmem:[%s2500 + $0x48] sm:$0xff]
      %v2511 = vld [vmem:[%s2500 + $0x50] sm:$0xff]
      %v2512 = vld [vmem:[%s2500 + $0x58] sm:$0xff]
      %v2513 = vld [vmem:[%s2500 + $0x60] sm:$0xff]
      %v2514 = vld [vmem:[%s2500 + $0x68] sm:$0xff]
      %v2515 = vld [vmem:[%s2500 + $0x70] sm:$0xff]
      %v2516 = vld [vmem:[%s2500 + $0x78] sm:$0xff]
      %v2517 = vld [vmem:[%s2500 + $0x80] sm:$0xff]
      %v2518 = vld [vmem:[%s2500 + $0x88] sm:$0xff]
      %v2519 = vld [vmem:[%s2500 + $0x90] sm:$0xff]
      %v2520 = vld [vmem:[%s2500 + $0x98] sm:$0xff]
      %v2521 = vld [vmem:[%s2500 + $0xa0] sm:$0xff]
      %v2522 = vld [vmem:[%s2500 + $0xa8] sm:$0xff]
      %v2523 = vld [vmem:[%s2500 + $0xb0] sm:$0xff]
      %v2524 = vld [vmem:[%s2500 + $0xb8] sm:$0xff]
      %v2525 = vld [vmem:[%s2500 + $0xc0] sm:$0xff]
      %v2526 = vld [vmem:[%s2500 + $0xc8] sm:$0xff]
      %v2527 = vld [vmem:[%s2500 + $0xd0] sm:$0xff]
      %v2528 = vld [vmem:[%s2500 + $0xd8] sm:$0xff]
      %v2529 = vld [vmem:[%s2500 + $0xe0] sm:$0xff]
      %v2530 = vld [vmem:[%s2500 + $0xe8] sm:$0xff]
      %v2531 = vld [vmem:[%s2500 + $0xf0] sm:$0xff]
      %v2532 = vld [vmem:[%s2500 + $0xf8] sm:$0xff]
      %v2533 = vld [vmem:[%s2500 + $0x100] sm:$0xff]
      %v2534 = vld [vmem:[%s2500 + $0x108] sm:$0xff]
      %v2535 = vld [vmem:[%s2500 + $0x110] sm:$0xff]
      %v2536 = vld [vmem:[%s2500 + $0x118] sm:$0xff]
      %v2537 = vld [vmem:[%s2500 + $0x120] sm:$0xff]
      %v2538 = vld [vmem:[%s2500 + $0x128] sm:$0xff]
      %v2539 = vld [vmem:[%s2500 + $0x130] sm:$0xff]
      %v2540 = vld [vmem:[%s2500 + $0x138] sm:$0xff]
      %v2541 = vld [vmem:[%s2500 + $0x140] sm:$0xff]
      %v2542 = vld [vmem:[%s2500 + $0x148] sm:$0xff]
      %v2543 = vld [vmem:[%s2500 + $0x150] sm:$0xff]
      %v2544 = vld [vmem:[%s2500 + $0x158] sm:$0xff]
      %v2545 = vld [vmem:[%s2500 + $0x160] sm:$0xff]
      %v2546 = vld [vmem:[%s2500 + $0x168] sm:$0xff]
      %v2547 = vld [vmem:[%s2500 + $0x170] sm:$0xff]
      %v2548 = vld [vmem:[%s2500 + $0x178] sm:$0xff]
      %v2549 = vld [vmem:[%s2500 + $0x180] sm:$0xff]
      %v2550 = vld [vmem:[%s2500 + $0x188] sm:$0xff]
      %v2551 = vld [vmem:[%s2500 + $0x190] sm:$0xff]
      %v2552 = vld [vmem:[%s2500 + $0x198] sm:$0xff]
      %v2553 = vld [vmem:[%s2500 + $0x1a0] sm:$0xff]
      %v2554 = vld [vmem:[%s2500 + $0x1a8] sm:$0xff]
      %v2555 = vld [vmem:[%s2500 + $0x1b0] sm:$0xff]
      %v2556 = vld [vmem:[%s2500 + $0x1b8] sm:$0xff]
      %v2557 = vld [vmem:[%s2500 + $0x1c0] sm:$0xff]
      %v2558 = vld [vmem:[%s2500 + $0x1c8] sm:$0xff]
      %v2559 = vld [vmem:[%s2500 + $0x1d0] sm:$0xff]
      %v2560 = vld [vmem:[%s2500 + $0x1d8] sm:$0xff]
      %v2561 = vld [vmem:[%s2500 + $0x1e0] sm:$0xff]
      %v2562 = vld [vmem:[%s2500 + $0x1e8] sm:$0xff]
      %v2563 = vld [vmem:[%s2500 + $0x1f0] sm:$0xff]
      %v2564 = vld [vmem:[%s2500 + $0x1f8] sm:$0xff]
      %v2565 = vrot.slane %v2059, 4
      %v2566 = vrot.slane %v2061, 4
      %v2567 = vsel %vm736, %v2565, %v2566
      %v2568 = vrot.slane %v2060, 4
      %v2569 = vrot.slane %v2062, 4
      %v2570 = vsel %vm736, %v2568, %v2569
      %2573 = vmatprep.subr.mxu0 %v2502
      %2574 = vmatpush1.msra.mxu0 %v2501
      %2575 = vmatprep.subr.mxu0 %v2504
      %2576 = vmatpush1.msra.mxu0 %v2503
      %2577 = vmatprep.subr.mxu0 %v2506
      %2578 = vmatpush1.msra.mxu0 %v2505
      %2579 = vmatprep.subr.mxu0 %v2508
      %2580 = vmatpush1.msra.mxu0 %v2507
      %2581 = vmatprep.subr.mxu0 %v2510
      %2582 = vmatpush1.msra.mxu0 %v2509
      %2583 = vmatprep.subr.mxu0 %v2512
      %2584 = vmatpush1.msra.mxu0 %v2511
      %2585 = vmatprep.subr.mxu0 %v2514
      %2586 = vmatpush1.msra.mxu0 %v2513
      %2587 = vmatprep.subr.mxu0 %v2516
      %2588 = vmatpush1.msra.mxu0 %v2515
      %2589 = vmatprep.subr.mxu0 %v2518
      %2590 = vmatpush1.msra.mxu0 %v2517
      %2591 = vmatprep.subr.mxu0 %v2520
      %2592 = vmatpush1.msra.mxu0 %v2519
      %2593 = vmatprep.subr.mxu0 %v2522
      %2594 = vmatpush1.msra.mxu0 %v2521
      %2595 = vmatprep.subr.mxu0 %v2524
      %2596 = vmatpush1.msra.mxu0 %v2523
      %2597 = vmatprep.subr.mxu0 %v2526
      %2598 = vmatpush1.msra.mxu0 %v2525
      %2599 = vmatprep.subr.mxu0 %v2528
      %2600 = vmatpush1.msra.mxu0 %v2527
      %2601 = vmatprep.subr.mxu0 %v2530
      %2602 = vmatpush1.msra.mxu0 %v2529
      %2603 = vmatprep.subr.mxu0 %v2532
      %2604 = vmatpush1.msra.mxu0 %v2531
      %2605 = vmatprep.subr.mxu0 %v2534
      %2606 = vmatpush1.msra.mxu0 %v2533
      %2607 = vmatprep.subr.mxu0 %v2536
      %2608 = vmatpush1.msra.mxu0 %v2535
      %2609 = vmatprep.subr.mxu0 %v2538
      %2610 = vmatpush1.msra.mxu0 %v2537
      %2611 = vmatprep.subr.mxu0 %v2540
      %2612 = vmatpush1.msra.mxu0 %v2539
      %2613 = vmatprep.subr.mxu0 %v2542
      %2614 = vmatpush1.msra.mxu0 %v2541
      %2615 = vmatprep.subr.mxu0 %v2544
      %2616 = vmatpush1.msra.mxu0 %v2543
      %2617 = vmatprep.subr.mxu0 %v2546
      %2618 = vmatpush1.msra.mxu0 %v2545
      %2619 = vmatprep.subr.mxu0 %v2548
      %2620 = vmatpush1.msra.mxu0 %v2547
      %2621 = vmatprep.subr.mxu0 %v2550
      %2622 = vmatpush1.msra.mxu0 %v2549
      %2623 = vmatprep.subr.mxu0 %v2552
      %2624 = vmatpush1.msra.mxu0 %v2551
      %2625 = vmatprep.subr.mxu0 %v2554
      %2626 = vmatpush1.msra.mxu0 %v2553
      %2627 = vmatprep.subr.mxu0 %v2556
      %2628 = vmatpush1.msra.mxu0 %v2555
      %2629 = vmatprep.subr.mxu0 %v2558
      %2630 = vmatpush1.msra.mxu0 %v2557
      %2631 = vmatprep.subr.mxu0 %v2560
      %2632 = vmatpush1.msra.mxu0 %v2559
      %2633 = vmatprep.subr.mxu0 %v2562
      %2634 = vmatpush1.msra.mxu0 %v2561
      %2635 = vmatprep.subr.mxu0 %v2564
      %2636 = vmatpush1.msra.mxu0 %v2563
      %2637 = vmatprep.mubr.f32.mxu0 %v2570
      %2638 = vmatmul.mubr.f32.gmra.mrb[0].mxu0 %v2567
      %v2639 = vpop.f32.mrb[0].mxu0
      %v2640 = vadd.f32 0.0, %v2639
      %v2641 = vpop.f32.mrb[0].mxu0
      %v2642 = vadd.f32 0.0, %v2641
      %2643 = vdwg.mxu0
      %v2644 = vadd.f32 %v2498, %v2640
      %v2645 = vadd.f32 %v2499, %v2642
      %s2646 = scalar_lea.vmem %s4, 2048
      %v2647 = vld [vmem:[%s2646] sm:$0xff]
      %v2648 = vld [vmem:[%s2646 + $0x8] sm:$0xff]
      %v2649 = vld [vmem:[%s2646 + $0x10] sm:$0xff]
      %v2650 = vld [vmem:[%s2646 + $0x18] sm:$0xff]
      %v2651 = vld [vmem:[%s2646 + $0x20] sm:$0xff]
      %v2652 = vld [vmem:[%s2646 + $0x28] sm:$0xff]
      %v2653 = vld [vmem:[%s2646 + $0x30] sm:$0xff]
      %v2654 = vld [vmem:[%s2646 + $0x38] sm:$0xff]
      %v2655 = vld [vmem:[%s2646 + $0x40] sm:$0xff]
      %v2656 = vld [vmem:[%s2646 + $0x48] sm:$0xff]
      %v2657 = vld [vmem:[%s2646 + $0x50] sm:$0xff]
      %v2658 = vld [vmem:[%s2646 + $0x58] sm:$0xff]
      %v2659 = vld [vmem:[%s2646 + $0x60] sm:$0xff]
      %v2660 = vld [vmem:[%s2646 + $0x68] sm:$0xff]
      %v2661 = vld [vmem:[%s2646 + $0x70] sm:$0xff]
      %v2662 = vld [vmem:[%s2646 + $0x78] sm:$0xff]
      %v2663 = vld [vmem:[%s2646 + $0x80] sm:$0xff]
      %v2664 = vld [vmem:[%s2646 + $0x88] sm:$0xff]
      %v2665 = vld [vmem:[%s2646 + $0x90] sm:$0xff]
      %v2666 = vld [vmem:[%s2646 + $0x98] sm:$0xff]
      %v2667 = vld [vmem:[%s2646 + $0xa0] sm:$0xff]
      %v2668 = vld [vmem:[%s2646 + $0xa8] sm:$0xff]
      %v2669 = vld [vmem:[%s2646 + $0xb0] sm:$0xff]
      %v2670 = vld [vmem:[%s2646 + $0xb8] sm:$0xff]
      %v2671 = vld [vmem:[%s2646 + $0xc0] sm:$0xff]
      %v2672 = vld [vmem:[%s2646 + $0xc8] sm:$0xff]
      %v2673 = vld [vmem:[%s2646 + $0xd0] sm:$0xff]
      %v2674 = vld [vmem:[%s2646 + $0xd8] sm:$0xff]
      %v2675 = vld [vmem:[%s2646 + $0xe0] sm:$0xff]
      %v2676 = vld [vmem:[%s2646 + $0xe8] sm:$0xff]
      %v2677 = vld [vmem:[%s2646 + $0xf0] sm:$0xff]
      %v2678 = vld [vmem:[%s2646 + $0xf8] sm:$0xff]
      %v2679 = vld [vmem:[%s2646 + $0x100] sm:$0xff]
      %v2680 = vld [vmem:[%s2646 + $0x108] sm:$0xff]
      %v2681 = vld [vmem:[%s2646 + $0x110] sm:$0xff]
      %v2682 = vld [vmem:[%s2646 + $0x118] sm:$0xff]
      %v2683 = vld [vmem:[%s2646 + $0x120] sm:$0xff]
      %v2684 = vld [vmem:[%s2646 + $0x128] sm:$0xff]
      %v2685 = vld [vmem:[%s2646 + $0x130] sm:$0xff]
      %v2686 = vld [vmem:[%s2646 + $0x138] sm:$0xff]
      %v2687 = vld [vmem:[%s2646 + $0x140] sm:$0xff]
      %v2688 = vld [vmem:[%s2646 + $0x148] sm:$0xff]
      %v2689 = vld [vmem:[%s2646 + $0x150] sm:$0xff]
      %v2690 = vld [vmem:[%s2646 + $0x158] sm:$0xff]
      %v2691 = vld [vmem:[%s2646 + $0x160] sm:$0xff]
      %v2692 = vld [vmem:[%s2646 + $0x168] sm:$0xff]
      %v2693 = vld [vmem:[%s2646 + $0x170] sm:$0xff]
      %v2694 = vld [vmem:[%s2646 + $0x178] sm:$0xff]
      %v2695 = vld [vmem:[%s2646 + $0x180] sm:$0xff]
      %v2696 = vld [vmem:[%s2646 + $0x188] sm:$0xff]
      %v2697 = vld [vmem:[%s2646 + $0x190] sm:$0xff]
      %v2698 = vld [vmem:[%s2646 + $0x198] sm:$0xff]
      %v2699 = vld [vmem:[%s2646 + $0x1a0] sm:$0xff]
      %v2700 = vld [vmem:[%s2646 + $0x1a8] sm:$0xff]
      %v2701 = vld [vmem:[%s2646 + $0x1b0] sm:$0xff]
      %v2702 = vld [vmem:[%s2646 + $0x1b8] sm:$0xff]
      %v2703 = vld [vmem:[%s2646 + $0x1c0] sm:$0xff]
      %v2704 = vld [vmem:[%s2646 + $0x1c8] sm:$0xff]
      %v2705 = vld [vmem:[%s2646 + $0x1d0] sm:$0xff]
      %v2706 = vld [vmem:[%s2646 + $0x1d8] sm:$0xff]
      %v2707 = vld [vmem:[%s2646 + $0x1e0] sm:$0xff]
      %v2708 = vld [vmem:[%s2646 + $0x1e8] sm:$0xff]
      %v2709 = vld [vmem:[%s2646 + $0x1f0] sm:$0xff]
      %v2710 = vld [vmem:[%s2646 + $0x1f8] sm:$0xff]
      %v2711 = vrot.slane %v2059, 5
      %v2712 = vrot.slane %v2061, 5
      %v2713 = vsel %vm1965, %v2711, %v2712
      %v2714 = vrot.slane %v2060, 5
      %v2715 = vrot.slane %v2062, 5
      %v2716 = vsel %vm1965, %v2714, %v2715
      %2719 = vmatprep.subr.mxu0 %v2648
      %2720 = vmatpush1.msra.mxu0 %v2647
      %2721 = vmatprep.subr.mxu0 %v2650
      %2722 = vmatpush1.msra.mxu0 %v2649
      %2723 = vmatprep.subr.mxu0 %v2652
      %2724 = vmatpush1.msra.mxu0 %v2651
      %2725 = vmatprep.subr.mxu0 %v2654
      %2726 = vmatpush1.msra.mxu0 %v2653
      %2727 = vmatprep.subr.mxu0 %v2656
      %2728 = vmatpush1.msra.mxu0 %v2655
      %2729 = vmatprep.subr.mxu0 %v2658
      %2730 = vmatpush1.msra.mxu0 %v2657
      %2731 = vmatprep.subr.mxu0 %v2660
      %2732 = vmatpush1.msra.mxu0 %v2659
      %2733 = vmatprep.subr.mxu0 %v2662
      %2734 = vmatpush1.msra.mxu0 %v2661
      %2735 = vmatprep.subr.mxu0 %v2664
      %2736 = vmatpush1.msra.mxu0 %v2663
      %2737 = vmatprep.subr.mxu0 %v2666
      %2738 = vmatpush1.msra.mxu0 %v2665
      %2739 = vmatprep.subr.mxu0 %v2668
      %2740 = vmatpush1.msra.mxu0 %v2667
      %2741 = vmatprep.subr.mxu0 %v2670
      %2742 = vmatpush1.msra.mxu0 %v2669
      %2743 = vmatprep.subr.mxu0 %v2672
      %2744 = vmatpush1.msra.mxu0 %v2671
      %2745 = vmatprep.subr.mxu0 %v2674
      %2746 = vmatpush1.msra.mxu0 %v2673
      %2747 = vmatprep.subr.mxu0 %v2676
      %2748 = vmatpush1.msra.mxu0 %v2675
      %2749 = vmatprep.subr.mxu0 %v2678
      %2750 = vmatpush1.msra.mxu0 %v2677
      %2751 = vmatprep.subr.mxu0 %v2680
      %2752 = vmatpush1.msra.mxu0 %v2679
      %2753 = vmatprep.subr.mxu0 %v2682
      %2754 = vmatpush1.msra.mxu0 %v2681
      %2755 = vmatprep.subr.mxu0 %v2684
      %2756 = vmatpush1.msra.mxu0 %v2683
      %2757 = vmatprep.subr.mxu0 %v2686
      %2758 = vmatpush1.msra.mxu0 %v2685
      %2759 = vmatprep.subr.mxu0 %v2688
      %2760 = vmatpush1.msra.mxu0 %v2687
      %2761 = vmatprep.subr.mxu0 %v2690
      %2762 = vmatpush1.msra.mxu0 %v2689
      %2763 = vmatprep.subr.mxu0 %v2692
      %2764 = vmatpush1.msra.mxu0 %v2691
      %2765 = vmatprep.subr.mxu0 %v2694
      %2766 = vmatpush1.msra.mxu0 %v2693
      %2767 = vmatprep.subr.mxu0 %v2696
      %2768 = vmatpush1.msra.mxu0 %v2695
      %2769 = vmatprep.subr.mxu0 %v2698
      %2770 = vmatpush1.msra.mxu0 %v2697
      %2771 = vmatprep.subr.mxu0 %v2700
      %2772 = vmatpush1.msra.mxu0 %v2699
      %2773 = vmatprep.subr.mxu0 %v2702
      %2774 = vmatpush1.msra.mxu0 %v2701
      %2775 = vmatprep.subr.mxu0 %v2704
      %2776 = vmatpush1.msra.mxu0 %v2703
      %2777 = vmatprep.subr.mxu0 %v2706
      %2778 = vmatpush1.msra.mxu0 %v2705
      %2779 = vmatprep.subr.mxu0 %v2708
      %2780 = vmatpush1.msra.mxu0 %v2707
      %2781 = vmatprep.subr.mxu0 %v2710
      %2782 = vmatpush1.msra.mxu0 %v2709
      %2783 = vmatprep.mubr.f32.mxu0 %v2716
      %2784 = vmatmul.mubr.f32.gmra.mrb[0].mxu0 %v2713
      %v2785 = vpop.f32.mrb[0].mxu0
      %v2786 = vadd.f32 0.0, %v2785
      %v2787 = vpop.f32.mrb[0].mxu0
      %v2788 = vadd.f32 0.0, %v2787
      %2789 = vdwg.mxu0
      %v2790 = vadd.f32 %v2644, %v2786
      %v2791 = vadd.f32 %v2645, %v2788
      %2792 = vmatprep.subr.mxu0 %v311
      %2793 = vmatpush1.msra.mxu0 %v310
      %2794 = vmatprep.subr.mxu0 %v313
      %2795 = vmatpush1.msra.mxu0 %v312
      %2796 = vmatprep.subr.mxu0 %v315
      %2797 = vmatpush1.msra.mxu0 %v314
      %2798 = vmatprep.subr.mxu0 %v317
      %2799 = vmatpush1.msra.mxu0 %v316
      %2800 = vmatprep.subr.mxu0 %v319
      %2801 = vmatpush1.msra.mxu0 %v318
      %2802 = vmatprep.subr.mxu0 %v321
      %2803 = vmatpush1.msra.mxu0 %v320
      %2804 = vmatprep.subr.mxu0 %v323
      %2805 = vmatpush1.msra.mxu0 %v322
      %2806 = vmatprep.subr.mxu0 %v325
      %2807 = vmatpush1.msra.mxu0 %v324
      %2808 = vmatprep.subr.mxu0 %v327
      %2809 = vmatpush1.msra.mxu0 %v326
      %2810 = vmatprep.subr.mxu0 %v329
      %2811 = vmatpush1.msra.mxu0 %v328
      %2812 = vmatprep.subr.mxu0 %v331
      %2813 = vmatpush1.msra.mxu0 %v330
      %2814 = vmatprep.subr.mxu0 %v333
      %2815 = vmatpush1.msra.mxu0 %v332
      %2816 = vmatprep.subr.mxu0 %v335
      %2817 = vmatpush1.msra.mxu0 %v334
      %2818 = vmatprep.subr.mxu0 %v337
      %2819 = vmatpush1.msra.mxu0 %v336
      %2820 = vmatprep.subr.mxu0 %v339
      %2821 = vmatpush1.msra.mxu0 %v338
      %2822 = vmatprep.subr.mxu0 %v341
      %2823 = vmatpush1.msra.mxu0 %v340
      %2824 = vmatprep.subr.mxu0 %v343
      %2825 = vmatpush1.msra.mxu0 %v342
      %2826 = vmatprep.subr.mxu0 %v345
      %2827 = vmatpush1.msra.mxu0 %v344
      %2828 = vmatprep.subr.mxu0 %v347
      %2829 = vmatpush1.msra.mxu0 %v346
      %2830 = vmatprep.subr.mxu0 %v349
      %2831 = vmatpush1.msra.mxu0 %v348
      %2832 = vmatprep.subr.mxu0 %v351
      %2833 = vmatpush1.msra.mxu0 %v350
      %2834 = vmatprep.subr.mxu0 %v353
      %2835 = vmatpush1.msra.mxu0 %v352
      %2836 = vmatprep.subr.mxu0 %v355
      %2837 = vmatpush1.msra.mxu0 %v354
      %2838 = vmatprep.subr.mxu0 %v357
      %2839 = vmatpush1.msra.mxu0 %v356
      %2840 = vmatprep.subr.mxu0 %v359
      %2841 = vmatpush1.msra.mxu0 %v358
      %2842 = vmatprep.subr.mxu0 %v361
      %2843 = vmatpush1.msra.mxu0 %v360
      %2844 = vmatprep.subr.mxu0 %v363
      %2845 = vmatpush1.msra.mxu0 %v362
      %2846 = vmatprep.subr.mxu0 %v365
      %2847 = vmatpush1.msra.mxu0 %v364
      %2848 = vmatprep.subr.mxu0 %v367
      %2849 = vmatpush1.msra.mxu0 %v366
      %2850 = vmatprep.subr.mxu0 %v369
      %2851 = vmatpush1.msra.mxu0 %v368
      %2852 = vmatprep.subr.mxu0 %v371
      %2853 = vmatpush1.msra.mxu0 %v370
      %2854 = vmatprep.subr.mxu0 %v373
      %2855 = vmatpush1.msra.mxu0 %v372
      %2856 = vmatprep.mubr.f32.mxu0 %v1343
      %2857 = vmatmul.mubr.f32.gmra.mrb[0].mxu0 %v1342
      %v2858 = vpop.f32.mrb[0].mxu0
      %v2859 = vadd.f32 0.0, %v2858
      %v2860 = vpop.f32.mrb[0].mxu0
      %v2861 = vadd.f32 0.0, %v2860
      %2862 = vdwg.mxu0
      %v2863 = vadd.f32 %v2790, %v2859
      %v2864 = vadd.f32 %v2791, %v2861
      %v2865 = vld [vmem:[%s5] sm:$0xff]
      %v2866 = vld [vmem:[%s5 + $0x8] sm:$0xff]
      %v2867 = vld [vmem:[%s5 + $0x10] sm:$0xff]
      %v2868 = vld [vmem:[%s5 + $0x18] sm:$0xff]
      %v2869 = vld [vmem:[%s5 + $0x20] sm:$0xff]
      %v2870 = vld [vmem:[%s5 + $0x28] sm:$0xff]
      %v2871 = vld [vmem:[%s5 + $0x30] sm:$0xff]
      %v2872 = vld [vmem:[%s5 + $0x38] sm:$0xff]
      %v2873 = vld [vmem:[%s5 + $0x40] sm:$0xff]
      %v2874 = vld [vmem:[%s5 + $0x48] sm:$0xff]
      %v2875 = vld [vmem:[%s5 + $0x50] sm:$0xff]
      %v2876 = vld [vmem:[%s5 + $0x58] sm:$0xff]
      %v2877 = vld [vmem:[%s5 + $0x60] sm:$0xff]
      %v2878 = vld [vmem:[%s5 + $0x68] sm:$0xff]
      %v2879 = vld [vmem:[%s5 + $0x70] sm:$0xff]
      %v2880 = vld [vmem:[%s5 + $0x78] sm:$0xff]
      %v2881 = vld [vmem:[%s5 + $0x80] sm:$0xff]
      %v2882 = vld [vmem:[%s5 + $0x88] sm:$0xff]
      %v2883 = vld [vmem:[%s5 + $0x90] sm:$0xff]
      %v2884 = vld [vmem:[%s5 + $0x98] sm:$0xff]
      %v2885 = vld [vmem:[%s5 + $0xa0] sm:$0xff]
      %v2886 = vld [vmem:[%s5 + $0xa8] sm:$0xff]
      %v2887 = vld [vmem:[%s5 + $0xb0] sm:$0xff]
      %v2888 = vld [vmem:[%s5 + $0xb8] sm:$0xff]
      %v2889 = vld [vmem:[%s5 + $0xc0] sm:$0xff]
      %v2890 = vld [vmem:[%s5 + $0xc8] sm:$0xff]
      %v2891 = vld [vmem:[%s5 + $0xd0] sm:$0xff]
      %v2892 = vld [vmem:[%s5 + $0xd8] sm:$0xff]
      %v2893 = vld [vmem:[%s5 + $0xe0] sm:$0xff]
      %v2894 = vld [vmem:[%s5 + $0xe8] sm:$0xff]
      %v2895 = vld [vmem:[%s5 + $0xf0] sm:$0xff]
      %v2896 = vld [vmem:[%s5 + $0xf8] sm:$0xff]
      %v2897 = vld [vmem:[%s5 + $0x100] sm:$0xff]
      %v2898 = vld [vmem:[%s5 + $0x108] sm:$0xff]
      %v2899 = vld [vmem:[%s5 + $0x110] sm:$0xff]
      %v2900 = vld [vmem:[%s5 + $0x118] sm:$0xff]
      %v2901 = vld [vmem:[%s5 + $0x120] sm:$0xff]
      %v2902 = vld [vmem:[%s5 + $0x128] sm:$0xff]
      %v2903 = vld [vmem:[%s5 + $0x130] sm:$0xff]
      %v2904 = vld [vmem:[%s5 + $0x138] sm:$0xff]
      %v2905 = vld [vmem:[%s5 + $0x140] sm:$0xff]
      %v2906 = vld [vmem:[%s5 + $0x148] sm:$0xff]
      %v2907 = vld [vmem:[%s5 + $0x150] sm:$0xff]
      %v2908 = vld [vmem:[%s5 + $0x158] sm:$0xff]
      %v2909 = vld [vmem:[%s5 + $0x160] sm:$0xff]
      %v2910 = vld [vmem:[%s5 + $0x168] sm:$0xff]
      %v2911 = vld [vmem:[%s5 + $0x170] sm:$0xff]
      %v2912 = vld [vmem:[%s5 + $0x178] sm:$0xff]
      %v2913 = vld [vmem:[%s5 + $0x180] sm:$0xff]
      %v2914 = vld [vmem:[%s5 + $0x188] sm:$0xff]
      %v2915 = vld [vmem:[%s5 + $0x190] sm:$0xff]
      %v2916 = vld [vmem:[%s5 + $0x198] sm:$0xff]
      %v2917 = vld [vmem:[%s5 + $0x1a0] sm:$0xff]
      %v2918 = vld [vmem:[%s5 + $0x1a8] sm:$0xff]
      %v2919 = vld [vmem:[%s5 + $0x1b0] sm:$0xff]
      %v2920 = vld [vmem:[%s5 + $0x1b8] sm:$0xff]
      %v2921 = vld [vmem:[%s5 + $0x1c0] sm:$0xff]
      %v2922 = vld [vmem:[%s5 + $0x1c8] sm:$0xff]
      %v2923 = vld [vmem:[%s5 + $0x1d0] sm:$0xff]
      %v2924 = vld [vmem:[%s5 + $0x1d8] sm:$0xff]
      %v2925 = vld [vmem:[%s5 + $0x1e0] sm:$0xff]
      %v2926 = vld [vmem:[%s5 + $0x1e8] sm:$0xff]
      %v2927 = vld [vmem:[%s5 + $0x1f0] sm:$0xff]
      %v2928 = vld [vmem:[%s5 + $0x1f8] sm:$0xff]
      %s2929 = scalar_lea.vmem %s5, 512
      %v2930 = vld [vmem:[%s2929] sm:$0xff]
      %v2931 = vld [vmem:[%s2929 + $0x8] sm:$0xff]
      %v2932 = vld [vmem:[%s2929 + $0x10] sm:$0xff]
      %v2933 = vld [vmem:[%s2929 + $0x18] sm:$0xff]
      %v2934 = vld [vmem:[%s2929 + $0x20] sm:$0xff]
      %v2935 = vld [vmem:[%s2929 + $0x28] sm:$0xff]
      %v2936 = vld [vmem:[%s2929 + $0x30] sm:$0xff]
      %v2937 = vld [vmem:[%s2929 + $0x38] sm:$0xff]
      %v2938 = vld [vmem:[%s2929 + $0x40] sm:$0xff]
      %v2939 = vld [vmem:[%s2929 + $0x48] sm:$0xff]
      %v2940 = vld [vmem:[%s2929 + $0x50] sm:$0xff]
      %v2941 = vld [vmem:[%s2929 + $0x58] sm:$0xff]
      %v2942 = vld [vmem:[%s2929 + $0x60] sm:$0xff]
      %v2943 = vld [vmem:[%s2929 + $0x68] sm:$0xff]
      %v2944 = vld [vmem:[%s2929 + $0x70] sm:$0xff]
      %v2945 = vld [vmem:[%s2929 + $0x78] sm:$0xff]
      %v2946 = vld [vmem:[%s2929 + $0x80] sm:$0xff]
      %v2947 = vld [vmem:[%s2929 + $0x88] sm:$0xff]
      %v2948 = vld [vmem:[%s2929 + $0x90] sm:$0xff]
      %v2949 = vld [vmem:[%s2929 + $0x98] sm:$0xff]
      %v2950 = vld [vmem:[%s2929 + $0xa0] sm:$0xff]
      %v2951 = vld [vmem:[%s2929 + $0xa8] sm:$0xff]
      %v2952 = vld [vmem:[%s2929 + $0xb0] sm:$0xff]
      %v2953 = vld [vmem:[%s2929 + $0xb8] sm:$0xff]
      %v2954 = vld [vmem:[%s2929 + $0xc0] sm:$0xff]
      %v2955 = vld [vmem:[%s2929 + $0xc8] sm:$0xff]
      %v2956 = vld [vmem:[%s2929 + $0xd0] sm:$0xff]
      %v2957 = vld [vmem:[%s2929 + $0xd8] sm:$0xff]
      %v2958 = vld [vmem:[%s2929 + $0xe0] sm:$0xff]
      %v2959 = vld [vmem:[%s2929 + $0xe8] sm:$0xff]
      %v2960 = vld [vmem:[%s2929 + $0xf0] sm:$0xff]
      %v2961 = vld [vmem:[%s2929 + $0xf8] sm:$0xff]
      %v2962 = vld [vmem:[%s2929 + $0x100] sm:$0xff]
      %v2963 = vld [vmem:[%s2929 + $0x108] sm:$0xff]
      %v2964 = vld [vmem:[%s2929 + $0x110] sm:$0xff]
      %v2965 = vld [vmem:[%s2929 + $0x118] sm:$0xff]
      %v2966 = vld [vmem:[%s2929 + $0x120] sm:$0xff]
      %v2967 = vld [vmem:[%s2929 + $0x128] sm:$0xff]
      %v2968 = vld [vmem:[%s2929 + $0x130] sm:$0xff]
      %v2969 = vld [vmem:[%s2929 + $0x138] sm:$0xff]
      %v2970 = vld [vmem:[%s2929 + $0x140] sm:$0xff]
      %v2971 = vld [vmem:[%s2929 + $0x148] sm:$0xff]
      %v2972 = vld [vmem:[%s2929 + $0x150] sm:$0xff]
      %v2973 = vld [vmem:[%s2929 + $0x158] sm:$0xff]
      %v2974 = vld [vmem:[%s2929 + $0x160] sm:$0xff]
      %v2975 = vld [vmem:[%s2929 + $0x168] sm:$0xff]
      %v2976 = vld [vmem:[%s2929 + $0x170] sm:$0xff]
      %v2977 = vld [vmem:[%s2929 + $0x178] sm:$0xff]
      %v2978 = vld [vmem:[%s2929 + $0x180] sm:$0xff]
      %v2979 = vld [vmem:[%s2929 + $0x188] sm:$0xff]
      %v2980 = vld [vmem:[%s2929 + $0x190] sm:$0xff]
      %v2981 = vld [vmem:[%s2929 + $0x198] sm:$0xff]
      %v2982 = vld [vmem:[%s2929 + $0x1a0] sm:$0xff]
      %v2983 = vld [vmem:[%s2929 + $0x1a8] sm:$0xff]
      %v2984 = vld [vmem:[%s2929 + $0x1b0] sm:$0xff]
      %v2985 = vld [vmem:[%s2929 + $0x1b8] sm:$0xff]
      %v2986 = vld [vmem:[%s2929 + $0x1c0] sm:$0xff]
      %v2987 = vld [vmem:[%s2929 + $0x1c8] sm:$0xff]
      %v2988 = vld [vmem:[%s2929 + $0x1d0] sm:$0xff]
      %v2989 = vld [vmem:[%s2929 + $0x1d8] sm:$0xff]
      %v2990 = vld [vmem:[%s2929 + $0x1e0] sm:$0xff]
      %v2991 = vld [vmem:[%s2929 + $0x1e8] sm:$0xff]
      %v2992 = vld [vmem:[%s2929 + $0x1f0] sm:$0xff]
      %v2993 = vld [vmem:[%s2929 + $0x1f8] sm:$0xff]
      %2994 = vmatprep.subr.mxu0 %v2931
      %2995 = vmatpush1.msra.mxu0 %v2930
      %2996 = vmatprep.subr.mxu0 %v2933
      %2997 = vmatpush1.msra.mxu0 %v2932
      %2998 = vmatprep.subr.mxu0 %v2935
      %2999 = vmatpush1.msra.mxu0 %v2934
      %3000 = vmatprep.subr.mxu0 %v2937
      %3001 = vmatpush1.msra.mxu0 %v2936
      %3002 = vmatprep.subr.mxu0 %v2939
      %3003 = vmatpush1.msra.mxu0 %v2938
      %3004 = vmatprep.subr.mxu0 %v2941
      %3005 = vmatpush1.msra.mxu0 %v2940
      %3006 = vmatprep.subr.mxu0 %v2943
      %3007 = vmatpush1.msra.mxu0 %v2942
      %3008 = vmatprep.subr.mxu0 %v2945
      %3009 = vmatpush1.msra.mxu0 %v2944
      %3010 = vmatprep.subr.mxu0 %v2947
      %3011 = vmatpush1.msra.mxu0 %v2946
      %3012 = vmatprep.subr.mxu0 %v2949
      %3013 = vmatpush1.msra.mxu0 %v2948
      %3014 = vmatprep.subr.mxu0 %v2951
      %3015 = vmatpush1.msra.mxu0 %v2950
      %3016 = vmatprep.subr.mxu0 %v2953
      %3017 = vmatpush1.msra.mxu0 %v2952
      %3018 = vmatprep.subr.mxu0 %v2955
      %3019 = vmatpush1.msra.mxu0 %v2954
      %3020 = vmatprep.subr.mxu0 %v2957
      %3021 = vmatpush1.msra.mxu0 %v2956
      %3022 = vmatprep.subr.mxu0 %v2959
      %3023 = vmatpush1.msra.mxu0 %v2958
      %3024 = vmatprep.subr.mxu0 %v2961
      %3025 = vmatpush1.msra.mxu0 %v2960
      %3026 = vmatprep.subr.mxu0 %v2963
      %3027 = vmatpush1.msra.mxu0 %v2962
      %3028 = vmatprep.subr.mxu0 %v2965
      %3029 = vmatpush1.msra.mxu0 %v2964
      %3030 = vmatprep.subr.mxu0 %v2967
      %3031 = vmatpush1.msra.mxu0 %v2966
      %3032 = vmatprep.subr.mxu0 %v2969
      %3033 = vmatpush1.msra.mxu0 %v2968
      %3034 = vmatprep.subr.mxu0 %v2971
      %3035 = vmatpush1.msra.mxu0 %v2970
      %3036 = vmatprep.subr.mxu0 %v2973
      %3037 = vmatpush1.msra.mxu0 %v2972
      %3038 = vmatprep.subr.mxu0 %v2975
      %3039 = vmatpush1.msra.mxu0 %v2974
      %3040 = vmatprep.subr.mxu0 %v2977
      %3041 = vmatpush1.msra.mxu0 %v2976
      %3042 = vmatprep.subr.mxu0 %v2979
      %3043 = vmatpush1.msra.mxu0 %v2978
      %3044 = vmatprep.subr.mxu0 %v2981
      %3045 = vmatpush1.msra.mxu0 %v2980
      %3046 = vmatprep.subr.mxu0 %v2983
      %3047 = vmatpush1.msra.mxu0 %v2982
      %3048 = vmatprep.subr.mxu0 %v2985
      %3049 = vmatpush1.msra.mxu0 %v2984
      %3050 = vmatprep.subr.mxu0 %v2987
      %3051 = vmatpush1.msra.mxu0 %v2986
      %3052 = vmatprep.subr.mxu0 %v2989
      %3053 = vmatpush1.msra.mxu0 %v2988
      %3054 = vmatprep.subr.mxu0 %v2991
      %3055 = vmatpush1.msra.mxu0 %v2990
      %3056 = vmatprep.subr.mxu0 %v2993
      %3057 = vmatpush1.msra.mxu0 %v2992
      %3058 = vmatprep.mubr.f32.mxu0 %v1550
      %3059 = vmatmul.mubr.f32.gmra.mrb[0].mxu0 %v1547
      %v3060 = vpop.f32.mrb[0].mxu0
      %v3061 = vadd.f32 0.0, %v3060
      %v3062 = vpop.f32.mrb[0].mxu0
      %v3063 = vadd.f32 0.0, %v3062
      %3064 = vdwg.mxu0
      %3065 = vmatprep.subr.mxu0 %v2866
      %3066 = vmatpush1.msra.mxu0 %v2865
      %3067 = vmatprep.subr.mxu0 %v2868
      %3068 = vmatpush1.msra.mxu0 %v2867
      %3069 = vmatprep.subr.mxu0 %v2870
      %3070 = vmatpush1.msra.mxu0 %v2869
      %3071 = vmatprep.subr.mxu0 %v2872
      %3072 = vmatpush1.msra.mxu0 %v2871
      %3073 = vmatprep.subr.mxu0 %v2874
      %3074 = vmatpush1.msra.mxu0 %v2873
      %3075 = vmatprep.subr.mxu0 %v2876
      %3076 = vmatpush1.msra.mxu0 %v2875
      %3077 = vmatprep.subr.mxu0 %v2878
      %3078 = vmatpush1.msra.mxu0 %v2877
      %3079 = vmatprep.subr.mxu0 %v2880
      %3080 = vmatpush1.msra.mxu0 %v2879
      %3081 = vmatprep.subr.mxu0 %v2882
      %3082 = vmatpush1.msra.mxu0 %v2881
      %3083 = vmatprep.subr.mxu0 %v2884
      %3084 = vmatpush1.msra.mxu0 %v2883
      %3085 = vmatprep.subr.mxu0 %v2886
      %3086 = vmatpush1.msra.mxu0 %v2885
      %3087 = vmatprep.subr.mxu0 %v2888
      %3088 = vmatpush1.msra.mxu0 %v2887
      %3089 = vmatprep.subr.mxu0 %v2890
      %3090 = vmatpush1.msra.mxu0 %v2889
      %3091 = vmatprep.subr.mxu0 %v2892
      %3092 = vmatpush1.msra.mxu0 %v2891
      %3093 = vmatprep.subr.mxu0 %v2894
      %3094 = vmatpush1.msra.mxu0 %v2893
      %3095 = vmatprep.subr.mxu0 %v2896
      %3096 = vmatpush1.msra.mxu0 %v2895
      %3097 = vmatprep.subr.mxu0 %v2898
      %3098 = vmatpush1.msra.mxu0 %v2897
      %3099 = vmatprep.subr.mxu0 %v2900
      %3100 = vmatpush1.msra.mxu0 %v2899
      %3101 = vmatprep.subr.mxu0 %v2902
      %3102 = vmatpush1.msra.mxu0 %v2901
      %3103 = vmatprep.subr.mxu0 %v2904
      %3104 = vmatpush1.msra.mxu0 %v2903
      %3105 = vmatprep.subr.mxu0 %v2906
      %3106 = vmatpush1.msra.mxu0 %v2905
      %3107 = vmatprep.subr.mxu0 %v2908
      %3108 = vmatpush1.msra.mxu0 %v2907
      %3109 = vmatprep.subr.mxu0 %v2910
      %3110 = vmatpush1.msra.mxu0 %v2909
      %3111 = vmatprep.subr.mxu0 %v2912
      %3112 = vmatpush1.msra.mxu0 %v2911
      %3113 = vmatprep.subr.mxu0 %v2914
      %3114 = vmatpush1.msra.mxu0 %v2913
      %3115 = vmatprep.subr.mxu0 %v2916
      %3116 = vmatpush1.msra.mxu0 %v2915
      %3117 = vmatprep.subr.mxu0 %v2918
      %3118 = vmatpush1.msra.mxu0 %v2917
      %3119 = vmatprep.subr.mxu0 %v2920
      %3120 = vmatpush1.msra.mxu0 %v2919
      %3121 = vmatprep.subr.mxu0 %v2922
      %3122 = vmatpush1.msra.mxu0 %v2921
      %3123 = vmatprep.subr.mxu0 %v2924
      %3124 = vmatpush1.msra.mxu0 %v2923
      %3125 = vmatprep.subr.mxu0 %v2926
      %3126 = vmatpush1.msra.mxu0 %v2925
      %3127 = vmatprep.subr.mxu0 %v2928
      %3128 = vmatpush1.msra.mxu0 %v2927
      %3129 = vmatprep.mubr.f32.mxu0 %v307
      %3130 = vmatmul.mubr.f32.gmra.mrb[0].mxu0 %v306
      %v3131 = vpop.f32.mrb[0].mxu0
      %v3132 = vadd.f32 %v3061, %v3131
      %v3133 = vpop.f32.mrb[0].mxu0
      %v3134 = vadd.f32 %v3063, %v3133
      %3135 = vdwg.mxu0
      %s3136 = scalar_lea.vmem %s5, 1024
      %v3137 = vld [vmem:[%s3136] sm:$0xff]
      %v3138 = vld [vmem:[%s3136 + $0x8] sm:$0xff]
      %v3139 = vld [vmem:[%s3136 + $0x10] sm:$0xff]
      %v3140 = vld [vmem:[%s3136 + $0x18] sm:$0xff]
      %v3141 = vld [vmem:[%s3136 + $0x20] sm:$0xff]
      %v3142 = vld [vmem:[%s3136 + $0x28] sm:$0xff]
      %v3143 = vld [vmem:[%s3136 + $0x30] sm:$0xff]
      %v3144 = vld [vmem:[%s3136 + $0x38] sm:$0xff]
      %v3145 = vld [vmem:[%s3136 + $0x40] sm:$0xff]
      %v3146 = vld [vmem:[%s3136 + $0x48] sm:$0xff]
      %v3147 = vld [vmem:[%s3136 + $0x50] sm:$0xff]
      %v3148 = vld [vmem:[%s3136 + $0x58] sm:$0xff]
      %v3149 = vld [vmem:[%s3136 + $0x60] sm:$0xff]
      %v3150 = vld [vmem:[%s3136 + $0x68] sm:$0xff]
      %v3151 = vld [vmem:[%s3136 + $0x70] sm:$0xff]
      %v3152 = vld [vmem:[%s3136 + $0x78] sm:$0xff]
      %v3153 = vld [vmem:[%s3136 + $0x80] sm:$0xff]
      %v3154 = vld [vmem:[%s3136 + $0x88] sm:$0xff]
      %v3155 = vld [vmem:[%s3136 + $0x90] sm:$0xff]
      %v3156 = vld [vmem:[%s3136 + $0x98] sm:$0xff]
      %v3157 = vld [vmem:[%s3136 + $0xa0] sm:$0xff]
      %v3158 = vld [vmem:[%s3136 + $0xa8] sm:$0xff]
      %v3159 = vld [vmem:[%s3136 + $0xb0] sm:$0xff]
      %v3160 = vld [vmem:[%s3136 + $0xb8] sm:$0xff]
      %v3161 = vld [vmem:[%s3136 + $0xc0] sm:$0xff]
      %v3162 = vld [vmem:[%s3136 + $0xc8] sm:$0xff]
      %v3163 = vld [vmem:[%s3136 + $0xd0] sm:$0xff]
      %v3164 = vld [vmem:[%s3136 + $0xd8] sm:$0xff]
      %v3165 = vld [vmem:[%s3136 + $0xe0] sm:$0xff]
      %v3166 = vld [vmem:[%s3136 + $0xe8] sm:$0xff]
      %v3167 = vld [vmem:[%s3136 + $0xf0] sm:$0xff]
      %v3168 = vld [vmem:[%s3136 + $0xf8] sm:$0xff]
      %v3169 = vld [vmem:[%s3136 + $0x100] sm:$0xff]
      %v3170 = vld [vmem:[%s3136 + $0x108] sm:$0xff]
      %v3171 = vld [vmem:[%s3136 + $0x110] sm:$0xff]
      %v3172 = vld [vmem:[%s3136 + $0x118] sm:$0xff]
      %v3173 = vld [vmem:[%s3136 + $0x120] sm:$0xff]
      %v3174 = vld [vmem:[%s3136 + $0x128] sm:$0xff]
      %v3175 = vld [vmem:[%s3136 + $0x130] sm:$0xff]
      %v3176 = vld [vmem:[%s3136 + $0x138] sm:$0xff]
      %v3177 = vld [vmem:[%s3136 + $0x140] sm:$0xff]
      %v3178 = vld [vmem:[%s3136 + $0x148] sm:$0xff]
      %v3179 = vld [vmem:[%s3136 + $0x150] sm:$0xff]
      %v3180 = vld [vmem:[%s3136 + $0x158] sm:$0xff]
      %v3181 = vld [vmem:[%s3136 + $0x160] sm:$0xff]
      %v3182 = vld [vmem:[%s3136 + $0x168] sm:$0xff]
      %v3183 = vld [vmem:[%s3136 + $0x170] sm:$0xff]
      %v3184 = vld [vmem:[%s3136 + $0x178] sm:$0xff]
      %v3185 = vld [vmem:[%s3136 + $0x180] sm:$0xff]
      %v3186 = vld [vmem:[%s3136 + $0x188] sm:$0xff]
      %v3187 = vld [vmem:[%s3136 + $0x190] sm:$0xff]
      %v3188 = vld [vmem:[%s3136 + $0x198] sm:$0xff]
      %v3189 = vld [vmem:[%s3136 + $0x1a0] sm:$0xff]
      %v3190 = vld [vmem:[%s3136 + $0x1a8] sm:$0xff]
      %v3191 = vld [vmem:[%s3136 + $0x1b0] sm:$0xff]
      %v3192 = vld [vmem:[%s3136 + $0x1b8] sm:$0xff]
      %v3193 = vld [vmem:[%s3136 + $0x1c0] sm:$0xff]
      %v3194 = vld [vmem:[%s3136 + $0x1c8] sm:$0xff]
      %v3195 = vld [vmem:[%s3136 + $0x1d0] sm:$0xff]
      %v3196 = vld [vmem:[%s3136 + $0x1d8] sm:$0xff]
      %v3197 = vld [vmem:[%s3136 + $0x1e0] sm:$0xff]
      %v3198 = vld [vmem:[%s3136 + $0x1e8] sm:$0xff]
      %v3199 = vld [vmem:[%s3136 + $0x1f0] sm:$0xff]
      %v3200 = vld [vmem:[%s3136 + $0x1f8] sm:$0xff]
      %3201 = vmatprep.subr.mxu0 %v3138
      %3202 = vmatpush1.msra.mxu0 %v3137
      %3203 = vmatprep.subr.mxu0 %v3140
      %3204 = vmatpush1.msra.mxu0 %v3139
      %3205 = vmatprep.subr.mxu0 %v3142
      %3206 = vmatpush1.msra.mxu0 %v3141
      %3207 = vmatprep.subr.mxu0 %v3144
      %3208 = vmatpush1.msra.mxu0 %v3143
      %3209 = vmatprep.subr.mxu0 %v3146
      %3210 = vmatpush1.msra.mxu0 %v3145
      %3211 = vmatprep.subr.mxu0 %v3148
      %3212 = vmatpush1.msra.mxu0 %v3147
      %3213 = vmatprep.subr.mxu0 %v3150
      %3214 = vmatpush1.msra.mxu0 %v3149
      %3215 = vmatprep.subr.mxu0 %v3152
      %3216 = vmatpush1.msra.mxu0 %v3151
      %3217 = vmatprep.subr.mxu0 %v3154
      %3218 = vmatpush1.msra.mxu0 %v3153
      %3219 = vmatprep.subr.mxu0 %v3156
      %3220 = vmatpush1.msra.mxu0 %v3155
      %3221 = vmatprep.subr.mxu0 %v3158
      %3222 = vmatpush1.msra.mxu0 %v3157
      %3223 = vmatprep.subr.mxu0 %v3160
      %3224 = vmatpush1.msra.mxu0 %v3159
      %3225 = vmatprep.subr.mxu0 %v3162
      %3226 = vmatpush1.msra.mxu0 %v3161
      %3227 = vmatprep.subr.mxu0 %v3164
      %3228 = vmatpush1.msra.mxu0 %v3163
      %3229 = vmatprep.subr.mxu0 %v3166
      %3230 = vmatpush1.msra.mxu0 %v3165
      %3231 = vmatprep.subr.mxu0 %v3168
      %3232 = vmatpush1.msra.mxu0 %v3167
      %3233 = vmatprep.subr.mxu0 %v3170
      %3234 = vmatpush1.msra.mxu0 %v3169
      %3235 = vmatprep.subr.mxu0 %v3172
      %3236 = vmatpush1.msra.mxu0 %v3171
      %3237 = vmatprep.subr.mxu0 %v3174
      %3238 = vmatpush1.msra.mxu0 %v3173
      %3239 = vmatprep.subr.mxu0 %v3176
      %3240 = vmatpush1.msra.mxu0 %v3175
      %3241 = vmatprep.subr.mxu0 %v3178
      %3242 = vmatpush1.msra.mxu0 %v3177
      %3243 = vmatprep.subr.mxu0 %v3180
      %3244 = vmatpush1.msra.mxu0 %v3179
      %3245 = vmatprep.subr.mxu0 %v3182
      %3246 = vmatpush1.msra.mxu0 %v3181
      %3247 = vmatprep.subr.mxu0 %v3184
      %3248 = vmatpush1.msra.mxu0 %v3183
      %3249 = vmatprep.subr.mxu0 %v3186
      %3250 = vmatpush1.msra.mxu0 %v3185
      %3251 = vmatprep.subr.mxu0 %v3188
      %3252 = vmatpush1.msra.mxu0 %v3187
      %3253 = vmatprep.subr.mxu0 %v3190
      %3254 = vmatpush1.msra.mxu0 %v3189
      %3255 = vmatprep.subr.mxu0 %v3192
      %3256 = vmatpush1.msra.mxu0 %v3191
      %3257 = vmatprep.subr.mxu0 %v3194
      %3258 = vmatpush1.msra.mxu0 %v3193
      %3259 = vmatprep.subr.mxu0 %v3196
      %3260 = vmatpush1.msra.mxu0 %v3195
      %3261 = vmatprep.subr.mxu0 %v3198
      %3262 = vmatpush1.msra.mxu0 %v3197
      %3263 = vmatprep.subr.mxu0 %v3200
      %3264 = vmatpush1.msra.mxu0 %v3199
      %3265 = vmatprep.mubr.f32.mxu0 %v597
      %3266 = vmatmul.mubr.f32.gmra.mrb[0].mxu0 %v594
      %v3267 = vpop.f32.mrb[0].mxu0
      %v3268 = vadd.f32 0.0, %v3267
      %v3269 = vpop.f32.mrb[0].mxu0
      %v3270 = vadd.f32 0.0, %v3269
      %3271 = vdwg.mxu0
      %v3272 = vadd.f32 %v3132, %v3268
      %v3273 = vadd.f32 %v3134, %v3270
      %s3274 = scalar_lea.vmem %s5, 1536
      %v3275 = vld [vmem:[%s3274] sm:$0xff]
      %v3276 = vld [vmem:[%s3274 + $0x8] sm:$0xff]
      %v3277 = vld [vmem:[%s3274 + $0x10] sm:$0xff]
      %v3278 = vld [vmem:[%s3274 + $0x18] sm:$0xff]
      %v3279 = vld [vmem:[%s3274 + $0x20] sm:$0xff]
      %v3280 = vld [vmem:[%s3274 + $0x28] sm:$0xff]
      %v3281 = vld [vmem:[%s3274 + $0x30] sm:$0xff]
      %v3282 = vld [vmem:[%s3274 + $0x38] sm:$0xff]
      %v3283 = vld [vmem:[%s3274 + $0x40] sm:$0xff]
      %v3284 = vld [vmem:[%s3274 + $0x48] sm:$0xff]
      %v3285 = vld [vmem:[%s3274 + $0x50] sm:$0xff]
      %v3286 = vld [vmem:[%s3274 + $0x58] sm:$0xff]
      %v3287 = vld [vmem:[%s3274 + $0x60] sm:$0xff]
      %v3288 = vld [vmem:[%s3274 + $0x68] sm:$0xff]
      %v3289 = vld [vmem:[%s3274 + $0x70] sm:$0xff]
      %v3290 = vld [vmem:[%s3274 + $0x78] sm:$0xff]
      %v3291 = vld [vmem:[%s3274 + $0x80] sm:$0xff]
      %v3292 = vld [vmem:[%s3274 + $0x88] sm:$0xff]
      %v3293 = vld [vmem:[%s3274 + $0x90] sm:$0xff]
      %v3294 = vld [vmem:[%s3274 + $0x98] sm:$0xff]
      %v3295 = vld [vmem:[%s3274 + $0xa0] sm:$0xff]
      %v3296 = vld [vmem:[%s3274 + $0xa8] sm:$0xff]
      %v3297 = vld [vmem:[%s3274 + $0xb0] sm:$0xff]
      %v3298 = vld [vmem:[%s3274 + $0xb8] sm:$0xff]
      %v3299 = vld [vmem:[%s3274 + $0xc0] sm:$0xff]
      %v3300 = vld [vmem:[%s3274 + $0xc8] sm:$0xff]
      %v3301 = vld [vmem:[%s3274 + $0xd0] sm:$0xff]
      %v3302 = vld [vmem:[%s3274 + $0xd8] sm:$0xff]
      %v3303 = vld [vmem:[%s3274 + $0xe0] sm:$0xff]
      %v3304 = vld [vmem:[%s3274 + $0xe8] sm:$0xff]
      %v3305 = vld [vmem:[%s3274 + $0xf0] sm:$0xff]
      %v3306 = vld [vmem:[%s3274 + $0xf8] sm:$0xff]
      %v3307 = vld [vmem:[%s3274 + $0x100] sm:$0xff]
      %v3308 = vld [vmem:[%s3274 + $0x108] sm:$0xff]
      %v3309 = vld [vmem:[%s3274 + $0x110] sm:$0xff]
      %v3310 = vld [vmem:[%s3274 + $0x118] sm:$0xff]
      %v3311 = vld [vmem:[%s3274 + $0x120] sm:$0xff]
      %v3312 = vld [vmem:[%s3274 + $0x128] sm:$0xff]
      %v3313 = vld [vmem:[%s3274 + $0x130] sm:$0xff]
      %v3314 = vld [vmem:[%s3274 + $0x138] sm:$0xff]
      %v3315 = vld [vmem:[%s3274 + $0x140] sm:$0xff]
      %v3316 = vld [vmem:[%s3274 + $0x148] sm:$0xff]
      %v3317 = vld [vmem:[%s3274 + $0x150] sm:$0xff]
      %v3318 = vld [vmem:[%s3274 + $0x158] sm:$0xff]
      %v3319 = vld [vmem:[%s3274 + $0x160] sm:$0xff]
      %v3320 = vld [vmem:[%s3274 + $0x168] sm:$0xff]
      %v3321 = vld [vmem:[%s3274 + $0x170] sm:$0xff]
      %v3322 = vld [vmem:[%s3274 + $0x178] sm:$0xff]
      %v3323 = vld [vmem:[%s3274 + $0x180] sm:$0xff]
      %v3324 = vld [vmem:[%s3274 + $0x188] sm:$0xff]
      %v3325 = vld [vmem:[%s3274 + $0x190] sm:$0xff]
      %v3326 = vld [vmem:[%s3274 + $0x198] sm:$0xff]
      %v3327 = vld [vmem:[%s3274 + $0x1a0] sm:$0xff]
      %v3328 = vld [vmem:[%s3274 + $0x1a8] sm:$0xff]
      %v3329 = vld [vmem:[%s3274 + $0x1b0] sm:$0xff]
      %v3330 = vld [vmem:[%s3274 + $0x1b8] sm:$0xff]
      %v3331 = vld [vmem:[%s3274 + $0x1c0] sm:$0xff]
      %v3332 = vld [vmem:[%s3274 + $0x1c8] sm:$0xff]
      %v3333 = vld [vmem:[%s3274 + $0x1d0] sm:$0xff]
      %v3334 = vld [vmem:[%s3274 + $0x1d8] sm:$0xff]
      %v3335 = vld [vmem:[%s3274 + $0x1e0] sm:$0xff]
      %v3336 = vld [vmem:[%s3274 + $0x1e8] sm:$0xff]
      %v3337 = vld [vmem:[%s3274 + $0x1f0] sm:$0xff]
      %v3338 = vld [vmem:[%s3274 + $0x1f8] sm:$0xff]
      %3339 = vmatprep.subr.mxu0 %v3276
      %3340 = vmatpush1.msra.mxu0 %v3275
      %3341 = vmatprep.subr.mxu0 %v3278
      %3342 = vmatpush1.msra.mxu0 %v3277
      %3343 = vmatprep.subr.mxu0 %v3280
      %3344 = vmatpush1.msra.mxu0 %v3279
      %3345 = vmatprep.subr.mxu0 %v3282
      %3346 = vmatpush1.msra.mxu0 %v3281
      %3347 = vmatprep.subr.mxu0 %v3284
      %3348 = vmatpush1.msra.mxu0 %v3283
      %3349 = vmatprep.subr.mxu0 %v3286
      %3350 = vmatpush1.msra.mxu0 %v3285
      %3351 = vmatprep.subr.mxu0 %v3288
      %3352 = vmatpush1.msra.mxu0 %v3287
      %3353 = vmatprep.subr.mxu0 %v3290
      %3354 = vmatpush1.msra.mxu0 %v3289
      %3355 = vmatprep.subr.mxu0 %v3292
      %3356 = vmatpush1.msra.mxu0 %v3291
      %3357 = vmatprep.subr.mxu0 %v3294
      %3358 = vmatpush1.msra.mxu0 %v3293
      %3359 = vmatprep.subr.mxu0 %v3296
      %3360 = vmatpush1.msra.mxu0 %v3295
      %3361 = vmatprep.subr.mxu0 %v3298
      %3362 = vmatpush1.msra.mxu0 %v3297
      %3363 = vmatprep.subr.mxu0 %v3300
      %3364 = vmatpush1.msra.mxu0 %v3299
      %3365 = vmatprep.subr.mxu0 %v3302
      %3366 = vmatpush1.msra.mxu0 %v3301
      %3367 = vmatprep.subr.mxu0 %v3304
      %3368 = vmatpush1.msra.mxu0 %v3303
      %3369 = vmatprep.subr.mxu0 %v3306
      %3370 = vmatpush1.msra.mxu0 %v3305
      %3371 = vmatprep.subr.mxu0 %v3308
      %3372 = vmatpush1.msra.mxu0 %v3307
      %3373 = vmatprep.subr.mxu0 %v3310
      %3374 = vmatpush1.msra.mxu0 %v3309
      %3375 = vmatprep.subr.mxu0 %v3312
      %3376 = vmatpush1.msra.mxu0 %v3311
      %3377 = vmatprep.subr.mxu0 %v3314
      %3378 = vmatpush1.msra.mxu0 %v3313
      %3379 = vmatprep.subr.mxu0 %v3316
      %3380 = vmatpush1.msra.mxu0 %v3315
      %3381 = vmatprep.subr.mxu0 %v3318
      %3382 = vmatpush1.msra.mxu0 %v3317
      %3383 = vmatprep.subr.mxu0 %v3320
      %3384 = vmatpush1.msra.mxu0 %v3319
      %3385 = vmatprep.subr.mxu0 %v3322
      %3386 = vmatpush1.msra.mxu0 %v3321
      %3387 = vmatprep.subr.mxu0 %v3324
      %3388 = vmatpush1.msra.mxu0 %v3323
      %3389 = vmatprep.subr.mxu0 %v3326
      %3390 = vmatpush1.msra.mxu0 %v3325
      %3391 = vmatprep.subr.mxu0 %v3328
      %3392 = vmatpush1.msra.mxu0 %v3327
      %3393 = vmatprep.subr.mxu0 %v3330
      %3394 = vmatpush1.msra.mxu0 %v3329
      %3395 = vmatprep.subr.mxu0 %v3332
      %3396 = vmatpush1.msra.mxu0 %v3331
      %3397 = vmatprep.subr.mxu0 %v3334
      %3398 = vmatpush1.msra.mxu0 %v3333
      %3399 = vmatprep.subr.mxu0 %v3336
      %3400 = vmatpush1.msra.mxu0 %v3335
      %3401 = vmatprep.subr.mxu0 %v3338
      %3402 = vmatpush1.msra.mxu0 %v3337
      %3403 = vmatprep.mubr.f32.mxu0 %v517
      %3404 = vmatmul.mubr.f32.gmra.mrb[0].mxu0 %v514
      %v3405 = vpop.f32.mrb[0].mxu0
      %v3406 = vadd.f32 0.0, %v3405
      %v3407 = vpop.f32.mrb[0].mxu0
      %v3408 = vadd.f32 0.0, %v3407
      %3409 = vdwg.mxu0
      %v3410 = vadd.f32 %v3272, %v3406
      %v3411 = vadd.f32 %v3273, %v3408
      %s3412 = scalar_lea.vmem %s5, 2048
      %v3413 = vld [vmem:[%s3412] sm:$0xff]
      %v3414 = vld [vmem:[%s3412 + $0x8] sm:$0xff]
      %v3415 = vld [vmem:[%s3412 + $0x10] sm:$0xff]
      %v3416 = vld [vmem:[%s3412 + $0x18] sm:$0xff]
      %v3417 = vld [vmem:[%s3412 + $0x20] sm:$0xff]
      %v3418 = vld [vmem:[%s3412 + $0x28] sm:$0xff]
      %v3419 = vld [vmem:[%s3412 + $0x30] sm:$0xff]
      %v3420 = vld [vmem:[%s3412 + $0x38] sm:$0xff]
      %v3421 = vld [vmem:[%s3412 + $0x40] sm:$0xff]
      %v3422 = vld [vmem:[%s3412 + $0x48] sm:$0xff]
      %v3423 = vld [vmem:[%s3412 + $0x50] sm:$0xff]
      %v3424 = vld [vmem:[%s3412 + $0x58] sm:$0xff]
      %v3425 = vld [vmem:[%s3412 + $0x60] sm:$0xff]
      %v3426 = vld [vmem:[%s3412 + $0x68] sm:$0xff]
      %v3427 = vld [vmem:[%s3412 + $0x70] sm:$0xff]
      %v3428 = vld [vmem:[%s3412 + $0x78] sm:$0xff]
      %v3429 = vld [vmem:[%s3412 + $0x80] sm:$0xff]
      %v3430 = vld [vmem:[%s3412 + $0x88] sm:$0xff]
      %v3431 = vld [vmem:[%s3412 + $0x90] sm:$0xff]
      %v3432 = vld [vmem:[%s3412 + $0x98] sm:$0xff]
      %v3433 = vld [vmem:[%s3412 + $0xa0] sm:$0xff]
      %v3434 = vld [vmem:[%s3412 + $0xa8] sm:$0xff]
      %v3435 = vld [vmem:[%s3412 + $0xb0] sm:$0xff]
      %v3436 = vld [vmem:[%s3412 + $0xb8] sm:$0xff]
      %v3437 = vld [vmem:[%s3412 + $0xc0] sm:$0xff]
      %v3438 = vld [vmem:[%s3412 + $0xc8] sm:$0xff]
      %v3439 = vld [vmem:[%s3412 + $0xd0] sm:$0xff]
      %v3440 = vld [vmem:[%s3412 + $0xd8] sm:$0xff]
      %v3441 = vld [vmem:[%s3412 + $0xe0] sm:$0xff]
      %v3442 = vld [vmem:[%s3412 + $0xe8] sm:$0xff]
      %v3443 = vld [vmem:[%s3412 + $0xf0] sm:$0xff]
      %v3444 = vld [vmem:[%s3412 + $0xf8] sm:$0xff]
      %v3445 = vld [vmem:[%s3412 + $0x100] sm:$0xff]
      %v3446 = vld [vmem:[%s3412 + $0x108] sm:$0xff]
      %v3447 = vld [vmem:[%s3412 + $0x110] sm:$0xff]
      %v3448 = vld [vmem:[%s3412 + $0x118] sm:$0xff]
      %v3449 = vld [vmem:[%s3412 + $0x120] sm:$0xff]
      %v3450 = vld [vmem:[%s3412 + $0x128] sm:$0xff]
      %v3451 = vld [vmem:[%s3412 + $0x130] sm:$0xff]
      %v3452 = vld [vmem:[%s3412 + $0x138] sm:$0xff]
      %v3453 = vld [vmem:[%s3412 + $0x140] sm:$0xff]
      %v3454 = vld [vmem:[%s3412 + $0x148] sm:$0xff]
      %v3455 = vld [vmem:[%s3412 + $0x150] sm:$0xff]
      %v3456 = vld [vmem:[%s3412 + $0x158] sm:$0xff]
      %v3457 = vld [vmem:[%s3412 + $0x160] sm:$0xff]
      %v3458 = vld [vmem:[%s3412 + $0x168] sm:$0xff]
      %v3459 = vld [vmem:[%s3412 + $0x170] sm:$0xff]
      %v3460 = vld [vmem:[%s3412 + $0x178] sm:$0xff]
      %v3461 = vld [vmem:[%s3412 + $0x180] sm:$0xff]
      %v3462 = vld [vmem:[%s3412 + $0x188] sm:$0xff]
      %v3463 = vld [vmem:[%s3412 + $0x190] sm:$0xff]
      %v3464 = vld [vmem:[%s3412 + $0x198] sm:$0xff]
      %v3465 = vld [vmem:[%s3412 + $0x1a0] sm:$0xff]
      %v3466 = vld [vmem:[%s3412 + $0x1a8] sm:$0xff]
      %v3467 = vld [vmem:[%s3412 + $0x1b0] sm:$0xff]
      %v3468 = vld [vmem:[%s3412 + $0x1b8] sm:$0xff]
      %v3469 = vld [vmem:[%s3412 + $0x1c0] sm:$0xff]
      %v3470 = vld [vmem:[%s3412 + $0x1c8] sm:$0xff]
      %v3471 = vld [vmem:[%s3412 + $0x1d0] sm:$0xff]
      %v3472 = vld [vmem:[%s3412 + $0x1d8] sm:$0xff]
      %v3473 = vld [vmem:[%s3412 + $0x1e0] sm:$0xff]
      %v3474 = vld [vmem:[%s3412 + $0x1e8] sm:$0xff]
      %v3475 = vld [vmem:[%s3412 + $0x1f0] sm:$0xff]
      %v3476 = vld [vmem:[%s3412 + $0x1f8] sm:$0xff]
      %3477 = vmatprep.subr.mxu0 %v3414
      %3478 = vmatpush1.msra.mxu0 %v3413
      %3479 = vmatprep.subr.mxu0 %v3416
      %3480 = vmatpush1.msra.mxu0 %v3415
      %3481 = vmatprep.subr.mxu0 %v3418
      %3482 = vmatpush1.msra.mxu0 %v3417
      %3483 = vmatprep.subr.mxu0 %v3420
      %3484 = vmatpush1.msra.mxu0 %v3419
      %3485 = vmatprep.subr.mxu0 %v3422
      %3486 = vmatpush1.msra.mxu0 %v3421
      %3487 = vmatprep.subr.mxu0 %v3424
      %3488 = vmatpush1.msra.mxu0 %v3423
      %3489 = vmatprep.subr.mxu0 %v3426
      %3490 = vmatpush1.msra.mxu0 %v3425
      %3491 = vmatprep.subr.mxu0 %v3428
      %3492 = vmatpush1.msra.mxu0 %v3427
      %3493 = vmatprep.subr.mxu0 %v3430
      %3494 = vmatpush1.msra.mxu0 %v3429
      %3495 = vmatprep.subr.mxu0 %v3432
      %3496 = vmatpush1.msra.mxu0 %v3431
      %3497 = vmatprep.subr.mxu0 %v3434
      %3498 = vmatpush1.msra.mxu0 %v3433
      %3499 = vmatprep.subr.mxu0 %v3436
      %3500 = vmatpush1.msra.mxu0 %v3435
      %3501 = vmatprep.subr.mxu0 %v3438
      %3502 = vmatpush1.msra.mxu0 %v3437
      %3503 = vmatprep.subr.mxu0 %v3440
      %3504 = vmatpush1.msra.mxu0 %v3439
      %3505 = vmatprep.subr.mxu0 %v3442
      %3506 = vmatpush1.msra.mxu0 %v3441
      %3507 = vmatprep.subr.mxu0 %v3444
      %3508 = vmatpush1.msra.mxu0 %v3443
      %3509 = vmatprep.subr.mxu0 %v3446
      %3510 = vmatpush1.msra.mxu0 %v3445
      %3511 = vmatprep.subr.mxu0 %v3448
      %3512 = vmatpush1.msra.mxu0 %v3447
      %3513 = vmatprep.subr.mxu0 %v3450
      %3514 = vmatpush1.msra.mxu0 %v3449
      %3515 = vmatprep.subr.mxu0 %v3452
      %3516 = vmatpush1.msra.mxu0 %v3451
      %3517 = vmatprep.subr.mxu0 %v3454
      %3518 = vmatpush1.msra.mxu0 %v3453
      %3519 = vmatprep.subr.mxu0 %v3456
      %3520 = vmatpush1.msra.mxu0 %v3455
      %3521 = vmatprep.subr.mxu0 %v3458
      %3522 = vmatpush1.msra.mxu0 %v3457
      %3523 = vmatprep.subr.mxu0 %v3460
      %3524 = vmatpush1.msra.mxu0 %v3459
      %3525 = vmatprep.subr.mxu0 %v3462
      %3526 = vmatpush1.msra.mxu0 %v3461
      %3527 = vmatprep.subr.mxu0 %v3464
      %3528 = vmatpush1.msra.mxu0 %v3463
      %3529 = vmatprep.subr.mxu0 %v3466
      %3530 = vmatpush1.msra.mxu0 %v3465
      %3531 = vmatprep.subr.mxu0 %v3468
      %3532 = vmatpush1.msra.mxu0 %v3467
      %3533 = vmatprep.subr.mxu0 %v3470
      %3534 = vmatpush1.msra.mxu0 %v3469
      %3535 = vmatprep.subr.mxu0 %v3472
      %3536 = vmatpush1.msra.mxu0 %v3471
      %3537 = vmatprep.subr.mxu0 %v3474
      %3538 = vmatpush1.msra.mxu0 %v3473
      %3539 = vmatprep.subr.mxu0 %v3476
      %3540 = vmatpush1.msra.mxu0 %v3475
      %3541 = vmatprep.mubr.f32.mxu0 %v742
      %3542 = vmatmul.mubr.f32.gmra.mrb[0].mxu0 %v739
      %v3543 = vpop.f32.mrb[0].mxu0
      %v3544 = vadd.f32 0.0, %v3543
      %v3545 = vpop.f32.mrb[0].mxu0
      %v3546 = vadd.f32 0.0, %v3545
      %3547 = vdwg.mxu0
      %v3548 = vadd.f32 %v3410, %v3544
      %v3549 = vadd.f32 %v3411, %v3546
      %s3550 = scalar_lea.vmem %s5, 2560
      %v3551 = vld [vmem:[%s3550] sm:$0xff]
      %v3552 = vld [vmem:[%s3550 + $0x8] sm:$0xff]
      %v3553 = vld [vmem:[%s3550 + $0x10] sm:$0xff]
      %v3554 = vld [vmem:[%s3550 + $0x18] sm:$0xff]
      %v3555 = vld [vmem:[%s3550 + $0x20] sm:$0xff]
      %v3556 = vld [vmem:[%s3550 + $0x28] sm:$0xff]
      %v3557 = vld [vmem:[%s3550 + $0x30] sm:$0xff]
      %v3558 = vld [vmem:[%s3550 + $0x38] sm:$0xff]
      %v3559 = vld [vmem:[%s3550 + $0x40] sm:$0xff]
      %v3560 = vld [vmem:[%s3550 + $0x48] sm:$0xff]
      %v3561 = vld [vmem:[%s3550 + $0x50] sm:$0xff]
      %v3562 = vld [vmem:[%s3550 + $0x58] sm:$0xff]
      %v3563 = vld [vmem:[%s3550 + $0x60] sm:$0xff]
      %v3564 = vld [vmem:[%s3550 + $0x68] sm:$0xff]
      %v3565 = vld [vmem:[%s3550 + $0x70] sm:$0xff]
      %v3566 = vld [vmem:[%s3550 + $0x78] sm:$0xff]
      %v3567 = vld [vmem:[%s3550 + $0x80] sm:$0xff]
      %v3568 = vld [vmem:[%s3550 + $0x88] sm:$0xff]
      %v3569 = vld [vmem:[%s3550 + $0x90] sm:$0xff]
      %v3570 = vld [vmem:[%s3550 + $0x98] sm:$0xff]
      %v3571 = vld [vmem:[%s3550 + $0xa0] sm:$0xff]
      %v3572 = vld [vmem:[%s3550 + $0xa8] sm:$0xff]
      %v3573 = vld [vmem:[%s3550 + $0xb0] sm:$0xff]
      %v3574 = vld [vmem:[%s3550 + $0xb8] sm:$0xff]
      %v3575 = vld [vmem:[%s3550 + $0xc0] sm:$0xff]
      %v3576 = vld [vmem:[%s3550 + $0xc8] sm:$0xff]
      %v3577 = vld [vmem:[%s3550 + $0xd0] sm:$0xff]
      %v3578 = vld [vmem:[%s3550 + $0xd8] sm:$0xff]
      %v3579 = vld [vmem:[%s3550 + $0xe0] sm:$0xff]
      %v3580 = vld [vmem:[%s3550 + $0xe8] sm:$0xff]
      %v3581 = vld [vmem:[%s3550 + $0xf0] sm:$0xff]
      %v3582 = vld [vmem:[%s3550 + $0xf8] sm:$0xff]
      %v3583 = vld [vmem:[%s3550 + $0x100] sm:$0xff]
      %v3584 = vld [vmem:[%s3550 + $0x108] sm:$0xff]
      %v3585 = vld [vmem:[%s3550 + $0x110] sm:$0xff]
      %v3586 = vld [vmem:[%s3550 + $0x118] sm:$0xff]
      %v3587 = vld [vmem:[%s3550 + $0x120] sm:$0xff]
      %v3588 = vld [vmem:[%s3550 + $0x128] sm:$0xff]
      %v3589 = vld [vmem:[%s3550 + $0x130] sm:$0xff]
      %v3590 = vld [vmem:[%s3550 + $0x138] sm:$0xff]
      %v3591 = vld [vmem:[%s3550 + $0x140] sm:$0xff]
      %v3592 = vld [vmem:[%s3550 + $0x148] sm:$0xff]
      %v3593 = vld [vmem:[%s3550 + $0x150] sm:$0xff]
      %v3594 = vld [vmem:[%s3550 + $0x158] sm:$0xff]
      %v3595 = vld [vmem:[%s3550 + $0x160] sm:$0xff]
      %v3596 = vld [vmem:[%s3550 + $0x168] sm:$0xff]
      %v3597 = vld [vmem:[%s3550 + $0x170] sm:$0xff]
      %v3598 = vld [vmem:[%s3550 + $0x178] sm:$0xff]
      %v3599 = vld [vmem:[%s3550 + $0x180] sm:$0xff]
      %v3600 = vld [vmem:[%s3550 + $0x188] sm:$0xff]
      %v3601 = vld [vmem:[%s3550 + $0x190] sm:$0xff]
      %v3602 = vld [vmem:[%s3550 + $0x198] sm:$0xff]
      %v3603 = vld [vmem:[%s3550 + $0x1a0] sm:$0xff]
      %v3604 = vld [vmem:[%s3550 + $0x1a8] sm:$0xff]
      %v3605 = vld [vmem:[%s3550 + $0x1b0] sm:$0xff]
      %v3606 = vld [vmem:[%s3550 + $0x1b8] sm:$0xff]
      %v3607 = vld [vmem:[%s3550 + $0x1c0] sm:$0xff]
      %v3608 = vld [vmem:[%s3550 + $0x1c8] sm:$0xff]
      %v3609 = vld [vmem:[%s3550 + $0x1d0] sm:$0xff]
      %v3610 = vld [vmem:[%s3550 + $0x1d8] sm:$0xff]
      %v3611 = vld [vmem:[%s3550 + $0x1e0] sm:$0xff]
      %v3612 = vld [vmem:[%s3550 + $0x1e8] sm:$0xff]
      %v3613 = vld [vmem:[%s3550 + $0x1f0] sm:$0xff]
      %v3614 = vld [vmem:[%s3550 + $0x1f8] sm:$0xff]
      %3615 = vmatprep.subr.mxu0 %v3552
      %3616 = vmatpush1.msra.mxu0 %v3551
      %3617 = vmatprep.subr.mxu0 %v3554
      %3618 = vmatpush1.msra.mxu0 %v3553
      %3619 = vmatprep.subr.mxu0 %v3556
      %3620 = vmatpush1.msra.mxu0 %v3555
      %3621 = vmatprep.subr.mxu0 %v3558
      %3622 = vmatpush1.msra.mxu0 %v3557
      %3623 = vmatprep.subr.mxu0 %v3560
      %3624 = vmatpush1.msra.mxu0 %v3559
      %3625 = vmatprep.subr.mxu0 %v3562
      %3626 = vmatpush1.msra.mxu0 %v3561
      %3627 = vmatprep.subr.mxu0 %v3564
      %3628 = vmatpush1.msra.mxu0 %v3563
      %3629 = vmatprep.subr.mxu0 %v3566
      %3630 = vmatpush1.msra.mxu0 %v3565
      %3631 = vmatprep.subr.mxu0 %v3568
      %3632 = vmatpush1.msra.mxu0 %v3567
      %3633 = vmatprep.subr.mxu0 %v3570
      %3634 = vmatpush1.msra.mxu0 %v3569
      %3635 = vmatprep.subr.mxu0 %v3572
      %3636 = vmatpush1.msra.mxu0 %v3571
      %3637 = vmatprep.subr.mxu0 %v3574
      %3638 = vmatpush1.msra.mxu0 %v3573
      %3639 = vmatprep.subr.mxu0 %v3576
      %3640 = vmatpush1.msra.mxu0 %v3575
      %3641 = vmatprep.subr.mxu0 %v3578
      %3642 = vmatpush1.msra.mxu0 %v3577
      %3643 = vmatprep.subr.mxu0 %v3580
      %3644 = vmatpush1.msra.mxu0 %v3579
      %3645 = vmatprep.subr.mxu0 %v3582
      %3646 = vmatpush1.msra.mxu0 %v3581
      %3647 = vmatprep.subr.mxu0 %v3584
      %3648 = vmatpush1.msra.mxu0 %v3583
      %3649 = vmatprep.subr.mxu0 %v3586
      %3650 = vmatpush1.msra.mxu0 %v3585
      %3651 = vmatprep.subr.mxu0 %v3588
      %3652 = vmatpush1.msra.mxu0 %v3587
      %3653 = vmatprep.subr.mxu0 %v3590
      %3654 = vmatpush1.msra.mxu0 %v3589
      %3655 = vmatprep.subr.mxu0 %v3592
      %3656 = vmatpush1.msra.mxu0 %v3591
      %3657 = vmatprep.subr.mxu0 %v3594
      %3658 = vmatpush1.msra.mxu0 %v3593
      %3659 = vmatprep.subr.mxu0 %v3596
      %3660 = vmatpush1.msra.mxu0 %v3595
      %3661 = vmatprep.subr.mxu0 %v3598
      %3662 = vmatpush1.msra.mxu0 %v3597
      %3663 = vmatprep.subr.mxu0 %v3600
      %3664 = vmatpush1.msra.mxu0 %v3599
      %3665 = vmatprep.subr.mxu0 %v3602
      %3666 = vmatpush1.msra.mxu0 %v3601
      %3667 = vmatprep.subr.mxu0 %v3604
      %3668 = vmatpush1.msra.mxu0 %v3603
      %3669 = vmatprep.subr.mxu0 %v3606
      %3670 = vmatpush1.msra.mxu0 %v3605
      %3671 = vmatprep.subr.mxu0 %v3608
      %3672 = vmatpush1.msra.mxu0 %v3607
      %3673 = vmatprep.subr.mxu0 %v3610
      %3674 = vmatpush1.msra.mxu0 %v3609
      %3675 = vmatprep.subr.mxu0 %v3612
      %3676 = vmatpush1.msra.mxu0 %v3611
      %3677 = vmatprep.subr.mxu0 %v3614
      %3678 = vmatpush1.msra.mxu0 %v3613
      %3679 = vmatprep.mubr.f32.mxu0 %v1971
      %3680 = vmatmul.mubr.f32.gmra.mrb[0].mxu0 %v1968
      %v3681 = vpop.f32.mrb[0].mxu0
      %v3682 = vadd.f32 0.0, %v3681
      %v3683 = vpop.f32.mrb[0].mxu0
      %v3684 = vadd.f32 0.0, %v3683
      %3685 = vdwg.mxu0
      %v3686 = vadd.f32 %v3548, %v3682
      %v3687 = vadd.f32 %v3549, %v3684
      %s3688 = scalar_lea.vmem %s5, 3072
      %v3689 = vld [vmem:[%s3688] sm:$0xff]
      %v3690 = vld [vmem:[%s3688 + $0x8] sm:$0xff]
      %v3691 = vld [vmem:[%s3688 + $0x10] sm:$0xff]
      %v3692 = vld [vmem:[%s3688 + $0x18] sm:$0xff]
      %v3693 = vld [vmem:[%s3688 + $0x20] sm:$0xff]
      %v3694 = vld [vmem:[%s3688 + $0x28] sm:$0xff]
      %v3695 = vld [vmem:[%s3688 + $0x30] sm:$0xff]
      %v3696 = vld [vmem:[%s3688 + $0x38] sm:$0xff]
      %v3697 = vld [vmem:[%s3688 + $0x40] sm:$0xff]
      %v3698 = vld [vmem:[%s3688 + $0x48] sm:$0xff]
      %v3699 = vld [vmem:[%s3688 + $0x50] sm:$0xff]
      %v3700 = vld [vmem:[%s3688 + $0x58] sm:$0xff]
      %v3701 = vld [vmem:[%s3688 + $0x60] sm:$0xff]
      %v3702 = vld [vmem:[%s3688 + $0x68] sm:$0xff]
      %v3703 = vld [vmem:[%s3688 + $0x70] sm:$0xff]
      %v3704 = vld [vmem:[%s3688 + $0x78] sm:$0xff]
      %v3705 = vld [vmem:[%s3688 + $0x80] sm:$0xff]
      %v3706 = vld [vmem:[%s3688 + $0x88] sm:$0xff]
      %v3707 = vld [vmem:[%s3688 + $0x90] sm:$0xff]
      %v3708 = vld [vmem:[%s3688 + $0x98] sm:$0xff]
      %v3709 = vld [vmem:[%s3688 + $0xa0] sm:$0xff]
      %v3710 = vld [vmem:[%s3688 + $0xa8] sm:$0xff]
      %v3711 = vld [vmem:[%s3688 + $0xb0] sm:$0xff]
      %v3712 = vld [vmem:[%s3688 + $0xb8] sm:$0xff]
      %v3713 = vld [vmem:[%s3688 + $0xc0] sm:$0xff]
      %v3714 = vld [vmem:[%s3688 + $0xc8] sm:$0xff]
      %v3715 = vld [vmem:[%s3688 + $0xd0] sm:$0xff]
      %v3716 = vld [vmem:[%s3688 + $0xd8] sm:$0xff]
      %v3717 = vld [vmem:[%s3688 + $0xe0] sm:$0xff]
      %v3718 = vld [vmem:[%s3688 + $0xe8] sm:$0xff]
      %v3719 = vld [vmem:[%s3688 + $0xf0] sm:$0xff]
      %v3720 = vld [vmem:[%s3688 + $0xf8] sm:$0xff]
      %v3721 = vld [vmem:[%s3688 + $0x100] sm:$0xff]
      %v3722 = vld [vmem:[%s3688 + $0x108] sm:$0xff]
      %v3723 = vld [vmem:[%s3688 + $0x110] sm:$0xff]
      %v3724 = vld [vmem:[%s3688 + $0x118] sm:$0xff]
      %v3725 = vld [vmem:[%s3688 + $0x120] sm:$0xff]
      %v3726 = vld [vmem:[%s3688 + $0x128] sm:$0xff]
      %v3727 = vld [vmem:[%s3688 + $0x130] sm:$0xff]
      %v3728 = vld [vmem:[%s3688 + $0x138] sm:$0xff]
      %v3729 = vld [vmem:[%s3688 + $0x140] sm:$0xff]
      %v3730 = vld [vmem:[%s3688 + $0x148] sm:$0xff]
      %v3731 = vld [vmem:[%s3688 + $0x150] sm:$0xff]
      %v3732 = vld [vmem:[%s3688 + $0x158] sm:$0xff]
      %v3733 = vld [vmem:[%s3688 + $0x160] sm:$0xff]
      %v3734 = vld [vmem:[%s3688 + $0x168] sm:$0xff]
      %v3735 = vld [vmem:[%s3688 + $0x170] sm:$0xff]
      %v3736 = vld [vmem:[%s3688 + $0x178] sm:$0xff]
      %v3737 = vld [vmem:[%s3688 + $0x180] sm:$0xff]
      %v3738 = vld [vmem:[%s3688 + $0x188] sm:$0xff]
      %v3739 = vld [vmem:[%s3688 + $0x190] sm:$0xff]
      %v3740 = vld [vmem:[%s3688 + $0x198] sm:$0xff]
      %v3741 = vld [vmem:[%s3688 + $0x1a0] sm:$0xff]
      %v3742 = vld [vmem:[%s3688 + $0x1a8] sm:$0xff]
      %v3743 = vld [vmem:[%s3688 + $0x1b0] sm:$0xff]
      %v3744 = vld [vmem:[%s3688 + $0x1b8] sm:$0xff]
      %v3745 = vld [vmem:[%s3688 + $0x1c0] sm:$0xff]
      %v3746 = vld [vmem:[%s3688 + $0x1c8] sm:$0xff]
      %v3747 = vld [vmem:[%s3688 + $0x1d0] sm:$0xff]
      %v3748 = vld [vmem:[%s3688 + $0x1d8] sm:$0xff]
      %v3749 = vld [vmem:[%s3688 + $0x1e0] sm:$0xff]
      %v3750 = vld [vmem:[%s3688 + $0x1e8] sm:$0xff]
      %v3751 = vld [vmem:[%s3688 + $0x1f0] sm:$0xff]
      %v3752 = vld [vmem:[%s3688 + $0x1f8] sm:$0xff]
      %vm3753 = vcmask 1041408
      %v3754 = vrot.slane %v306, 6
      %v3755 = vrot.slane %v308, 6
      %v3756 = vsel %vm3753, %v3754, %v3755
      %v3757 = vrot.slane %v307, 6
      %v3758 = vrot.slane %v309, 6
      %v3759 = vsel %vm3753, %v3757, %v3758
      %3762 = vmatprep.subr.mxu0 %v3690
      %3763 = vmatpush1.msra.mxu0 %v3689
      %3764 = vmatprep.subr.mxu0 %v3692
      %3765 = vmatpush1.msra.mxu0 %v3691
      %3766 = vmatprep.subr.mxu0 %v3694
      %3767 = vmatpush1.msra.mxu0 %v3693
      %3768 = vmatprep.subr.mxu0 %v3696
      %3769 = vmatpush1.msra.mxu0 %v3695
      %3770 = vmatprep.subr.mxu0 %v3698
      %3771 = vmatpush1.msra.mxu0 %v3697
      %3772 = vmatprep.subr.mxu0 %v3700
      %3773 = vmatpush1.msra.mxu0 %v3699
      %3774 = vmatprep.subr.mxu0 %v3702
      %3775 = vmatpush1.msra.mxu0 %v3701
      %3776 = vmatprep.subr.mxu0 %v3704
      %3777 = vmatpush1.msra.mxu0 %v3703
      %3778 = vmatprep.subr.mxu0 %v3706
      %3779 = vmatpush1.msra.mxu0 %v3705
      %3780 = vmatprep.subr.mxu0 %v3708
      %3781 = vmatpush1.msra.mxu0 %v3707
      %3782 = vmatprep.subr.mxu0 %v3710
      %3783 = vmatpush1.msra.mxu0 %v3709
      %3784 = vmatprep.subr.mxu0 %v3712
      %3785 = vmatpush1.msra.mxu0 %v3711
      %3786 = vmatprep.subr.mxu0 %v3714
      %3787 = vmatpush1.msra.mxu0 %v3713
      %3788 = vmatprep.subr.mxu0 %v3716
      %3789 = vmatpush1.msra.mxu0 %v3715
      %3790 = vmatprep.subr.mxu0 %v3718
      %3791 = vmatpush1.msra.mxu0 %v3717
      %3792 = vmatprep.subr.mxu0 %v3720
      %3793 = vmatpush1.msra.mxu0 %v3719
      %3794 = vmatprep.subr.mxu0 %v3722
      %3795 = vmatpush1.msra.mxu0 %v3721
      %3796 = vmatprep.subr.mxu0 %v3724
      %3797 = vmatpush1.msra.mxu0 %v3723
      %3798 = vmatprep.subr.mxu0 %v3726
      %3799 = vmatpush1.msra.mxu0 %v3725
      %3800 = vmatprep.subr.mxu0 %v3728
      %3801 = vmatpush1.msra.mxu0 %v3727
      %3802 = vmatprep.subr.mxu0 %v3730
      %3803 = vmatpush1.msra.mxu0 %v3729
      %3804 = vmatprep.subr.mxu0 %v3732
      %3805 = vmatpush1.msra.mxu0 %v3731
      %3806 = vmatprep.subr.mxu0 %v3734
      %3807 = vmatpush1.msra.mxu0 %v3733
      %3808 = vmatprep.subr.mxu0 %v3736
      %3809 = vmatpush1.msra.mxu0 %v3735
      %3810 = vmatprep.subr.mxu0 %v3738
      %3811 = vmatpush1.msra.mxu0 %v3737
      %3812 = vmatprep.subr.mxu0 %v3740
      %3813 = vmatpush1.msra.mxu0 %v3739
      %3814 = vmatprep.subr.mxu0 %v3742
      %3815 = vmatpush1.msra.mxu0 %v3741
      %3816 = vmatprep.subr.mxu0 %v3744
      %3817 = vmatpush1.msra.mxu0 %v3743
      %3818 = vmatprep.subr.mxu0 %v3746
      %3819 = vmatpush1.msra.mxu0 %v3745
      %3820 = vmatprep.subr.mxu0 %v3748
      %3821 = vmatpush1.msra.mxu0 %v3747
      %3822 = vmatprep.subr.mxu0 %v3750
      %3823 = vmatpush1.msra.mxu0 %v3749
      %3824 = vmatprep.subr.mxu0 %v3752
      %3825 = vmatpush1.msra.mxu0 %v3751
      %3826 = vmatprep.mubr.f32.mxu0 %v3759
      %3827 = vmatmul.mubr.f32.gmra.mrb[0].mxu0 %v3756
      %v3828 = vpop.f32.mrb[0].mxu0
      %v3829 = vadd.f32 0.0, %v3828
      %v3830 = vpop.f32.mrb[0].mxu0
      %v3831 = vadd.f32 0.0, %v3830
      %3832 = vdwg.mxu0
      %v3833 = vadd.f32 %v3686, %v3829
      %v3834 = vadd.f32 %v3687, %v3831
      %v3835 = vmax.f32 %v3833, 0.0
      %v3836 = vmax.f32 %v3834, 0.0
      %v3839 = vrot.slane %v3835, 5
      %v3840 = vrot.slane %v3836, 5
      %3843 = vst [vmem:[#allocation2] sm:$0xf8] %v3839
      %3844 = vst [vmem:[#allocation2 + $0x8] sm:$0xf8] %v3840
      %3845 = vst [vmem:[#allocation2 + $0x10] sm:$0x7] %v3839
      %3846 = vst [vmem:[#allocation2 + $0x18] sm:$0x7] %v3840
      %v3847 = vld [vmem:[#allocation2] sm:$0xff]
      %v3848 = vld [vmem:[#allocation2 + $0x8] sm:$0xff]
      %v3849 = vld [vmem:[#allocation2 + $0x10] sm:$0x3f]
      %v3850 = vld [vmem:[#allocation2 + $0x18] sm:$0x3f]
      %v3851 = vld [vmem:[%s6] sm:$0xff]
      %v3852 = vld [vmem:[%s6 + $0x8] sm:$0xff]
      %v3853 = vld [vmem:[%s6 + $0x10] sm:$0xff]
      %v3854 = vld [vmem:[%s6 + $0x18] sm:$0xff]
      %v3855 = vld [vmem:[%s6 + $0x20] sm:$0xff]
      %v3856 = vld [vmem:[%s6 + $0x28] sm:$0xff]
      %v3857 = vld [vmem:[%s6 + $0x30] sm:$0xff]
      %v3858 = vld [vmem:[%s6 + $0x38] sm:$0xff]
      %v3859 = vld [vmem:[%s6 + $0x40] sm:$0xff]
      %v3860 = vld [vmem:[%s6 + $0x48] sm:$0xff]
      %v3861 = vld [vmem:[%s6 + $0x50] sm:$0xff]
      %v3862 = vld [vmem:[%s6 + $0x58] sm:$0xff]
      %v3863 = vld [vmem:[%s6 + $0x60] sm:$0xff]
      %v3864 = vld [vmem:[%s6 + $0x68] sm:$0xff]
      %v3865 = vld [vmem:[%s6 + $0x70] sm:$0xff]
      %v3866 = vld [vmem:[%s6 + $0x78] sm:$0xff]
      %v3867 = vld [vmem:[%s6 + $0x80] sm:$0xff]
      %v3868 = vld [vmem:[%s6 + $0x88] sm:$0xff]
      %v3869 = vld [vmem:[%s6 + $0x90] sm:$0xff]
      %v3870 = vld [vmem:[%s6 + $0x98] sm:$0xff]
      %v3871 = vld [vmem:[%s6 + $0xa0] sm:$0xff]
      %v3872 = vld [vmem:[%s6 + $0xa8] sm:$0xff]
      %v3873 = vld [vmem:[%s6 + $0xb0] sm:$0xff]
      %v3874 = vld [vmem:[%s6 + $0xb8] sm:$0xff]
      %v3875 = vld [vmem:[%s6 + $0xc0] sm:$0xff]
      %v3876 = vld [vmem:[%s6 + $0xc8] sm:$0xff]
      %v3877 = vld [vmem:[%s6 + $0xd0] sm:$0xff]
      %v3878 = vld [vmem:[%s6 + $0xd8] sm:$0xff]
      %v3879 = vld [vmem:[%s6 + $0xe0] sm:$0xff]
      %v3880 = vld [vmem:[%s6 + $0xe8] sm:$0xff]
      %v3881 = vld [vmem:[%s6 + $0xf0] sm:$0xff]
      %v3882 = vld [vmem:[%s6 + $0xf8] sm:$0xff]
      %v3883 = vld [vmem:[%s6 + $0x100] sm:$0xff]
      %v3884 = vld [vmem:[%s6 + $0x108] sm:$0xff]
      %v3885 = vld [vmem:[%s6 + $0x110] sm:$0xff]
      %v3886 = vld [vmem:[%s6 + $0x118] sm:$0xff]
      %v3887 = vld [vmem:[%s6 + $0x120] sm:$0xff]
      %v3888 = vld [vmem:[%s6 + $0x128] sm:$0xff]
      %v3889 = vld [vmem:[%s6 + $0x130] sm:$0xff]
      %v3890 = vld [vmem:[%s6 + $0x138] sm:$0xff]
      %v3891 = vld [vmem:[%s6 + $0x140] sm:$0xff]
      %v3892 = vld [vmem:[%s6 + $0x148] sm:$0xff]
      %v3893 = vld [vmem:[%s6 + $0x150] sm:$0xff]
      %v3894 = vld [vmem:[%s6 + $0x158] sm:$0xff]
      %v3895 = vld [vmem:[%s6 + $0x160] sm:$0xff]
      %v3896 = vld [vmem:[%s6 + $0x168] sm:$0xff]
      %v3897 = vld [vmem:[%s6 + $0x170] sm:$0xff]
      %v3898 = vld [vmem:[%s6 + $0x178] sm:$0xff]
      %v3899 = vld [vmem:[%s6 + $0x180] sm:$0xff]
      %v3900 = vld [vmem:[%s6 + $0x188] sm:$0xff]
      %v3901 = vld [vmem:[%s6 + $0x190] sm:$0xff]
      %v3902 = vld [vmem:[%s6 + $0x198] sm:$0xff]
      %v3903 = vld [vmem:[%s6 + $0x1a0] sm:$0xff]
      %v3904 = vld [vmem:[%s6 + $0x1a8] sm:$0xff]
      %v3905 = vld [vmem:[%s6 + $0x1b0] sm:$0xff]
      %v3906 = vld [vmem:[%s6 + $0x1b8] sm:$0xff]
      %v3907 = vld [vmem:[%s6 + $0x1c0] sm:$0xff]
      %v3908 = vld [vmem:[%s6 + $0x1c8] sm:$0xff]
      %v3909 = vld [vmem:[%s6 + $0x1d0] sm:$0xff]
      %v3910 = vld [vmem:[%s6 + $0x1d8] sm:$0xff]
      %v3911 = vld [vmem:[%s6 + $0x1e0] sm:$0xff]
      %v3912 = vld [vmem:[%s6 + $0x1e8] sm:$0xff]
      %v3913 = vld [vmem:[%s6 + $0x1f0] sm:$0xff]
      %v3914 = vld [vmem:[%s6 + $0x1f8] sm:$0xff]
      %s3915 = scalar_lea.vmem %s6, 512
      %v3916 = vld [vmem:[%s3915] sm:$0xff]
      %v3917 = vld [vmem:[%s3915 + $0x8] sm:$0xff]
      %v3918 = vld [vmem:[%s3915 + $0x10] sm:$0xff]
      %v3919 = vld [vmem:[%s3915 + $0x18] sm:$0xff]
      %v3920 = vld [vmem:[%s3915 + $0x20] sm:$0xff]
      %v3921 = vld [vmem:[%s3915 + $0x28] sm:$0xff]
      %v3922 = vld [vmem:[%s3915 + $0x30] sm:$0xff]
      %v3923 = vld [vmem:[%s3915 + $0x38] sm:$0xff]
      %v3924 = vld [vmem:[%s3915 + $0x40] sm:$0xff]
      %v3925 = vld [vmem:[%s3915 + $0x48] sm:$0xff]
      %v3926 = vld [vmem:[%s3915 + $0x50] sm:$0xff]
      %v3927 = vld [vmem:[%s3915 + $0x58] sm:$0xff]
      %v3928 = vld [vmem:[%s3915 + $0x60] sm:$0xff]
      %v3929 = vld [vmem:[%s3915 + $0x68] sm:$0xff]
      %v3930 = vld [vmem:[%s3915 + $0x70] sm:$0xff]
      %v3931 = vld [vmem:[%s3915 + $0x78] sm:$0xff]
      %v3932 = vld [vmem:[%s3915 + $0x80] sm:$0xff]
      %v3933 = vld [vmem:[%s3915 + $0x88] sm:$0xff]
      %v3934 = vld [vmem:[%s3915 + $0x90] sm:$0xff]
      %v3935 = vld [vmem:[%s3915 + $0x98] sm:$0xff]
      %v3936 = vld [vmem:[%s3915 + $0xa0] sm:$0xff]
      %v3937 = vld [vmem:[%s3915 + $0xa8] sm:$0xff]
      %v3938 = vld [vmem:[%s3915 + $0xb0] sm:$0xff]
      %v3939 = vld [vmem:[%s3915 + $0xb8] sm:$0xff]
      %v3940 = vld [vmem:[%s3915 + $0xc0] sm:$0xff]
      %v3941 = vld [vmem:[%s3915 + $0xc8] sm:$0xff]
      %v3942 = vld [vmem:[%s3915 + $0xd0] sm:$0xff]
      %v3943 = vld [vmem:[%s3915 + $0xd8] sm:$0xff]
      %v3944 = vld [vmem:[%s3915 + $0xe0] sm:$0xff]
      %v3945 = vld [vmem:[%s3915 + $0xe8] sm:$0xff]
      %v3946 = vld [vmem:[%s3915 + $0xf0] sm:$0xff]
      %v3947 = vld [vmem:[%s3915 + $0xf8] sm:$0xff]
      %v3948 = vld [vmem:[%s3915 + $0x100] sm:$0xff]
      %v3949 = vld [vmem:[%s3915 + $0x108] sm:$0xff]
      %v3950 = vld [vmem:[%s3915 + $0x110] sm:$0xff]
      %v3951 = vld [vmem:[%s3915 + $0x118] sm:$0xff]
      %v3952 = vld [vmem:[%s3915 + $0x120] sm:$0xff]
      %v3953 = vld [vmem:[%s3915 + $0x128] sm:$0xff]
      %v3954 = vld [vmem:[%s3915 + $0x130] sm:$0xff]
      %v3955 = vld [vmem:[%s3915 + $0x138] sm:$0xff]
      %v3956 = vld [vmem:[%s3915 + $0x140] sm:$0xff]
      %v3957 = vld [vmem:[%s3915 + $0x148] sm:$0xff]
      %v3958 = vld [vmem:[%s3915 + $0x150] sm:$0xff]
      %v3959 = vld [vmem:[%s3915 + $0x158] sm:$0xff]
      %v3960 = vld [vmem:[%s3915 + $0x160] sm:$0xff]
      %v3961 = vld [vmem:[%s3915 + $0x168] sm:$0xff]
      %v3962 = vld [vmem:[%s3915 + $0x170] sm:$0xff]
      %v3963 = vld [vmem:[%s3915 + $0x178] sm:$0xff]
      %v3964 = vld [vmem:[%s3915 + $0x180] sm:$0xff]
      %v3965 = vld [vmem:[%s3915 + $0x188] sm:$0xff]
      %v3966 = vld [vmem:[%s3915 + $0x190] sm:$0xff]
      %v3967 = vld [vmem:[%s3915 + $0x198] sm:$0xff]
      %v3968 = vld [vmem:[%s3915 + $0x1a0] sm:$0xff]
      %v3969 = vld [vmem:[%s3915 + $0x1a8] sm:$0xff]
      %v3970 = vld [vmem:[%s3915 + $0x1b0] sm:$0xff]
      %v3971 = vld [vmem:[%s3915 + $0x1b8] sm:$0xff]
      %v3972 = vld [vmem:[%s3915 + $0x1c0] sm:$0xff]
      %v3973 = vld [vmem:[%s3915 + $0x1c8] sm:$0xff]
      %v3974 = vld [vmem:[%s3915 + $0x1d0] sm:$0xff]
      %v3975 = vld [vmem:[%s3915 + $0x1d8] sm:$0xff]
      %v3976 = vld [vmem:[%s3915 + $0x1e0] sm:$0xff]
      %v3977 = vld [vmem:[%s3915 + $0x1e8] sm:$0xff]
      %v3978 = vld [vmem:[%s3915 + $0x1f0] sm:$0xff]
      %v3979 = vld [vmem:[%s3915 + $0x1f8] sm:$0xff]
      %v3984 = vrot.slane %v3847, 1
      %v3985 = vrot.slane %v3849, 1
      %v3986 = vsel %vm1544, %v3984, %v3985
      %v3987 = vrot.slane %v3848, 1
      %v3988 = vrot.slane %v3850, 1
      %v3989 = vsel %vm1544, %v3987, %v3988
      %3992 = vmatprep.subr.mxu0 %v3917
      %3993 = vmatpush1.msra.mxu0 %v3916
      %3994 = vmatprep.subr.mxu0 %v3919
      %3995 = vmatpush1.msra.mxu0 %v3918
      %3996 = vmatprep.subr.mxu0 %v3921
      %3997 = vmatpush1.msra.mxu0 %v3920
      %3998 = vmatprep.subr.mxu0 %v3923
      %3999 = vmatpush1.msra.mxu0 %v3922
      %4000 = vmatprep.subr.mxu0 %v3925
      %4001 = vmatpush1.msra.mxu0 %v3924
      %4002 = vmatprep.subr.mxu0 %v3927
      %4003 = vmatpush1.msra.mxu0 %v3926
      %4004 = vmatprep.subr.mxu0 %v3929
      %4005 = vmatpush1.msra.mxu0 %v3928
      %4006 = vmatprep.subr.mxu0 %v3931
      %4007 = vmatpush1.msra.mxu0 %v3930
      %4008 = vmatprep.subr.mxu0 %v3933
      %4009 = vmatpush1.msra.mxu0 %v3932
      %4010 = vmatprep.subr.mxu0 %v3935
      %4011 = vmatpush1.msra.mxu0 %v3934
      %4012 = vmatprep.subr.mxu0 %v3937
      %4013 = vmatpush1.msra.mxu0 %v3936
      %4014 = vmatprep.subr.mxu0 %v3939
      %4015 = vmatpush1.msra.mxu0 %v3938
      %4016 = vmatprep.subr.mxu0 %v3941
      %4017 = vmatpush1.msra.mxu0 %v3940
      %4018 = vmatprep.subr.mxu0 %v3943
      %4019 = vmatpush1.msra.mxu0 %v3942
      %4020 = vmatprep.subr.mxu0 %v3945
      %4021 = vmatpush1.msra.mxu0 %v3944
      %4022 = vmatprep.subr.mxu0 %v3947
      %4023 = vmatpush1.msra.mxu0 %v3946
      %4024 = vmatprep.subr.mxu0 %v3949
      %4025 = vmatpush1.msra.mxu0 %v3948
      %4026 = vmatprep.subr.mxu0 %v3951
      %4027 = vmatpush1.msra.mxu0 %v3950
      %4028 = vmatprep.subr.mxu0 %v3953
      %4029 = vmatpush1.msra.mxu0 %v3952
      %4030 = vmatprep.subr.mxu0 %v3955
      %4031 = vmatpush1.msra.mxu0 %v3954
      %4032 = vmatprep.subr.mxu0 %v3957
      %4033 = vmatpush1.msra.mxu0 %v3956
      %4034 = vmatprep.subr.mxu0 %v3959
      %4035 = vmatpush1.msra.mxu0 %v3958
      %4036 = vmatprep.subr.mxu0 %v3961
      %4037 = vmatpush1.msra.mxu0 %v3960
      %4038 = vmatprep.subr.mxu0 %v3963
      %4039 = vmatpush1.msra.mxu0 %v3962
      %4040 = vmatprep.subr.mxu0 %v3965
      %4041 = vmatpush1.msra.mxu0 %v3964
      %4042 = vmatprep.subr.mxu0 %v3967
      %4043 = vmatpush1.msra.mxu0 %v3966
      %4044 = vmatprep.subr.mxu0 %v3969
      %4045 = vmatpush1.msra.mxu0 %v3968
      %4046 = vmatprep.subr.mxu0 %v3971
      %4047 = vmatpush1.msra.mxu0 %v3970
      %4048 = vmatprep.subr.mxu0 %v3973
      %4049 = vmatpush1.msra.mxu0 %v3972
      %4050 = vmatprep.subr.mxu0 %v3975
      %4051 = vmatpush1.msra.mxu0 %v3974
      %4052 = vmatprep.subr.mxu0 %v3977
      %4053 = vmatpush1.msra.mxu0 %v3976
      %4054 = vmatprep.subr.mxu0 %v3979
      %4055 = vmatpush1.msra.mxu0 %v3978
      %4056 = vmatprep.mubr.f32.mxu0 %v3989
      %4057 = vmatmul.mubr.f32.gmra.mrb[0].mxu0 %v3986
      %v4058 = vpop.f32.mrb[0].mxu0
      %v4059 = vadd.f32 0.0, %v4058
      %v4060 = vpop.f32.mrb[0].mxu0
      %v4061 = vadd.f32 0.0, %v4060
      %4062 = vdwg.mxu0
      %4063 = vmatprep.subr.mxu0 %v3852
      %4064 = vmatpush1.msra.mxu0 %v3851
      %4065 = vmatprep.subr.mxu0 %v3854
      %4066 = vmatpush1.msra.mxu0 %v3853
      %4067 = vmatprep.subr.mxu0 %v3856
      %4068 = vmatpush1.msra.mxu0 %v3855
      %4069 = vmatprep.subr.mxu0 %v3858
      %4070 = vmatpush1.msra.mxu0 %v3857
      %4071 = vmatprep.subr.mxu0 %v3860
      %4072 = vmatpush1.msra.mxu0 %v3859
      %4073 = vmatprep.subr.mxu0 %v3862
      %4074 = vmatpush1.msra.mxu0 %v3861
      %4075 = vmatprep.subr.mxu0 %v3864
      %4076 = vmatpush1.msra.mxu0 %v3863
      %4077 = vmatprep.subr.mxu0 %v3866
      %4078 = vmatpush1.msra.mxu0 %v3865
      %4079 = vmatprep.subr.mxu0 %v3868
      %4080 = vmatpush1.msra.mxu0 %v3867
      %4081 = vmatprep.subr.mxu0 %v3870
      %4082 = vmatpush1.msra.mxu0 %v3869
      %4083 = vmatprep.subr.mxu0 %v3872
      %4084 = vmatpush1.msra.mxu0 %v3871
      %4085 = vmatprep.subr.mxu0 %v3874
      %4086 = vmatpush1.msra.mxu0 %v3873
      %4087 = vmatprep.subr.mxu0 %v3876
      %4088 = vmatpush1.msra.mxu0 %v3875
      %4089 = vmatprep.subr.mxu0 %v3878
      %4090 = vmatpush1.msra.mxu0 %v3877
      %4091 = vmatprep.subr.mxu0 %v3880
      %4092 = vmatpush1.msra.mxu0 %v3879
      %4093 = vmatprep.subr.mxu0 %v3882
      %4094 = vmatpush1.msra.mxu0 %v3881
      %4095 = vmatprep.subr.mxu0 %v3884
      %4096 = vmatpush1.msra.mxu0 %v3883
      %4097 = vmatprep.subr.mxu0 %v3886
      %4098 = vmatpush1.msra.mxu0 %v3885
      %4099 = vmatprep.subr.mxu0 %v3888
      %4100 = vmatpush1.msra.mxu0 %v3887
      %4101 = vmatprep.subr.mxu0 %v3890
      %4102 = vmatpush1.msra.mxu0 %v3889
      %4103 = vmatprep.subr.mxu0 %v3892
      %4104 = vmatpush1.msra.mxu0 %v3891
      %4105 = vmatprep.subr.mxu0 %v3894
      %4106 = vmatpush1.msra.mxu0 %v3893
      %4107 = vmatprep.subr.mxu0 %v3896
      %4108 = vmatpush1.msra.mxu0 %v3895
      %4109 = vmatprep.subr.mxu0 %v3898
      %4110 = vmatpush1.msra.mxu0 %v3897
      %4111 = vmatprep.subr.mxu0 %v3900
      %4112 = vmatpush1.msra.mxu0 %v3899
      %4113 = vmatprep.subr.mxu0 %v3902
      %4114 = vmatpush1.msra.mxu0 %v3901
      %4115 = vmatprep.subr.mxu0 %v3904
      %4116 = vmatpush1.msra.mxu0 %v3903
      %4117 = vmatprep.subr.mxu0 %v3906
      %4118 = vmatpush1.msra.mxu0 %v3905
      %4119 = vmatprep.subr.mxu0 %v3908
      %4120 = vmatpush1.msra.mxu0 %v3907
      %4121 = vmatprep.subr.mxu0 %v3910
      %4122 = vmatpush1.msra.mxu0 %v3909
      %4123 = vmatprep.subr.mxu0 %v3912
      %4124 = vmatpush1.msra.mxu0 %v3911
      %4125 = vmatprep.subr.mxu0 %v3914
      %4126 = vmatpush1.msra.mxu0 %v3913
      %4127 = vmatprep.mubr.f32.mxu0 %v3848
      %4128 = vmatmul.mubr.f32.gmra.mrb[0].mxu0 %v3847
      %v4129 = vpop.f32.mrb[0].mxu0
      %v4130 = vadd.f32 %v4059, %v4129
      %v4131 = vpop.f32.mrb[0].mxu0
      %v4132 = vadd.f32 %v4061, %v4131
      %4133 = vdwg.mxu0
      %s4134 = scalar_lea.vmem %s6, 1024
      %v4135 = vld [vmem:[%s4134] sm:$0xff]
      %v4136 = vld [vmem:[%s4134 + $0x8] sm:$0xff]
      %v4137 = vld [vmem:[%s4134 + $0x10] sm:$0xff]
      %v4138 = vld [vmem:[%s4134 + $0x18] sm:$0xff]
      %v4139 = vld [vmem:[%s4134 + $0x20] sm:$0xff]
      %v4140 = vld [vmem:[%s4134 + $0x28] sm:$0xff]
      %v4141 = vld [vmem:[%s4134 + $0x30] sm:$0xff]
      %v4142 = vld [vmem:[%s4134 + $0x38] sm:$0xff]
      %v4143 = vld [vmem:[%s4134 + $0x40] sm:$0xff]
      %v4144 = vld [vmem:[%s4134 + $0x48] sm:$0xff]
      %v4145 = vld [vmem:[%s4134 + $0x50] sm:$0xff]
      %v4146 = vld [vmem:[%s4134 + $0x58] sm:$0xff]
      %v4147 = vld [vmem:[%s4134 + $0x60] sm:$0xff]
      %v4148 = vld [vmem:[%s4134 + $0x68] sm:$0xff]
      %v4149 = vld [vmem:[%s4134 + $0x70] sm:$0xff]
      %v4150 = vld [vmem:[%s4134 + $0x78] sm:$0xff]
      %v4151 = vld [vmem:[%s4134 + $0x80] sm:$0xff]
      %v4152 = vld [vmem:[%s4134 + $0x88] sm:$0xff]
      %v4153 = vld [vmem:[%s4134 + $0x90] sm:$0xff]
      %v4154 = vld [vmem:[%s4134 + $0x98] sm:$0xff]
      %v4155 = vld [vmem:[%s4134 + $0xa0] sm:$0xff]
      %v4156 = vld [vmem:[%s4134 + $0xa8] sm:$0xff]
      %v4157 = vld [vmem:[%s4134 + $0xb0] sm:$0xff]
      %v4158 = vld [vmem:[%s4134 + $0xb8] sm:$0xff]
      %v4159 = vld [vmem:[%s4134 + $0xc0] sm:$0xff]
      %v4160 = vld [vmem:[%s4134 + $0xc8] sm:$0xff]
      %v4161 = vld [vmem:[%s4134 + $0xd0] sm:$0xff]
      %v4162 = vld [vmem:[%s4134 + $0xd8] sm:$0xff]
      %v4163 = vld [vmem:[%s4134 + $0xe0] sm:$0xff]
      %v4164 = vld [vmem:[%s4134 + $0xe8] sm:$0xff]
      %v4165 = vld [vmem:[%s4134 + $0xf0] sm:$0xff]
      %v4166 = vld [vmem:[%s4134 + $0xf8] sm:$0xff]
      %v4167 = vld [vmem:[%s4134 + $0x100] sm:$0xff]
      %v4168 = vld [vmem:[%s4134 + $0x108] sm:$0xff]
      %v4169 = vld [vmem:[%s4134 + $0x110] sm:$0xff]
      %v4170 = vld [vmem:[%s4134 + $0x118] sm:$0xff]
      %v4171 = vld [vmem:[%s4134 + $0x120] sm:$0xff]
      %v4172 = vld [vmem:[%s4134 + $0x128] sm:$0xff]
      %v4173 = vld [vmem:[%s4134 + $0x130] sm:$0xff]
      %v4174 = vld [vmem:[%s4134 + $0x138] sm:$0xff]
      %v4175 = vld [vmem:[%s4134 + $0x140] sm:$0xff]
      %v4176 = vld [vmem:[%s4134 + $0x148] sm:$0xff]
      %v4177 = vld [vmem:[%s4134 + $0x150] sm:$0xff]
      %v4178 = vld [vmem:[%s4134 + $0x158] sm:$0xff]
      %v4179 = vld [vmem:[%s4134 + $0x160] sm:$0xff]
      %v4180 = vld [vmem:[%s4134 + $0x168] sm:$0xff]
      %v4181 = vld [vmem:[%s4134 + $0x170] sm:$0xff]
      %v4182 = vld [vmem:[%s4134 + $0x178] sm:$0xff]
      %v4183 = vld [vmem:[%s4134 + $0x180] sm:$0xff]
      %v4184 = vld [vmem:[%s4134 + $0x188] sm:$0xff]
      %v4185 = vld [vmem:[%s4134 + $0x190] sm:$0xff]
      %v4186 = vld [vmem:[%s4134 + $0x198] sm:$0xff]
      %v4187 = vld [vmem:[%s4134 + $0x1a0] sm:$0xff]
      %v4188 = vld [vmem:[%s4134 + $0x1a8] sm:$0xff]
      %v4189 = vld [vmem:[%s4134 + $0x1b0] sm:$0xff]
      %v4190 = vld [vmem:[%s4134 + $0x1b8] sm:$0xff]
      %v4191 = vld [vmem:[%s4134 + $0x1c0] sm:$0xff]
      %v4192 = vld [vmem:[%s4134 + $0x1c8] sm:$0xff]
      %v4193 = vld [vmem:[%s4134 + $0x1d0] sm:$0xff]
      %v4194 = vld [vmem:[%s4134 + $0x1d8] sm:$0xff]
      %v4195 = vld [vmem:[%s4134 + $0x1e0] sm:$0xff]
      %v4196 = vld [vmem:[%s4134 + $0x1e8] sm:$0xff]
      %v4197 = vld [vmem:[%s4134 + $0x1f0] sm:$0xff]
      %v4198 = vld [vmem:[%s4134 + $0x1f8] sm:$0xff]
      %v4199 = vrot.slane %v3847, 2
      %v4200 = vrot.slane %v3849, 2
      %v4201 = vsel %vm591, %v4199, %v4200
      %v4202 = vrot.slane %v3848, 2
      %v4203 = vrot.slane %v3850, 2
      %v4204 = vsel %vm591, %v4202, %v4203
      %4207 = vmatprep.subr.mxu0 %v4136
      %4208 = vmatpush1.msra.mxu0 %v4135
      %4209 = vmatprep.subr.mxu0 %v4138
      %4210 = vmatpush1.msra.mxu0 %v4137
      %4211 = vmatprep.subr.mxu0 %v4140
      %4212 = vmatpush1.msra.mxu0 %v4139
      %4213 = vmatprep.subr.mxu0 %v4142
      %4214 = vmatpush1.msra.mxu0 %v4141
      %4215 = vmatprep.subr.mxu0 %v4144
      %4216 = vmatpush1.msra.mxu0 %v4143
      %4217 = vmatprep.subr.mxu0 %v4146
      %4218 = vmatpush1.msra.mxu0 %v4145
      %4219 = vmatprep.subr.mxu0 %v4148
      %4220 = vmatpush1.msra.mxu0 %v4147
      %4221 = vmatprep.subr.mxu0 %v4150
      %4222 = vmatpush1.msra.mxu0 %v4149
      %4223 = vmatprep.subr.mxu0 %v4152
      %4224 = vmatpush1.msra.mxu0 %v4151
      %4225 = vmatprep.subr.mxu0 %v4154
      %4226 = vmatpush1.msra.mxu0 %v4153
      %4227 = vmatprep.subr.mxu0 %v4156
      %4228 = vmatpush1.msra.mxu0 %v4155
      %4229 = vmatprep.subr.mxu0 %v4158
      %4230 = vmatpush1.msra.mxu0 %v4157
      %4231 = vmatprep.subr.mxu0 %v4160
      %4232 = vmatpush1.msra.mxu0 %v4159
      %4233 = vmatprep.subr.mxu0 %v4162
      %4234 = vmatpush1.msra.mxu0 %v4161
      %4235 = vmatprep.subr.mxu0 %v4164
      %4236 = vmatpush1.msra.mxu0 %v4163
      %4237 = vmatprep.subr.mxu0 %v4166
      %4238 = vmatpush1.msra.mxu0 %v4165
      %4239 = vmatprep.subr.mxu0 %v4168
      %4240 = vmatpush1.msra.mxu0 %v4167
      %4241 = vmatprep.subr.mxu0 %v4170
      %4242 = vmatpush1.msra.mxu0 %v4169
      %4243 = vmatprep.subr.mxu0 %v4172
      %4244 = vmatpush1.msra.mxu0 %v4171
      %4245 = vmatprep.subr.mxu0 %v4174
      %4246 = vmatpush1.msra.mxu0 %v4173
      %4247 = vmatprep.subr.mxu0 %v4176
      %4248 = vmatpush1.msra.mxu0 %v4175
      %4249 = vmatprep.subr.mxu0 %v4178
      %4250 = vmatpush1.msra.mxu0 %v4177
      %4251 = vmatprep.subr.mxu0 %v4180
      %4252 = vmatpush1.msra.mxu0 %v4179
      %4253 = vmatprep.subr.mxu0 %v4182
      %4254 = vmatpush1.msra.mxu0 %v4181
      %4255 = vmatprep.subr.mxu0 %v4184
      %4256 = vmatpush1.msra.mxu0 %v4183
      %4257 = vmatprep.subr.mxu0 %v4186
      %4258 = vmatpush1.msra.mxu0 %v4185
      %4259 = vmatprep.subr.mxu0 %v4188
      %4260 = vmatpush1.msra.mxu0 %v4187
      %4261 = vmatprep.subr.mxu0 %v4190
      %4262 = vmatpush1.msra.mxu0 %v4189
      %4263 = vmatprep.subr.mxu0 %v4192
      %4264 = vmatpush1.msra.mxu0 %v4191
      %4265 = vmatprep.subr.mxu0 %v4194
      %4266 = vmatpush1.msra.mxu0 %v4193
      %4267 = vmatprep.subr.mxu0 %v4196
      %4268 = vmatpush1.msra.mxu0 %v4195
      %4269 = vmatprep.subr.mxu0 %v4198
      %4270 = vmatpush1.msra.mxu0 %v4197
      %4271 = vmatprep.mubr.f32.mxu0 %v4204
      %4272 = vmatmul.mubr.f32.gmra.mrb[0].mxu0 %v4201
      %v4273 = vpop.f32.mrb[0].mxu0
      %v4274 = vadd.f32 0.0, %v4273
      %v4275 = vpop.f32.mrb[0].mxu0
      %v4276 = vadd.f32 0.0, %v4275
      %4277 = vdwg.mxu0
      %v4278 = vadd.f32 %v4130, %v4274
      %v4279 = vadd.f32 %v4132, %v4276
      %s4280 = scalar_lea.vmem %s6, 1536
      %v4281 = vld [vmem:[%s4280] sm:$0xff]
      %v4282 = vld [vmem:[%s4280 + $0x8] sm:$0xff]
      %v4283 = vld [vmem:[%s4280 + $0x10] sm:$0xff]
      %v4284 = vld [vmem:[%s4280 + $0x18] sm:$0xff]
      %v4285 = vld [vmem:[%s4280 + $0x20] sm:$0xff]
      %v4286 = vld [vmem:[%s4280 + $0x28] sm:$0xff]
      %v4287 = vld [vmem:[%s4280 + $0x30] sm:$0xff]
      %v4288 = vld [vmem:[%s4280 + $0x38] sm:$0xff]
      %v4289 = vld [vmem:[%s4280 + $0x40] sm:$0xff]
      %v4290 = vld [vmem:[%s4280 + $0x48] sm:$0xff]
      %v4291 = vld [vmem:[%s4280 + $0x50] sm:$0xff]
      %v4292 = vld [vmem:[%s4280 + $0x58] sm:$0xff]
      %v4293 = vld [vmem:[%s4280 + $0x60] sm:$0xff]
      %v4294 = vld [vmem:[%s4280 + $0x68] sm:$0xff]
      %v4295 = vld [vmem:[%s4280 + $0x70] sm:$0xff]
      %v4296 = vld [vmem:[%s4280 + $0x78] sm:$0xff]
      %v4297 = vld [vmem:[%s4280 + $0x80] sm:$0xff]
      %v4298 = vld [vmem:[%s4280 + $0x88] sm:$0xff]
      %v4299 = vld [vmem:[%s4280 + $0x90] sm:$0xff]
      %v4300 = vld [vmem:[%s4280 + $0x98] sm:$0xff]
      %v4301 = vld [vmem:[%s4280 + $0xa0] sm:$0xff]
      %v4302 = vld [vmem:[%s4280 + $0xa8] sm:$0xff]
      %v4303 = vld [vmem:[%s4280 + $0xb0] sm:$0xff]
      %v4304 = vld [vmem:[%s4280 + $0xb8] sm:$0xff]
      %v4305 = vld [vmem:[%s4280 + $0xc0] sm:$0xff]
      %v4306 = vld [vmem:[%s4280 + $0xc8] sm:$0xff]
      %v4307 = vld [vmem:[%s4280 + $0xd0] sm:$0xff]
      %v4308 = vld [vmem:[%s4280 + $0xd8] sm:$0xff]
      %v4309 = vld [vmem:[%s4280 + $0xe0] sm:$0xff]
      %v4310 = vld [vmem:[%s4280 + $0xe8] sm:$0xff]
      %v4311 = vld [vmem:[%s4280 + $0xf0] sm:$0xff]
      %v4312 = vld [vmem:[%s4280 + $0xf8] sm:$0xff]
      %v4313 = vld [vmem:[%s4280 + $0x100] sm:$0xff]
      %v4314 = vld [vmem:[%s4280 + $0x108] sm:$0xff]
      %v4315 = vld [vmem:[%s4280 + $0x110] sm:$0xff]
      %v4316 = vld [vmem:[%s4280 + $0x118] sm:$0xff]
      %v4317 = vld [vmem:[%s4280 + $0x120] sm:$0xff]
      %v4318 = vld [vmem:[%s4280 + $0x128] sm:$0xff]
      %v4319 = vld [vmem:[%s4280 + $0x130] sm:$0xff]
      %v4320 = vld [vmem:[%s4280 + $0x138] sm:$0xff]
      %v4321 = vld [vmem:[%s4280 + $0x140] sm:$0xff]
      %v4322 = vld [vmem:[%s4280 + $0x148] sm:$0xff]
      %v4323 = vld [vmem:[%s4280 + $0x150] sm:$0xff]
      %v4324 = vld [vmem:[%s4280 + $0x158] sm:$0xff]
      %v4325 = vld [vmem:[%s4280 + $0x160] sm:$0xff]
      %v4326 = vld [vmem:[%s4280 + $0x168] sm:$0xff]
      %v4327 = vld [vmem:[%s4280 + $0x170] sm:$0xff]
      %v4328 = vld [vmem:[%s4280 + $0x178] sm:$0xff]
      %v4329 = vld [vmem:[%s4280 + $0x180] sm:$0xff]
      %v4330 = vld [vmem:[%s4280 + $0x188] sm:$0xff]
      %v4331 = vld [vmem:[%s4280 + $0x190] sm:$0xff]
      %v4332 = vld [vmem:[%s4280 + $0x198] sm:$0xff]
      %v4333 = vld [vmem:[%s4280 + $0x1a0] sm:$0xff]
      %v4334 = vld [vmem:[%s4280 + $0x1a8] sm:$0xff]
      %v4335 = vld [vmem:[%s4280 + $0x1b0] sm:$0xff]
      %v4336 = vld [vmem:[%s4280 + $0x1b8] sm:$0xff]
      %v4337 = vld [vmem:[%s4280 + $0x1c0] sm:$0xff]
      %v4338 = vld [vmem:[%s4280 + $0x1c8] sm:$0xff]
      %v4339 = vld [vmem:[%s4280 + $0x1d0] sm:$0xff]
      %v4340 = vld [vmem:[%s4280 + $0x1d8] sm:$0xff]
      %v4341 = vld [vmem:[%s4280 + $0x1e0] sm:$0xff]
      %v4342 = vld [vmem:[%s4280 + $0x1e8] sm:$0xff]
      %v4343 = vld [vmem:[%s4280 + $0x1f0] sm:$0xff]
      %v4344 = vld [vmem:[%s4280 + $0x1f8] sm:$0xff]
      %v4345 = vrot.slane %v3847, 3
      %v4346 = vrot.slane %v3849, 3
      %v4347 = vsel %vm511, %v4345, %v4346
      %v4348 = vrot.slane %v3848, 3
      %v4349 = vrot.slane %v3850, 3
      %v4350 = vsel %vm511, %v4348, %v4349
      %4353 = vmatprep.subr.mxu0 %v4282
      %4354 = vmatpush1.msra.mxu0 %v4281
      %4355 = vmatprep.subr.mxu0 %v4284
      %4356 = vmatpush1.msra.mxu0 %v4283
      %4357 = vmatprep.subr.mxu0 %v4286
      %4358 = vmatpush1.msra.mxu0 %v4285
      %4359 = vmatprep.subr.mxu0 %v4288
      %4360 = vmatpush1.msra.mxu0 %v4287
      %4361 = vmatprep.subr.mxu0 %v4290
      %4362 = vmatpush1.msra.mxu0 %v4289
      %4363 = vmatprep.subr.mxu0 %v4292
      %4364 = vmatpush1.msra.mxu0 %v4291
      %4365 = vmatprep.subr.mxu0 %v4294
      %4366 = vmatpush1.msra.mxu0 %v4293
      %4367 = vmatprep.subr.mxu0 %v4296
      %4368 = vmatpush1.msra.mxu0 %v4295
      %4369 = vmatprep.subr.mxu0 %v4298
      %4370 = vmatpush1.msra.mxu0 %v4297
      %4371 = vmatprep.subr.mxu0 %v4300
      %4372 = vmatpush1.msra.mxu0 %v4299
      %4373 = vmatprep.subr.mxu0 %v4302
      %4374 = vmatpush1.msra.mxu0 %v4301
      %4375 = vmatprep.subr.mxu0 %v4304
      %4376 = vmatpush1.msra.mxu0 %v4303
      %4377 = vmatprep.subr.mxu0 %v4306
      %4378 = vmatpush1.msra.mxu0 %v4305
      %4379 = vmatprep.subr.mxu0 %v4308
      %4380 = vmatpush1.msra.mxu0 %v4307
      %4381 = vmatprep.subr.mxu0 %v4310
      %4382 = vmatpush1.msra.mxu0 %v4309
      %4383 = vmatprep.subr.mxu0 %v4312
      %4384 = vmatpush1.msra.mxu0 %v4311
      %4385 = vmatprep.subr.mxu0 %v4314
      %4386 = vmatpush1.msra.mxu0 %v4313
      %4387 = vmatprep.subr.mxu0 %v4316
      %4388 = vmatpush1.msra.mxu0 %v4315
      %4389 = vmatprep.subr.mxu0 %v4318
      %4390 = vmatpush1.msra.mxu0 %v4317
      %4391 = vmatprep.subr.mxu0 %v4320
      %4392 = vmatpush1.msra.mxu0 %v4319
      %4393 = vmatprep.subr.mxu0 %v4322
      %4394 = vmatpush1.msra.mxu0 %v4321
      %4395 = vmatprep.subr.mxu0 %v4324
      %4396 = vmatpush1.msra.mxu0 %v4323
      %4397 = vmatprep.subr.mxu0 %v4326
      %4398 = vmatpush1.msra.mxu0 %v4325
      %4399 = vmatprep.subr.mxu0 %v4328
      %4400 = vmatpush1.msra.mxu0 %v4327
      %4401 = vmatprep.subr.mxu0 %v4330
      %4402 = vmatpush1.msra.mxu0 %v4329
      %4403 = vmatprep.subr.mxu0 %v4332
      %4404 = vmatpush1.msra.mxu0 %v4331
      %4405 = vmatprep.subr.mxu0 %v4334
      %4406 = vmatpush1.msra.mxu0 %v4333
      %4407 = vmatprep.subr.mxu0 %v4336
      %4408 = vmatpush1.msra.mxu0 %v4335
      %4409 = vmatprep.subr.mxu0 %v4338
      %4410 = vmatpush1.msra.mxu0 %v4337
      %4411 = vmatprep.subr.mxu0 %v4340
      %4412 = vmatpush1.msra.mxu0 %v4339
      %4413 = vmatprep.subr.mxu0 %v4342
      %4414 = vmatpush1.msra.mxu0 %v4341
      %4415 = vmatprep.subr.mxu0 %v4344
      %4416 = vmatpush1.msra.mxu0 %v4343
      %4417 = vmatprep.mubr.f32.mxu0 %v4350
      %4418 = vmatmul.mubr.f32.gmra.mrb[0].mxu0 %v4347
      %v4419 = vpop.f32.mrb[0].mxu0
      %v4420 = vadd.f32 0.0, %v4419
      %v4421 = vpop.f32.mrb[0].mxu0
      %v4422 = vadd.f32 0.0, %v4421
      %4423 = vdwg.mxu0
      %v4424 = vadd.f32 %v4278, %v4420
      %v4425 = vadd.f32 %v4279, %v4422
      %s4426 = scalar_lea.vmem %s6, 2048
      %v4427 = vld [vmem:[%s4426] sm:$0xff]
      %v4428 = vld [vmem:[%s4426 + $0x8] sm:$0xff]
      %v4429 = vld [vmem:[%s4426 + $0x10] sm:$0xff]
      %v4430 = vld [vmem:[%s4426 + $0x18] sm:$0xff]
      %v4431 = vld [vmem:[%s4426 + $0x20] sm:$0xff]
      %v4432 = vld [vmem:[%s4426 + $0x28] sm:$0xff]
      %v4433 = vld [vmem:[%s4426 + $0x30] sm:$0xff]
      %v4434 = vld [vmem:[%s4426 + $0x38] sm:$0xff]
      %v4435 = vld [vmem:[%s4426 + $0x40] sm:$0xff]
      %v4436 = vld [vmem:[%s4426 + $0x48] sm:$0xff]
      %v4437 = vld [vmem:[%s4426 + $0x50] sm:$0xff]
      %v4438 = vld [vmem:[%s4426 + $0x58] sm:$0xff]
      %v4439 = vld [vmem:[%s4426 + $0x60] sm:$0xff]
      %v4440 = vld [vmem:[%s4426 + $0x68] sm:$0xff]
      %v4441 = vld [vmem:[%s4426 + $0x70] sm:$0xff]
      %v4442 = vld [vmem:[%s4426 + $0x78] sm:$0xff]
      %v4443 = vld [vmem:[%s4426 + $0x80] sm:$0xff]
      %v4444 = vld [vmem:[%s4426 + $0x88] sm:$0xff]
      %v4445 = vld [vmem:[%s4426 + $0x90] sm:$0xff]
      %v4446 = vld [vmem:[%s4426 + $0x98] sm:$0xff]
      %v4447 = vld [vmem:[%s4426 + $0xa0] sm:$0xff]
      %v4448 = vld [vmem:[%s4426 + $0xa8] sm:$0xff]
      %v4449 = vld [vmem:[%s4426 + $0xb0] sm:$0xff]
      %v4450 = vld [vmem:[%s4426 + $0xb8] sm:$0xff]
      %v4451 = vld [vmem:[%s4426 + $0xc0] sm:$0xff]
      %v4452 = vld [vmem:[%s4426 + $0xc8] sm:$0xff]
      %v4453 = vld [vmem:[%s4426 + $0xd0] sm:$0xff]
      %v4454 = vld [vmem:[%s4426 + $0xd8] sm:$0xff]
      %v4455 = vld [vmem:[%s4426 + $0xe0] sm:$0xff]
      %v4456 = vld [vmem:[%s4426 + $0xe8] sm:$0xff]
      %v4457 = vld [vmem:[%s4426 + $0xf0] sm:$0xff]
      %v4458 = vld [vmem:[%s4426 + $0xf8] sm:$0xff]
      %v4459 = vld [vmem:[%s4426 + $0x100] sm:$0xff]
      %v4460 = vld [vmem:[%s4426 + $0x108] sm:$0xff]
      %v4461 = vld [vmem:[%s4426 + $0x110] sm:$0xff]
      %v4462 = vld [vmem:[%s4426 + $0x118] sm:$0xff]
      %v4463 = vld [vmem:[%s4426 + $0x120] sm:$0xff]
      %v4464 = vld [vmem:[%s4426 + $0x128] sm:$0xff]
      %v4465 = vld [vmem:[%s4426 + $0x130] sm:$0xff]
      %v4466 = vld [vmem:[%s4426 + $0x138] sm:$0xff]
      %v4467 = vld [vmem:[%s4426 + $0x140] sm:$0xff]
      %v4468 = vld [vmem:[%s4426 + $0x148] sm:$0xff]
      %v4469 = vld [vmem:[%s4426 + $0x150] sm:$0xff]
      %v4470 = vld [vmem:[%s4426 + $0x158] sm:$0xff]
      %v4471 = vld [vmem:[%s4426 + $0x160] sm:$0xff]
      %v4472 = vld [vmem:[%s4426 + $0x168] sm:$0xff]
      %v4473 = vld [vmem:[%s4426 + $0x170] sm:$0xff]
      %v4474 = vld [vmem:[%s4426 + $0x178] sm:$0xff]
      %v4475 = vld [vmem:[%s4426 + $0x180] sm:$0xff]
      %v4476 = vld [vmem:[%s4426 + $0x188] sm:$0xff]
      %v4477 = vld [vmem:[%s4426 + $0x190] sm:$0xff]
      %v4478 = vld [vmem:[%s4426 + $0x198] sm:$0xff]
      %v4479 = vld [vmem:[%s4426 + $0x1a0] sm:$0xff]
      %v4480 = vld [vmem:[%s4426 + $0x1a8] sm:$0xff]
      %v4481 = vld [vmem:[%s4426 + $0x1b0] sm:$0xff]
      %v4482 = vld [vmem:[%s4426 + $0x1b8] sm:$0xff]
      %v4483 = vld [vmem:[%s4426 + $0x1c0] sm:$0xff]
      %v4484 = vld [vmem:[%s4426 + $0x1c8] sm:$0xff]
      %v4485 = vld [vmem:[%s4426 + $0x1d0] sm:$0xff]
      %v4486 = vld [vmem:[%s4426 + $0x1d8] sm:$0xff]
      %v4487 = vld [vmem:[%s4426 + $0x1e0] sm:$0xff]
      %v4488 = vld [vmem:[%s4426 + $0x1e8] sm:$0xff]
      %v4489 = vld [vmem:[%s4426 + $0x1f0] sm:$0xff]
      %v4490 = vld [vmem:[%s4426 + $0x1f8] sm:$0xff]
      %v4491 = vrot.slane %v3847, 4
      %v4492 = vrot.slane %v3849, 4
      %v4493 = vsel %vm736, %v4491, %v4492
      %v4494 = vrot.slane %v3848, 4
      %v4495 = vrot.slane %v3850, 4
      %v4496 = vsel %vm736, %v4494, %v4495
      %4499 = vmatprep.subr.mxu0 %v4428
      %4500 = vmatpush1.msra.mxu0 %v4427
      %4501 = vmatprep.subr.mxu0 %v4430
      %4502 = vmatpush1.msra.mxu0 %v4429
      %4503 = vmatprep.subr.mxu0 %v4432
      %4504 = vmatpush1.msra.mxu0 %v4431
      %4505 = vmatprep.subr.mxu0 %v4434
      %4506 = vmatpush1.msra.mxu0 %v4433
      %4507 = vmatprep.subr.mxu0 %v4436
      %4508 = vmatpush1.msra.mxu0 %v4435
      %4509 = vmatprep.subr.mxu0 %v4438
      %4510 = vmatpush1.msra.mxu0 %v4437
      %4511 = vmatprep.subr.mxu0 %v4440
      %4512 = vmatpush1.msra.mxu0 %v4439
      %4513 = vmatprep.subr.mxu0 %v4442
      %4514 = vmatpush1.msra.mxu0 %v4441
      %4515 = vmatprep.subr.mxu0 %v4444
      %4516 = vmatpush1.msra.mxu0 %v4443
      %4517 = vmatprep.subr.mxu0 %v4446
      %4518 = vmatpush1.msra.mxu0 %v4445
      %4519 = vmatprep.subr.mxu0 %v4448
      %4520 = vmatpush1.msra.mxu0 %v4447
      %4521 = vmatprep.subr.mxu0 %v4450
      %4522 = vmatpush1.msra.mxu0 %v4449
      %4523 = vmatprep.subr.mxu0 %v4452
      %4524 = vmatpush1.msra.mxu0 %v4451
      %4525 = vmatprep.subr.mxu0 %v4454
      %4526 = vmatpush1.msra.mxu0 %v4453
      %4527 = vmatprep.subr.mxu0 %v4456
      %4528 = vmatpush1.msra.mxu0 %v4455
      %4529 = vmatprep.subr.mxu0 %v4458
      %4530 = vmatpush1.msra.mxu0 %v4457
      %4531 = vmatprep.subr.mxu0 %v4460
      %4532 = vmatpush1.msra.mxu0 %v4459
      %4533 = vmatprep.subr.mxu0 %v4462
      %4534 = vmatpush1.msra.mxu0 %v4461
      %4535 = vmatprep.subr.mxu0 %v4464
      %4536 = vmatpush1.msra.mxu0 %v4463
      %4537 = vmatprep.subr.mxu0 %v4466
      %4538 = vmatpush1.msra.mxu0 %v4465
      %4539 = vmatprep.subr.mxu0 %v4468
      %4540 = vmatpush1.msra.mxu0 %v4467
      %4541 = vmatprep.subr.mxu0 %v4470
      %4542 = vmatpush1.msra.mxu0 %v4469
      %4543 = vmatprep.subr.mxu0 %v4472
      %4544 = vmatpush1.msra.mxu0 %v4471
      %4545 = vmatprep.subr.mxu0 %v4474
      %4546 = vmatpush1.msra.mxu0 %v4473
      %4547 = vmatprep.subr.mxu0 %v4476
      %4548 = vmatpush1.msra.mxu0 %v4475
      %4549 = vmatprep.subr.mxu0 %v4478
      %4550 = vmatpush1.msra.mxu0 %v4477
      %4551 = vmatprep.subr.mxu0 %v4480
      %4552 = vmatpush1.msra.mxu0 %v4479
      %4553 = vmatprep.subr.mxu0 %v4482
      %4554 = vmatpush1.msra.mxu0 %v4481
      %4555 = vmatprep.subr.mxu0 %v4484
      %4556 = vmatpush1.msra.mxu0 %v4483
      %4557 = vmatprep.subr.mxu0 %v4486
      %4558 = vmatpush1.msra.mxu0 %v4485
      %4559 = vmatprep.subr.mxu0 %v4488
      %4560 = vmatpush1.msra.mxu0 %v4487
      %4561 = vmatprep.subr.mxu0 %v4490
      %4562 = vmatpush1.msra.mxu0 %v4489
      %4563 = vmatprep.mubr.f32.mxu0 %v4496
      %4564 = vmatmul.mubr.f32.gmra.mrb[0].mxu0 %v4493
      %v4565 = vpop.f32.mrb[0].mxu0
      %v4566 = vadd.f32 0.0, %v4565
      %v4567 = vpop.f32.mrb[0].mxu0
      %v4568 = vadd.f32 0.0, %v4567
      %4569 = vdwg.mxu0
      %v4570 = vadd.f32 %v4424, %v4566
      %v4571 = vadd.f32 %v4425, %v4568
      %s4572 = scalar_lea.vmem %s6, 2560
      %v4573 = vld [vmem:[%s4572] sm:$0xff]
      %v4574 = vld [vmem:[%s4572 + $0x8] sm:$0xff]
      %v4575 = vld [vmem:[%s4572 + $0x10] sm:$0xff]
      %v4576 = vld [vmem:[%s4572 + $0x18] sm:$0xff]
      %v4577 = vld [vmem:[%s4572 + $0x20] sm:$0xff]
      %v4578 = vld [vmem:[%s4572 + $0x28] sm:$0xff]
      %v4579 = vld [vmem:[%s4572 + $0x30] sm:$0xff]
      %v4580 = vld [vmem:[%s4572 + $0x38] sm:$0xff]
      %v4581 = vld [vmem:[%s4572 + $0x40] sm:$0xff]
      %v4582 = vld [vmem:[%s4572 + $0x48] sm:$0xff]
      %v4583 = vld [vmem:[%s4572 + $0x50] sm:$0xff]
      %v4584 = vld [vmem:[%s4572 + $0x58] sm:$0xff]
      %v4585 = vld [vmem:[%s4572 + $0x60] sm:$0xff]
      %v4586 = vld [vmem:[%s4572 + $0x68] sm:$0xff]
      %v4587 = vld [vmem:[%s4572 + $0x70] sm:$0xff]
      %v4588 = vld [vmem:[%s4572 + $0x78] sm:$0xff]
      %v4589 = vld [vmem:[%s4572 + $0x80] sm:$0xff]
      %v4590 = vld [vmem:[%s4572 + $0x88] sm:$0xff]
      %v4591 = vld [vmem:[%s4572 + $0x90] sm:$0xff]
      %v4592 = vld [vmem:[%s4572 + $0x98] sm:$0xff]
      %v4593 = vld [vmem:[%s4572 + $0xa0] sm:$0xff]
      %v4594 = vld [vmem:[%s4572 + $0xa8] sm:$0xff]
      %v4595 = vld [vmem:[%s4572 + $0xb0] sm:$0xff]
      %v4596 = vld [vmem:[%s4572 + $0xb8] sm:$0xff]
      %v4597 = vld [vmem:[%s4572 + $0xc0] sm:$0xff]
      %v4598 = vld [vmem:[%s4572 + $0xc8] sm:$0xff]
      %v4599 = vld [vmem:[%s4572 + $0xd0] sm:$0xff]
      %v4600 = vld [vmem:[%s4572 + $0xd8] sm:$0xff]
      %v4601 = vld [vmem:[%s4572 + $0xe0] sm:$0xff]
      %v4602 = vld [vmem:[%s4572 + $0xe8] sm:$0xff]
      %v4603 = vld [vmem:[%s4572 + $0xf0] sm:$0xff]
      %v4604 = vld [vmem:[%s4572 + $0xf8] sm:$0xff]
      %v4605 = vld [vmem:[%s4572 + $0x100] sm:$0xff]
      %v4606 = vld [vmem:[%s4572 + $0x108] sm:$0xff]
      %v4607 = vld [vmem:[%s4572 + $0x110] sm:$0xff]
      %v4608 = vld [vmem:[%s4572 + $0x118] sm:$0xff]
      %v4609 = vld [vmem:[%s4572 + $0x120] sm:$0xff]
      %v4610 = vld [vmem:[%s4572 + $0x128] sm:$0xff]
      %v4611 = vld [vmem:[%s4572 + $0x130] sm:$0xff]
      %v4612 = vld [vmem:[%s4572 + $0x138] sm:$0xff]
      %v4613 = vld [vmem:[%s4572 + $0x140] sm:$0xff]
      %v4614 = vld [vmem:[%s4572 + $0x148] sm:$0xff]
      %v4615 = vld [vmem:[%s4572 + $0x150] sm:$0xff]
      %v4616 = vld [vmem:[%s4572 + $0x158] sm:$0xff]
      %v4617 = vld [vmem:[%s4572 + $0x160] sm:$0xff]
      %v4618 = vld [vmem:[%s4572 + $0x168] sm:$0xff]
      %v4619 = vld [vmem:[%s4572 + $0x170] sm:$0xff]
      %v4620 = vld [vmem:[%s4572 + $0x178] sm:$0xff]
      %v4621 = vld [vmem:[%s4572 + $0x180] sm:$0xff]
      %v4622 = vld [vmem:[%s4572 + $0x188] sm:$0xff]
      %v4623 = vld [vmem:[%s4572 + $0x190] sm:$0xff]
      %v4624 = vld [vmem:[%s4572 + $0x198] sm:$0xff]
      %v4625 = vld [vmem:[%s4572 + $0x1a0] sm:$0xff]
      %v4626 = vld [vmem:[%s4572 + $0x1a8] sm:$0xff]
      %v4627 = vld [vmem:[%s4572 + $0x1b0] sm:$0xff]
      %v4628 = vld [vmem:[%s4572 + $0x1b8] sm:$0xff]
      %v4629 = vld [vmem:[%s4572 + $0x1c0] sm:$0xff]
      %v4630 = vld [vmem:[%s4572 + $0x1c8] sm:$0xff]
      %v4631 = vld [vmem:[%s4572 + $0x1d0] sm:$0xff]
      %v4632 = vld [vmem:[%s4572 + $0x1d8] sm:$0xff]
      %v4633 = vld [vmem:[%s4572 + $0x1e0] sm:$0xff]
      %v4634 = vld [vmem:[%s4572 + $0x1e8] sm:$0xff]
      %v4635 = vld [vmem:[%s4572 + $0x1f0] sm:$0xff]
      %v4636 = vld [vmem:[%s4572 + $0x1f8] sm:$0xff]
      %v4637 = vrot.slane %v3847, 5
      %v4638 = vrot.slane %v3849, 5
      %v4639 = vsel %vm1965, %v4637, %v4638
      %v4640 = vrot.slane %v3848, 5
      %v4641 = vrot.slane %v3850, 5
      %v4642 = vsel %vm1965, %v4640, %v4641
      %4645 = vmatprep.subr.mxu0 %v4574
      %4646 = vmatpush1.msra.mxu0 %v4573
      %4647 = vmatprep.subr.mxu0 %v4576
      %4648 = vmatpush1.msra.mxu0 %v4575
      %4649 = vmatprep.subr.mxu0 %v4578
      %4650 = vmatpush1.msra.mxu0 %v4577
      %4651 = vmatprep.subr.mxu0 %v4580
      %4652 = vmatpush1.msra.mxu0 %v4579
      %4653 = vmatprep.subr.mxu0 %v4582
      %4654 = vmatpush1.msra.mxu0 %v4581
      %4655 = vmatprep.subr.mxu0 %v4584
      %4656 = vmatpush1.msra.mxu0 %v4583
      %4657 = vmatprep.subr.mxu0 %v4586
      %4658 = vmatpush1.msra.mxu0 %v4585
      %4659 = vmatprep.subr.mxu0 %v4588
      %4660 = vmatpush1.msra.mxu0 %v4587
      %4661 = vmatprep.subr.mxu0 %v4590
      %4662 = vmatpush1.msra.mxu0 %v4589
      %4663 = vmatprep.subr.mxu0 %v4592
      %4664 = vmatpush1.msra.mxu0 %v4591
      %4665 = vmatprep.subr.mxu0 %v4594
      %4666 = vmatpush1.msra.mxu0 %v4593
      %4667 = vmatprep.subr.mxu0 %v4596
      %4668 = vmatpush1.msra.mxu0 %v4595
      %4669 = vmatprep.subr.mxu0 %v4598
      %4670 = vmatpush1.msra.mxu0 %v4597
      %4671 = vmatprep.subr.mxu0 %v4600
      %4672 = vmatpush1.msra.mxu0 %v4599
      %4673 = vmatprep.subr.mxu0 %v4602
      %4674 = vmatpush1.msra.mxu0 %v4601
      %4675 = vmatprep.subr.mxu0 %v4604
      %4676 = vmatpush1.msra.mxu0 %v4603
      %4677 = vmatprep.subr.mxu0 %v4606
      %4678 = vmatpush1.msra.mxu0 %v4605
      %4679 = vmatprep.subr.mxu0 %v4608
      %4680 = vmatpush1.msra.mxu0 %v4607
      %4681 = vmatprep.subr.mxu0 %v4610
      %4682 = vmatpush1.msra.mxu0 %v4609
      %4683 = vmatprep.subr.mxu0 %v4612
      %4684 = vmatpush1.msra.mxu0 %v4611
      %4685 = vmatprep.subr.mxu0 %v4614
      %4686 = vmatpush1.msra.mxu0 %v4613
      %4687 = vmatprep.subr.mxu0 %v4616
      %4688 = vmatpush1.msra.mxu0 %v4615
      %4689 = vmatprep.subr.mxu0 %v4618
      %4690 = vmatpush1.msra.mxu0 %v4617
      %4691 = vmatprep.subr.mxu0 %v4620
      %4692 = vmatpush1.msra.mxu0 %v4619
      %4693 = vmatprep.subr.mxu0 %v4622
      %4694 = vmatpush1.msra.mxu0 %v4621
      %4695 = vmatprep.subr.mxu0 %v4624
      %4696 = vmatpush1.msra.mxu0 %v4623
      %4697 = vmatprep.subr.mxu0 %v4626
      %4698 = vmatpush1.msra.mxu0 %v4625
      %4699 = vmatprep.subr.mxu0 %v4628
      %4700 = vmatpush1.msra.mxu0 %v4627
      %4701 = vmatprep.subr.mxu0 %v4630
      %4702 = vmatpush1.msra.mxu0 %v4629
      %4703 = vmatprep.subr.mxu0 %v4632
      %4704 = vmatpush1.msra.mxu0 %v4631
      %4705 = vmatprep.subr.mxu0 %v4634
      %4706 = vmatpush1.msra.mxu0 %v4633
      %4707 = vmatprep.subr.mxu0 %v4636
      %4708 = vmatpush1.msra.mxu0 %v4635
      %4709 = vmatprep.mubr.f32.mxu0 %v4642
      %4710 = vmatmul.mubr.f32.gmra.mrb[0].mxu0 %v4639
      %v4711 = vpop.f32.mrb[0].mxu0
      %v4712 = vadd.f32 0.0, %v4711
      %v4713 = vpop.f32.mrb[0].mxu0
      %v4714 = vadd.f32 0.0, %v4713
      %4715 = vdwg.mxu0
      %v4716 = vadd.f32 %v4570, %v4712
      %v4717 = vadd.f32 %v4571, %v4714
      %s4718 = scalar_lea.vmem %s6, 3072
      %v4719 = vld [vmem:[%s4718] sm:$0xff]
      %v4720 = vld [vmem:[%s4718 + $0x8] sm:$0xff]
      %v4721 = vld [vmem:[%s4718 + $0x10] sm:$0xff]
      %v4722 = vld [vmem:[%s4718 + $0x18] sm:$0xff]
      %v4723 = vld [vmem:[%s4718 + $0x20] sm:$0xff]
      %v4724 = vld [vmem:[%s4718 + $0x28] sm:$0xff]
      %v4725 = vld [vmem:[%s4718 + $0x30] sm:$0xff]
      %v4726 = vld [vmem:[%s4718 + $0x38] sm:$0xff]
      %v4727 = vld [vmem:[%s4718 + $0x40] sm:$0xff]
      %v4728 = vld [vmem:[%s4718 + $0x48] sm:$0xff]
      %v4729 = vld [vmem:[%s4718 + $0x50] sm:$0xff]
      %v4730 = vld [vmem:[%s4718 + $0x58] sm:$0xff]
      %v4731 = vld [vmem:[%s4718 + $0x60] sm:$0xff]
      %v4732 = vld [vmem:[%s4718 + $0x68] sm:$0xff]
      %v4733 = vld [vmem:[%s4718 + $0x70] sm:$0xff]
      %v4734 = vld [vmem:[%s4718 + $0x78] sm:$0xff]
      %v4735 = vld [vmem:[%s4718 + $0x80] sm:$0xff]
      %v4736 = vld [vmem:[%s4718 + $0x88] sm:$0xff]
      %v4737 = vld [vmem:[%s4718 + $0x90] sm:$0xff]
      %v4738 = vld [vmem:[%s4718 + $0x98] sm:$0xff]
      %v4739 = vld [vmem:[%s4718 + $0xa0] sm:$0xff]
      %v4740 = vld [vmem:[%s4718 + $0xa8] sm:$0xff]
      %v4741 = vld [vmem:[%s4718 + $0xb0] sm:$0xff]
      %v4742 = vld [vmem:[%s4718 + $0xb8] sm:$0xff]
      %v4743 = vld [vmem:[%s4718 + $0xc0] sm:$0xff]
      %v4744 = vld [vmem:[%s4718 + $0xc8] sm:$0xff]
      %v4745 = vld [vmem:[%s4718 + $0xd0] sm:$0xff]
      %v4746 = vld [vmem:[%s4718 + $0xd8] sm:$0xff]
      %v4747 = vld [vmem:[%s4718 + $0xe0] sm:$0xff]
      %v4748 = vld [vmem:[%s4718 + $0xe8] sm:$0xff]
      %v4749 = vld [vmem:[%s4718 + $0xf0] sm:$0xff]
      %v4750 = vld [vmem:[%s4718 + $0xf8] sm:$0xff]
      %v4751 = vld [vmem:[%s4718 + $0x100] sm:$0xff]
      %v4752 = vld [vmem:[%s4718 + $0x108] sm:$0xff]
      %v4753 = vld [vmem:[%s4718 + $0x110] sm:$0xff]
      %v4754 = vld [vmem:[%s4718 + $0x118] sm:$0xff]
      %v4755 = vld [vmem:[%s4718 + $0x120] sm:$0xff]
      %v4756 = vld [vmem:[%s4718 + $0x128] sm:$0xff]
      %v4757 = vld [vmem:[%s4718 + $0x130] sm:$0xff]
      %v4758 = vld [vmem:[%s4718 + $0x138] sm:$0xff]
      %v4759 = vld [vmem:[%s4718 + $0x140] sm:$0xff]
      %v4760 = vld [vmem:[%s4718 + $0x148] sm:$0xff]
      %v4761 = vld [vmem:[%s4718 + $0x150] sm:$0xff]
      %v4762 = vld [vmem:[%s4718 + $0x158] sm:$0xff]
      %v4763 = vld [vmem:[%s4718 + $0x160] sm:$0xff]
      %v4764 = vld [vmem:[%s4718 + $0x168] sm:$0xff]
      %v4765 = vld [vmem:[%s4718 + $0x170] sm:$0xff]
      %v4766 = vld [vmem:[%s4718 + $0x178] sm:$0xff]
      %v4767 = vld [vmem:[%s4718 + $0x180] sm:$0xff]
      %v4768 = vld [vmem:[%s4718 + $0x188] sm:$0xff]
      %v4769 = vld [vmem:[%s4718 + $0x190] sm:$0xff]
      %v4770 = vld [vmem:[%s4718 + $0x198] sm:$0xff]
      %v4771 = vld [vmem:[%s4718 + $0x1a0] sm:$0xff]
      %v4772 = vld [vmem:[%s4718 + $0x1a8] sm:$0xff]
      %v4773 = vld [vmem:[%s4718 + $0x1b0] sm:$0xff]
      %v4774 = vld [vmem:[%s4718 + $0x1b8] sm:$0xff]
      %v4775 = vld [vmem:[%s4718 + $0x1c0] sm:$0xff]
      %v4776 = vld [vmem:[%s4718 + $0x1c8] sm:$0xff]
      %v4777 = vld [vmem:[%s4718 + $0x1d0] sm:$0xff]
      %v4778 = vld [vmem:[%s4718 + $0x1d8] sm:$0xff]
      %v4779 = vld [vmem:[%s4718 + $0x1e0] sm:$0xff]
      %v4780 = vld [vmem:[%s4718 + $0x1e8] sm:$0xff]
      %v4781 = vld [vmem:[%s4718 + $0x1f0] sm:$0xff]
      %v4782 = vld [vmem:[%s4718 + $0x1f8] sm:$0xff]
      %v4783 = vrot.slane %v3847, 6
      %v4784 = vrot.slane %v3849, 6
      %v4785 = vsel %vm3753, %v4783, %v4784
      %v4786 = vrot.slane %v3848, 6
      %v4787 = vrot.slane %v3850, 6
      %v4788 = vsel %vm3753, %v4786, %v4787
      %4791 = vmatprep.subr.mxu0 %v4720
      %4792 = vmatpush1.msra.mxu0 %v4719
      %4793 = vmatprep.subr.mxu0 %v4722
      %4794 = vmatpush1.msra.mxu0 %v4721
      %4795 = vmatprep.subr.mxu0 %v4724
      %4796 = vmatpush1.msra.mxu0 %v4723
      %4797 = vmatprep.subr.mxu0 %v4726
      %4798 = vmatpush1.msra.mxu0 %v4725
      %4799 = vmatprep.subr.mxu0 %v4728
      %4800 = vmatpush1.msra.mxu0 %v4727
      %4801 = vmatprep.subr.mxu0 %v4730
      %4802 = vmatpush1.msra.mxu0 %v4729
      %4803 = vmatprep.subr.mxu0 %v4732
      %4804 = vmatpush1.msra.mxu0 %v4731
      %4805 = vmatprep.subr.mxu0 %v4734
      %4806 = vmatpush1.msra.mxu0 %v4733
      %4807 = vmatprep.subr.mxu0 %v4736
      %4808 = vmatpush1.msra.mxu0 %v4735
      %4809 = vmatprep.subr.mxu0 %v4738
      %4810 = vmatpush1.msra.mxu0 %v4737
      %4811 = vmatprep.subr.mxu0 %v4740
      %4812 = vmatpush1.msra.mxu0 %v4739
      %4813 = vmatprep.subr.mxu0 %v4742
      %4814 = vmatpush1.msra.mxu0 %v4741
      %4815 = vmatprep.subr.mxu0 %v4744
      %4816 = vmatpush1.msra.mxu0 %v4743
      %4817 = vmatprep.subr.mxu0 %v4746
      %4818 = vmatpush1.msra.mxu0 %v4745
      %4819 = vmatprep.subr.mxu0 %v4748
      %4820 = vmatpush1.msra.mxu0 %v4747
      %4821 = vmatprep.subr.mxu0 %v4750
      %4822 = vmatpush1.msra.mxu0 %v4749
      %4823 = vmatprep.subr.mxu0 %v4752
      %4824 = vmatpush1.msra.mxu0 %v4751
      %4825 = vmatprep.subr.mxu0 %v4754
      %4826 = vmatpush1.msra.mxu0 %v4753
      %4827 = vmatprep.subr.mxu0 %v4756
      %4828 = vmatpush1.msra.mxu0 %v4755
      %4829 = vmatprep.subr.mxu0 %v4758
      %4830 = vmatpush1.msra.mxu0 %v4757
      %4831 = vmatprep.subr.mxu0 %v4760
      %4832 = vmatpush1.msra.mxu0 %v4759
      %4833 = vmatprep.subr.mxu0 %v4762
      %4834 = vmatpush1.msra.mxu0 %v4761
      %4835 = vmatprep.subr.mxu0 %v4764
      %4836 = vmatpush1.msra.mxu0 %v4763
      %4837 = vmatprep.subr.mxu0 %v4766
      %4838 = vmatpush1.msra.mxu0 %v4765
      %4839 = vmatprep.subr.mxu0 %v4768
      %4840 = vmatpush1.msra.mxu0 %v4767
      %4841 = vmatprep.subr.mxu0 %v4770
      %4842 = vmatpush1.msra.mxu0 %v4769
      %4843 = vmatprep.subr.mxu0 %v4772
      %4844 = vmatpush1.msra.mxu0 %v4771
      %4845 = vmatprep.subr.mxu0 %v4774
      %4846 = vmatpush1.msra.mxu0 %v4773
      %4847 = vmatprep.subr.mxu0 %v4776
      %4848 = vmatpush1.msra.mxu0 %v4775
      %4849 = vmatprep.subr.mxu0 %v4778
      %4850 = vmatpush1.msra.mxu0 %v4777
      %4851 = vmatprep.subr.mxu0 %v4780
      %4852 = vmatpush1.msra.mxu0 %v4779
      %4853 = vmatprep.subr.mxu0 %v4782
      %4854 = vmatpush1.msra.mxu0 %v4781
      %4855 = vmatprep.mubr.f32.mxu0 %v4788
      %4856 = vmatmul.mubr.f32.gmra.mrb[0].mxu0 %v4785
      %v4857 = vpop.f32.mrb[0].mxu0
      %v4858 = vadd.f32 0.0, %v4857
      %v4859 = vpop.f32.mrb[0].mxu0
      %v4860 = vadd.f32 0.0, %v4859
      %4861 = vdwg.mxu0
      %v4862 = vadd.f32 %v4716, %v4858
      %v4863 = vadd.f32 %v4717, %v4860
      %4864 = vmatprep.subr.mxu0 %v311
      %4865 = vmatpush1.msra.mxu0 %v310
      %4866 = vmatprep.subr.mxu0 %v313
      %4867 = vmatpush1.msra.mxu0 %v312
      %4868 = vmatprep.subr.mxu0 %v315
      %4869 = vmatpush1.msra.mxu0 %v314
      %4870 = vmatprep.subr.mxu0 %v317
      %4871 = vmatpush1.msra.mxu0 %v316
      %4872 = vmatprep.subr.mxu0 %v319
      %4873 = vmatpush1.msra.mxu0 %v318
      %4874 = vmatprep.subr.mxu0 %v321
      %4875 = vmatpush1.msra.mxu0 %v320
      %4876 = vmatprep.subr.mxu0 %v323
      %4877 = vmatpush1.msra.mxu0 %v322
      %4878 = vmatprep.subr.mxu0 %v325
      %4879 = vmatpush1.msra.mxu0 %v324
      %4880 = vmatprep.subr.mxu0 %v327
      %4881 = vmatpush1.msra.mxu0 %v326
      %4882 = vmatprep.subr.mxu0 %v329
      %4883 = vmatpush1.msra.mxu0 %v328
      %4884 = vmatprep.subr.mxu0 %v331
      %4885 = vmatpush1.msra.mxu0 %v330
      %4886 = vmatprep.subr.mxu0 %v333
      %4887 = vmatpush1.msra.mxu0 %v332
      %4888 = vmatprep.subr.mxu0 %v335
      %4889 = vmatpush1.msra.mxu0 %v334
      %4890 = vmatprep.subr.mxu0 %v337
      %4891 = vmatpush1.msra.mxu0 %v336
      %4892 = vmatprep.subr.mxu0 %v339
      %4893 = vmatpush1.msra.mxu0 %v338
      %4894 = vmatprep.subr.mxu0 %v341
      %4895 = vmatpush1.msra.mxu0 %v340
      %4896 = vmatprep.subr.mxu0 %v343
      %4897 = vmatpush1.msra.mxu0 %v342
      %4898 = vmatprep.subr.mxu0 %v345
      %4899 = vmatpush1.msra.mxu0 %v344
      %4900 = vmatprep.subr.mxu0 %v347
      %4901 = vmatpush1.msra.mxu0 %v346
      %4902 = vmatprep.subr.mxu0 %v349
      %4903 = vmatpush1.msra.mxu0 %v348
      %4904 = vmatprep.subr.mxu0 %v351
      %4905 = vmatpush1.msra.mxu0 %v350
      %4906 = vmatprep.subr.mxu0 %v353
      %4907 = vmatpush1.msra.mxu0 %v352
      %4908 = vmatprep.subr.mxu0 %v355
      %4909 = vmatpush1.msra.mxu0 %v354
      %4910 = vmatprep.subr.mxu0 %v357
      %4911 = vmatpush1.msra.mxu0 %v356
      %4912 = vmatprep.subr.mxu0 %v359
      %4913 = vmatpush1.msra.mxu0 %v358
      %4914 = vmatprep.subr.mxu0 %v361
      %4915 = vmatpush1.msra.mxu0 %v360
      %4916 = vmatprep.subr.mxu0 %v363
      %4917 = vmatpush1.msra.mxu0 %v362
      %4918 = vmatprep.subr.mxu0 %v365
      %4919 = vmatpush1.msra.mxu0 %v364
      %4920 = vmatprep.subr.mxu0 %v367
      %4921 = vmatpush1.msra.mxu0 %v366
      %4922 = vmatprep.subr.mxu0 %v369
      %4923 = vmatpush1.msra.mxu0 %v368
      %4924 = vmatprep.subr.mxu0 %v371
      %4925 = vmatpush1.msra.mxu0 %v370
      %4926 = vmatprep.subr.mxu0 %v373
      %4927 = vmatpush1.msra.mxu0 %v372
      %4928 = vmatprep.mubr.f32.mxu0 %v2864
      %4929 = vmatmul.mubr.f32.gmra.mrb[0].mxu0 %v2863
      %v4930 = vpop.f32.mrb[0].mxu0
      %v4931 = vadd.f32 0.0, %v4930
      %v4932 = vpop.f32.mrb[0].mxu0
      %v4933 = vadd.f32 0.0, %v4932
      %4934 = vdwg.mxu0
      %v4935 = vadd.f32 %v4862, %v4931
      %v4936 = vadd.f32 %v4863, %v4933
      %v4939 = vrot.slane %v4935, 5
      %v4940 = vrot.slane %v4936, 5
      %v4943 = vadd.f32 %v306, %v4939
      %v4944 = vadd.f32 %v307, %v4940
      %v4945 = vadd.f32 %v308, %v4939
      %v4946 = vadd.f32 %v309, %v4940
      %v4951 = vrot.slane %v4943, 3
      %v4952 = vrot.slane %v4945, 3
      %v4953 = vsel %vm511, %v4951, %v4952
      %v4954 = vrot.slane %v4944, 3
      %v4955 = vrot.slane %v4946, 3
      %v4956 = vsel %vm511, %v4954, %v4955
      %4959 = vst [vmem:[%s305] sm:$0xff] %v4953
      %4960 = vst [vmem:[%s305 + $0x8] sm:$0xff] %v4956
      %p4961 = scmp.lt.s32.totalorder %s19, 1
      %s4962 = scalar_select %p4961, %s19, 1
      %s4963 = smul.addr %s4962, 2
      %s4964 = smul.addr %s4963, 8
      %s4965 = scalar_lea.vmem %s8, %s4964
      // Predicated region
      $region53: #{lffb_forward.1} parent=51 // pred_check
        %p4966 = pneg %p210
      $region54: #{lffb_forward.1} parent=51 // pred_check_branch
        %4968 = sbr.rel (%p4966) target = $region56
      $region55: #{lffb_forward.1} parent=51 // pred_region
        _
      $region56: #{lffb_forward.1} parent=51 // pred_fallthru
        _
    $region52: #{lffb_forward.1} parent=5 // pred_fallthru
      _
    %p4969 = scmp.le.s32.totalorder 2, %s14
    // Predicated region
    $region57: #{lffb_forward.1} parent=5 // pred_check
      %p4970 = pneg %p4969
    $region58: #{lffb_forward.1} parent=5 // pred_check_branch
      %4972 = sbr.rel (%p4970) target = $region60
    $region59: #{lffb_forward.1} parent=5 // pred_region
      %s4973 = ssub.s32 %s14, 2
      // Predicated region
      $region61: #{lffb_forward.1} parent=59 // pred_check
        %p4974 = pneg %p216
      $region62: #{lffb_forward.1} parent=59 // pred_check_branch
        %4976 = sbr.rel (%p4974) target = $region64
      $region63: #{lffb_forward.1} parent=59 // pred_region
        %p4977 = scmp.lt.s32.totalorder %s20, 1
        %s4978 = scalar_select %p4977, %s20, 1
        %s4979 = smul.addr %s4978, 2
        %s4980 = smul.addr %s4979, 8
        %s4981 = scalar_lea.vmem %s8, %s4980
      $region64: #{lffb_forward.1} parent=59 // pred_fallthru
        _
    $region60: #{lffb_forward.1} parent=5 // pred_fallthru
      _
  $region6: #{lffb_forward.1} parent=0 // loop_footer
    %s18 = sadd.s32 1, %s14
  $region7: #{lffb_forward.1} parent=0 // loop_footer_branch
    %13 = sbr.rel target = $region3
  $region8: #{lffb_forward.1} parent=0 // loop_exit
    _

</llo_original>
